<compile_context>
chip_gen: v5e
topology: v5e:2x2
jax: 0.10.0
libtpu: 0.0.40
codegen_flags: <defaults>
</compile_context>

<pallas_src>
import math

import jax
import jax.numpy as jnp
from jax.experimental import pallas as pl
from jax.experimental.pallas import tpu as pltpu

# ---------------- scaled-down ViT config (ViT-base topology) ----------------
PATCH = 16
IMG = 32
CHANNELS = 3
HIDDEN = 256                       # model width (scaled down from 768)
NUM_HEADS = 2
HEAD_DIM = HIDDEN // NUM_HEADS     # 128 -> all per-head slices are lane-tile aligned
MLP_DIM = 4 * HIDDEN               # 1024
NUM_LAYERS = 2
EPS = 1e-12                        # HF ViTConfig.layer_norm_eps

N_PATCHES = (IMG // PATCH) ** 2    # 4
SEQ = N_PATCHES + 1                # CLS + patches = 5
S_PAD = 8                          # per-image sequence padded to a sublane multiple
S_BITS = 3                         # log2(S_PAD)
PATCH_DIM = CHANNELS * PATCH * PATCH   # 768

IMGS_PER_BLOCK = 32                # 32 * 8 = 256 tokens per block (full M tile on v6e/v7x)

H3 = 3 * HIDDEN                    # q|k|v width             (768)
WA_COLS = H3 + HIDDEN + MLP_DIM    # wqkv | wo | w1 columns  (2048)


# --------------------------- in-kernel helpers -------------------------------
def _layernorm(x, g, b):
    mu = jnp.mean(x, axis=-1, keepdims=True)
    var = jnp.mean(jnp.square(x - mu), axis=-1, keepdims=True)
    return (x - mu) * jax.lax.rsqrt(var + EPS) * g + b


def _gelu(x):
    # TODO(synk): HF ViT uses exact erf-GELU; tanh approximation keeps the
    # transcendental on the EUP with a guaranteed Mosaic lowering.
    c = math.sqrt(2.0 / math.pi)
    return 0.5 * x * (1.0 + jnp.tanh(c * (x + 0.044715 * x * x * x)))


# ------------------------------- fused kernel --------------------------------
def _vit_fused_kernel(patches_ref, w_patch_ref, base_ref, wa_ref, w2_ref, pp_ref,
                      o_ref, x_ref):
    l = pl.program_id(1)
    tb = x_ref.shape[0]                          # tokens in this block
    bf16, f32 = jnp.bfloat16, jnp.float32
    H = HIDDEN

    # ---- per-block prologue (first layer step): patch projection + CLS/pos base ----
    @pl.when(l == 0)
    def _():
        pe = jnp.dot(patches_ref[...], w_patch_ref[...], preferred_element_type=f32)
        x_ref[...] = pe + base_ref[...]          # pad rows stay all-zero

    x = x_ref[...]                               # [TB, H] f32, resident in VMEM

    # ---- unpack the small-parameter slab (all lane slices 128-aligned) ----
    ln1_g = pp_ref[0, 0:1, 0:H]
    ln1_b = pp_ref[0, 0:1, H:2 * H]
    ln2_g = pp_ref[0, 0:1, 2 * H:3 * H]
    ln2_b = pp_ref[0, 0:1, 3 * H:4 * H]
    bqkv  = pp_ref[0, 1:2, 0:H3]                 # bq(scaled) | bk | bv
    bo    = pp_ref[0, 1:2, H3:H3 + H]
    b1    = pp_ref[0, 2:3, :]                    # [1, MLP_DIM]
    b2    = pp_ref[0, 3:4, 0:H]
    lnf_g = pp_ref[0, 3:4, H:2 * H]
    lnf_b = pp_ref[0, 3:4, 2 * H:3 * H]

    # ---- additive attention mask: same-image, non-pad keys (built in-kernel) ----
    row = jax.lax.broadcasted_iota(jnp.int32, (tb, tb), 0)
    col = jax.lax.broadcasted_iota(jnp.int32, (tb, tb), 1)
    keep = (jnp.right_shift(row, S_BITS) == jnp.right_shift(col, S_BITS)) & \
           (jnp.bitwise_and(col, S_PAD - 1) < SEQ)
    amask = jnp.where(keep, 0.0, -1e9).astype(f32)

    # ---- self-attention (pre-norm), fused QKV projection ----
    h = _layernorm(x, ln1_g, ln1_b).astype(bf16)
    qkv = jnp.dot(h, wa_ref[0, :, 0:H3], preferred_element_type=f32) + bqkv   # [TB, 3H]

    attn = jnp.zeros((tb, H), f32)
    for n in range(NUM_HEADS):                   # unrolled; HEAD_DIM=128 slices are aligned
        q = qkv[:, n * HEAD_DIM:(n + 1) * HEAD_DIM].astype(bf16)   # 1/sqrt(d) folded in Wq,bq
        k = qkv[:, H + n * HEAD_DIM:H + (n + 1) * HEAD_DIM].astype(bf16)
        v = qkv[:, 2 * H + n * HEAD_DIM:2 * H + (n + 1) * HEAD_DIM].astype(bf16)
        s = jnp.einsum('td,sd->ts', q, k, preferred_element_type=f32) + amask
        s = s - jnp.max(s, axis=-1, keepdims=True)
        e = jnp.exp(s)
        p = e * pl.reciprocal(jnp.sum(e, axis=-1, keepdims=True), approx=True)
        ctx = jnp.dot(p.astype(bf16), v, preferred_element_type=f32)          # [TB, HD]
        wo_n = wa_ref[0, n * HEAD_DIM:(n + 1) * HEAD_DIM, H3:H3 + H]          # [HD, H] bf16
        attn = attn + jnp.dot(ctx.astype(bf16), wo_n, preferred_element_type=f32)
    x1 = x + attn + bo                           # residual 1

    # ---- MLP (pre-norm) ----
    h2 = _layernorm(x1, ln2_g, ln2_b).astype(bf16)
    m = jnp.dot(h2, wa_ref[0, :, H3 + H:], preferred_element_type=f32) + b1
    m = _gelu(m).astype(bf16)
    m = jnp.dot(m, w2_ref[0], preferred_element_type=f32) + b2
    x2 = x1 + m                                  # residual 2
    x_ref[...] = x2

    # ---- final LayerNorm + single lane-dense output store on the last layer ----
    @pl.when(l == pl.num_programs(1) - 1)
    def _():
        o_ref[...] = _layernorm(x2, lnf_g, lnf_b).astype(o_ref.dtype)


# ------------------------------ pallas_call wrapper ---------------------------
def vit_encoder(patches, base, w, tokens_per_block):
    t = patches.shape[0]
    tb = tokens_per_block
    grid = (t // tb, NUM_LAYERS)
    return pl.pallas_call(
        _vit_fused_kernel,
        out_shape=jax.ShapeDtypeStruct((t, HIDDEN), jnp.float32),
        grid_spec=pltpu.PrefetchScalarGridSpec(
            num_scalar_prefetch=0,
            grid=grid,
            in_specs=[
                pl.BlockSpec((tb, PATCH_DIM), lambda b, l: (b, 0)),        # patches (bf16)
                pl.BlockSpec((PATCH_DIM, HIDDEN), lambda b, l: (0, 0)),    # w_patch (bf16)
                pl.BlockSpec((tb, HIDDEN), lambda b, l: (b, 0)),           # CLS+pos+bias base
                pl.BlockSpec((1, HIDDEN, WA_COLS), lambda b, l: (l, 0, 0)),    # wqkv|wo|w1
                pl.BlockSpec((1, MLP_DIM, HIDDEN), lambda b, l: (l, 0, 0)),    # w2
                pl.BlockSpec((1, 8, MLP_DIM), lambda b, l: (l, 0, 0)),         # packed small params
            ],
            out_specs=pl.BlockSpec((tb, HIDDEN), lambda b, l: (b, 0)),
            scratch_shapes=[pltpu.VMEM((tb, HIDDEN), jnp.float32)],
        ),
        # Block axis -> megacore on v7x; layer axis carries the VMEM-resident state.
        # VMEM use here is only a few MiB, so the scoped default is plenty; set
        # vmem_limit_bytes explicitly before scaling to real ViT-base dims on v7x.
        compiler_params=pltpu.CompilerParams(
            dimension_semantics=("parallel", "arbitrary")),
    )(patches, w["w_patch"], base, w["wa"], w["w2"], w["pp"])


# ----------------------------- glue (plain JAX) --------------------------------
def extract_patches(img):
    # img: [B, C, H, W] (NCHW) -> [B, N, C*P*P] with (C, ph, pw) flatten order,
    # matching Conv2d(C, HIDDEN, kernel=P, stride=P) weight flattening.
    bsz, c, hh, ww = img.shape
    gh, gw = hh // PATCH, ww // PATCH
    x = img.reshape(bsz, c, gh, PATCH, gw, PATCH)
    x = x.transpose(0, 2, 4, 1, 3, 5)            # [B, gh, gw, C, P, P]
    return x.reshape(bsz, gh * gw, c * PATCH * PATCH)


def _prepare_weights(p):
    L, H = NUM_LAYERS, HIDDEN
    scale = 1.0 / math.sqrt(HEAD_DIM)
    bf16 = jnp.bfloat16

    # Big per-layer weights packed into one bf16 slab sharing contraction dim H.
    wqkv = jnp.concatenate([p["wq"] * scale, p["wk"], p["wv"]], axis=-1)     # [L, H, 3H]
    wa = jnp.concatenate([wqkv, p["wo"], p["w1"]], axis=-1).astype(bf16)     # [L, H, WA_COLS]
    w2 = p["w2"].astype(bf16)                                                # [L, MLP, H]

    # Small per-layer params packed into one f32 [L, 8, 4H] slab (4H == MLP_DIM).
    row0 = jnp.concatenate([p["ln1_g"], p["ln1_b"], p["ln2_g"], p["ln2_b"]], axis=-1)
    row1 = jnp.concatenate([p["bq"] * scale, p["bk"], p["bv"], p["bo"]], axis=-1)
    row2 = p["b1"]
    lnf_g = jnp.broadcast_to(p["ln_f_g"][None], (L, H))
    lnf_b = jnp.broadcast_to(p["ln_f_b"][None], (L, H))
    row3 = jnp.concatenate([p["b2"], lnf_g, lnf_b, jnp.zeros((L, H), jnp.float32)], axis=-1)
    pp = jnp.concatenate(
        [jnp.stack([row0, row1, row2, row3], axis=1),
         jnp.zeros((L, 4, MLP_DIM), jnp.float32)], axis=1)                   # [L, 8, MLP_DIM]

    return {"w_patch": p["w_patch"].astype(bf16), "wa": wa, "w2": w2, "pp": pp}


def _prepare_activations(img, p, n_img_pad):
    bsz = img.shape[0]
    # Patch rows laid out per image as [CLS(zero) | patches | pad(zero)], flattened.
    patches = extract_patches(img)                                           # [B, NP, PD]
    patches = jnp.pad(patches, ((0, n_img_pad - bsz), (1, S_PAD - SEQ), (0, 0)))
    patches = patches.reshape(n_img_pad * S_PAD, PATCH_DIM).astype(jnp.bfloat16)

    # base = (CLS + pos) for row 0, (pos + conv-bias) for patch rows, 0 for pad rows.
    base_cls = (p["cls"] + p["pos"][0])[None]                                # [1, H]
    base_pat = p["pos"][1:] + p["b_patch"][None]                             # [NP, H]
    base_pad = jnp.zeros((S_PAD - SEQ, HIDDEN), jnp.float32)
    base_one = jnp.concatenate([base_cls, base_pat, base_pad], axis=0)       # [S_PAD, H]
    base = jnp.tile(base_one[None], (n_img_pad, 1, 1)).reshape(n_img_pad * S_PAD, HIDDEN)
    return patches, base


def init_params(key):
    def nrm(k, shape):
        return 0.02 * jax.random.normal(k, shape, jnp.float32)

    ks = jax.random.split(key, 9)
    L, H, M = NUM_LAYERS, HIDDEN, MLP_DIM
    return {
        "w_patch": nrm(ks[0], (PATCH_DIM, H)),
        "b_patch": jnp.zeros((H,), jnp.float32),
        "cls":     nrm(ks[1], (H,)),
        "pos":     nrm(ks[2], (SEQ, H)),
        "ln_f_g":  jnp.ones((H,), jnp.float32),
        "ln_f_b":  jnp.zeros((H,), jnp.float32),
        "ln1_g":   jnp.ones((L, H), jnp.float32),
        "ln1_b":   jnp.zeros((L, H), jnp.float32),
        "wq":      nrm(ks[3], (L, H, H)),
        "bq":      jnp.zeros((L, H), jnp.float32),
        "wk":      nrm(ks[4], (L, H, H)),
        "bk":      jnp.zeros((L, H), jnp.float32),
        "wv":      nrm(ks[5], (L, H, H)),
        "bv":      jnp.zeros((L, H), jnp.float32),
        "wo":      nrm(ks[6], (L, H, H)),
        "bo":      jnp.zeros((L, H), jnp.float32),
        "ln2_g":   jnp.ones((L, H), jnp.float32),
        "ln2_b":   jnp.zeros((L, H), jnp.float32),
        "w1":      nrm(ks[7], (L, H, M)),
        "b1":      jnp.zeros((L, M), jnp.float32),
        "w2":      nrm(ks[8], (L, M, H)),
        "b2":      jnp.zeros((L, H), jnp.float32),
    }


def image_encoder_forward(img, params):
    """Equivalent of ImageEncoder.forward: returns last_hidden_state [B, SEQ, H]."""
    bsz = img.shape[0]
    ipb = min(bsz, IMGS_PER_BLOCK)                       # images per token block
    n_img_pad = ((bsz + ipb - 1) // ipb) * ipb           # pad batch to whole blocks
    w = _prepare_weights(params)
    patches, base = _prepare_activations(img, params, n_img_pad)
    out_flat = vit_encoder(patches, base, w, ipb * S_PAD)        # [n_img_pad*S_PAD, H]
    out = out_flat.reshape(n_img_pad, S_PAD, HIDDEN)[:bsz, :SEQ, :]
    return out


# --------------------------------- main ----------------------------------------
if __name__ == "__main__":
    root = jax.random.PRNGKey(0)
    pkey, ikey = jax.random.split(root)
    params = init_params(pkey)

    img = jax.random.normal(ikey, (2, CHANNELS, IMG, IMG), jnp.float32)  # NCHW

    fwd = jax.jit(image_encoder_forward)
    out = jax.block_until_ready(fwd(img, params))

    assert out.shape == (2, SEQ, HIDDEN), out.shape
    assert out.dtype == jnp.float32
    assert bool(jnp.all(jnp.isfinite(out)))
    print("KERNEL_OK")
</pallas_src>

<mosaic_0001>
module attributes {stable_mosaic.version = 11 : i64} {
  func.func @_vit_fused_kernel(%arg0: i32, %arg1: i32, %arg2: memref<16x768xbf16, #tpu.memory_space<vmem>>, %arg3: memref<768x256xbf16, #tpu.memory_space<vmem>>, %arg4: memref<16x256xf32, #tpu.memory_space<vmem>>, %arg5: memref<1x256x2048xbf16, #tpu.memory_space<vmem>>, %arg6: memref<1x1024x256xbf16, #tpu.memory_space<vmem>>, %arg7: memref<1x8x1024xf32, #tpu.memory_space<vmem>>, %arg8: memref<16x256xf32, #tpu.memory_space<vmem>>, %arg9: memref<16x256xf32, #tpu.memory_space<vmem>>) attributes {dimension_semantics = [#tpu.dimension_semantics<parallel>, #tpu.dimension_semantics<arbitrary>], iteration_bounds = array<i64: 1, 2>, scalar_prefetch = 0 : i64, scratch_operands = 1 : i64, tpu.core_type = #tpu.core_type<tc>, window_params = [{transform_indices = @transform_0, window_bounds = array<i64: 16, 768>}, {pipeline_mode = #tpu.pipeline_mode<synchronous>, transform_indices = @transform_1, window_bounds = array<i64: 768, 256>}, {transform_indices = @transform_2, window_bounds = array<i64: 16, 256>}, {transform_indices = @transform_3, window_bounds = array<i64: 1, 256, 2048>}, {transform_indices = @transform_4, window_bounds = array<i64: 1, 1024, 256>}, {transform_indices = @transform_5, window_bounds = array<i64: 1, 8, 1024>}, {transform_indices = @transform_6, window_bounds = array<i64: 16, 256>}]} {
    %c0_i32 = arith.constant 0 : i32
    %0 = arith.cmpi eq, %arg1, %c0_i32 : i32
    %1 = arith.extui %0 : i1 to i32
    %c0_i32_0 = arith.constant 0 : i32
    %2 = arith.cmpi ne, %1, %c0_i32_0 : i32
    scf.if %2 {
      %c0_72 = arith.constant 0 : index
      %c0_73 = arith.constant 0 : index
      %173 = vector.load %arg2[%c0_72, %c0_73] : memref<16x768xbf16, #tpu.memory_space<vmem>>, vector<16x768xbf16>
      %c0_74 = arith.constant 0 : index
      %c0_75 = arith.constant 0 : index
      %174 = vector.load %arg3[%c0_74, %c0_75] : memref<768x256xbf16, #tpu.memory_space<vmem>>, vector<768x256xbf16>
      %cst_76 = arith.constant dense<0.000000e+00> : vector<16x256xf32>
      %175 = tpu.matmul %173, %174, %cst_76 {dimension_numbers = #tpu.dot_dimension_numbers<[1], [0], [0], [1], [0, 0, 1, 1], [], []>} : vector<16x768xbf16>, vector<768x256xbf16>, vector<16x256xf32> -> vector<16x256xf32>
      %c0_77 = arith.constant 0 : index
      %c0_78 = arith.constant 0 : index
      %176 = vector.load %arg4[%c0_77, %c0_78] : memref<16x256xf32, #tpu.memory_space<vmem>>, vector<16x256xf32>
      %177 = arith.addf %175, %176 : vector<16x256xf32>
      %c0_79 = arith.constant 0 : index
      %c0_80 = arith.constant 0 : index
      %178 = vector.load %arg9[%c0_79, %c0_80] : memref<16x256xf32, #tpu.memory_space<vmem>>, vector<16x256xf32>
      tpu.vector_store %arg9[%c0_79, %c0_80], %177 {strides = array<i32>} : memref<16x256xf32, #tpu.memory_space<vmem>>, vector<16x256xf32>,
    } else {
    }
    %c0 = arith.constant 0 : index
    %c0_1 = arith.constant 0 : index
    %3 = vector.load %arg9[%c0, %c0_1] : memref<16x256xf32, #tpu.memory_space<vmem>>, vector<16x256xf32>
    %c0_2 = arith.constant 0 : index
    %c0_3 = arith.constant 0 : index
    %c0_4 = arith.constant 0 : index
    %4 = vector.load %arg7[%c0_2, %c0_3, %c0_4] : memref<1x8x1024xf32, #tpu.memory_space<vmem>>, vector<1x1x256xf32>
    %5 = vector.shape_cast %4 : vector<1x1x256xf32> to vector<1x256xf32>
    %c0_5 = arith.constant 0 : index
    %c0_6 = arith.constant 0 : index
    %c256 = arith.constant 256 : index
    %6 = vector.load %arg7[%c0_5, %c0_6, %c256] : memref<1x8x1024xf32, #tpu.memory_space<vmem>>, vector<1x1x256xf32>
    %7 = vector.shape_cast %6 : vector<1x1x256xf32> to vector<1x256xf32>
    %c0_7 = arith.constant 0 : index
    %c0_8 = arith.constant 0 : index
    %c512 = arith.constant 512 : index
    %8 = vector.load %arg7[%c0_7, %c0_8, %c512] : memref<1x8x1024xf32, #tpu.memory_space<vmem>>, vector<1x1x256xf32>
    %9 = vector.shape_cast %8 : vector<1x1x256xf32> to vector<1x256xf32>
    %c0_9 = arith.constant 0 : index
    %c0_10 = arith.constant 0 : index
    %c768 = arith.constant 768 : index
    %10 = vector.load %arg7[%c0_9, %c0_10, %c768] : memref<1x8x1024xf32, #tpu.memory_space<vmem>>, vector<1x1x256xf32>
    %11 = vector.shape_cast %10 : vector<1x1x256xf32> to vector<1x256xf32>
    %c0_11 = arith.constant 0 : index
    %c1 = arith.constant 1 : index
    %c0_12 = arith.constant 0 : index
    %12 = vector.load %arg7[%c0_11, %c1, %c0_12] : memref<1x8x1024xf32, #tpu.memory_space<vmem>>, vector<1x1x768xf32>
    %13 = vector.shape_cast %12 : vector<1x1x768xf32> to vector<1x768xf32>
    %c0_13 = arith.constant 0 : index
    %c1_14 = arith.constant 1 : index
    %c768_15 = arith.constant 768 : index
    %14 = vector.load %arg7[%c0_13, %c1_14, %c768_15] : memref<1x8x1024xf32, #tpu.memory_space<vmem>>, vector<1x1x256xf32>
    %15 = vector.shape_cast %14 : vector<1x1x256xf32> to vector<1x256xf32>
    %c0_16 = arith.constant 0 : index
    %c2 = arith.constant 2 : index
    %c0_17 = arith.constant 0 : index
    %16 = vector.load %arg7[%c0_16, %c2, %c0_17] : memref<1x8x1024xf32, #tpu.memory_space<vmem>>, vector<1x1x1024xf32>
    %17 = vector.shape_cast %16 : vector<1x1x1024xf32> to vector<1x1024xf32>
    %c0_18 = arith.constant 0 : index
    %c3 = arith.constant 3 : index
    %c0_19 = arith.constant 0 : index
    %18 = vector.load %arg7[%c0_18, %c3, %c0_19] : memref<1x8x1024xf32, #tpu.memory_space<vmem>>, vector<1x1x256xf32>
    %19 = vector.shape_cast %18 : vector<1x1x256xf32> to vector<1x256xf32>
    %c0_20 = arith.constant 0 : index
    %c3_21 = arith.constant 3 : index
    %c256_22 = arith.constant 256 : index
    %20 = vector.load %arg7[%c0_20, %c3_21, %c256_22] : memref<1x8x1024xf32, #tpu.memory_space<vmem>>, vector<1x1x256xf32>
    %21 = vector.shape_cast %20 : vector<1x1x256xf32> to vector<1x256xf32>
    %c0_23 = arith.constant 0 : index
    %c3_24 = arith.constant 3 : index
    %c512_25 = arith.constant 512 : index
    %22 = vector.load %arg7[%c0_23, %c3_24, %c512_25] : memref<1x8x1024xf32, #tpu.memory_space<vmem>>, vector<1x1x256xf32>
    %23 = vector.shape_cast %22 : vector<1x1x256xf32> to vector<1x256xf32>
    %24 = tpu.iota {dimensions = array<i32: 0>} : vector<16x16xi32>
    %25 = tpu.iota {dimensions = array<i32: 1>} : vector<16x16xi32>
    %c3_i32 = arith.constant 3 : i32
    %26 = vector.broadcast %c3_i32 : i32 to vector<16x16xi32>
    %27 = arith.shrsi %24, %26 : vector<16x16xi32>
    %c3_i32_26 = arith.constant 3 : i32
    %28 = vector.broadcast %c3_i32_26 : i32 to vector<16x16xi32>
    %29 = arith.shrsi %25, %28 : vector<16x16xi32>
    %30 = arith.cmpi eq, %27, %29 : vector<16x16xi32>
    %c7_i32 = arith.constant 7 : i32
    %31 = vector.broadcast %c7_i32 : i32 to vector<16x16xi32>
    %32 = arith.andi %25, %31 : vector<16x16xi32>
    %c5_i32 = arith.constant 5 : i32
    %33 = vector.broadcast %c5_i32 : i32 to vector<16x16xi32>
    %34 = arith.cmpi slt, %32, %33 : vector<16x16xi32>
    %35 = arith.andi %30, %34 : vector<16x16xi1>
    %cst = arith.constant 0.000000e+00 : f32
    %cst_27 = arith.constant -1.000000e+09 : f32
    %36 = vector.broadcast %cst : f32 to vector<16x16xf32>
    %37 = vector.broadcast %cst_27 : f32 to vector<16x16xf32>
    %38 = arith.select %35, %36, %37 : vector<16x16xi1>, vector<16x16xf32>
    %cst_28 = arith.constant dense<0.000000e+00> : vector<16xf32>
    %39 = vector.multi_reduction <add>, %3, %cst_28 [1] : vector<16x256xf32> to vector<16xf32>
    %40 = vector.shape_cast %39 : vector<16xf32> to vector<16x1xf32>
    %cst_29 = arith.constant 2.560000e+02 : f32
    %41 = vector.broadcast %cst_29 : f32 to vector<16x1xf32>
    %42 = arith.divf %40, %41 : vector<16x1xf32>
    %43 = vector.broadcast %42 : vector<16x1xf32> to vector<16x256xf32>
    %44 = arith.subf %3, %43 : vector<16x256xf32>
    %45 = arith.mulf %44, %44 : vector<16x256xf32>
    %cst_30 = arith.constant dense<0.000000e+00> : vector<16xf32>
    %46 = vector.multi_reduction <add>, %45, %cst_30 [1] : vector<16x256xf32> to vector<16xf32>
    %47 = vector.shape_cast %46 : vector<16xf32> to vector<16x1xf32>
    %cst_31 = arith.constant 2.560000e+02 : f32
    %48 = vector.broadcast %cst_31 : f32 to vector<16x1xf32>
    %49 = arith.divf %47, %48 : vector<16x1xf32>
    %50 = vector.broadcast %42 : vector<16x1xf32> to vector<16x256xf32>
    %51 = arith.subf %3, %50 : vector<16x256xf32>
    %cst_32 = arith.constant 9.99999996E-13 : f32
    %52 = vector.broadcast %cst_32 : f32 to vector<16x1xf32>
    %53 = arith.addf %49, %52 : vector<16x1xf32>
    %54 = math.rsqrt %53 : vector<16x1xf32>
    %55 = vector.broadcast %54 : vector<16x1xf32> to vector<16x256xf32>
    %56 = arith.mulf %51, %55 : vector<16x256xf32>
    %57 = vector.broadcast %5 : vector<1x256xf32> to vector<16x256xf32>
    %58 = arith.mulf %56, %57 : vector<16x256xf32>
    %59 = vector.broadcast %7 : vector<1x256xf32> to vector<16x256xf32>
    %60 = arith.addf %58, %59 : vector<16x256xf32>
    %61 = arith.truncf %60 : vector<16x256xf32> to vector<16x256xbf16>
    %c0_33 = arith.constant 0 : index
    %c0_34 = arith.constant 0 : index
    %c0_35 = arith.constant 0 : index
    %62 = vector.load %arg5[%c0_33, %c0_34, %c0_35] : memref<1x256x2048xbf16, #tpu.memory_space<vmem>>, vector<1x256x768xbf16>
    %63 = vector.shape_cast %62 : vector<1x256x768xbf16> to vector<256x768xbf16>
    %cst_36 = arith.constant dense<0.000000e+00> : vector<16x768xf32>
    %64 = tpu.matmul %61, %63, %cst_36 {dimension_numbers = #tpu.dot_dimension_numbers<[1], [0], [0], [1], [0, 0, 1, 1], [], []>} : vector<16x256xbf16>, vector<256x768xbf16>, vector<16x768xf32> -> vector<16x768xf32>
    %65 = vector.broadcast %13 : vector<1x768xf32> to vector<16x768xf32>
    %66 = arith.addf %64, %65 : vector<16x768xf32>
    %cst_37 = arith.constant 0.000000e+00 : f32
    %67 = vector.broadcast %cst_37 : f32 to vector<16x256xf32>
    %68 = vector.extract_strided_slice %66 {offsets = [0, 0], sizes = [16, 128], strides = [1, 1]} : vector<16x768xf32> to vector<16x128xf32>
    %69 = arith.truncf %68 : vector<16x128xf32> to vector<16x128xbf16>
    %70 = vector.extract_strided_slice %66 {offsets = [0, 256], sizes = [16, 128], strides = [1, 1]} : vector<16x768xf32> to vector<16x128xf32>
    %71 = arith.truncf %70 : vector<16x128xf32> to vector<16x128xbf16>
    %72 = vector.extract_strided_slice %66 {offsets = [0, 512], sizes = [16, 128], strides = [1, 1]} : vector<16x768xf32> to vector<16x128xf32>
    %73 = arith.truncf %72 : vector<16x128xf32> to vector<16x128xbf16>
    "tpu.trace_start"() <{level = 10 : i32, message = "td,sd->ts"}> : () -> ()
    %cst_38 = arith.constant dense<0.000000e+00> : vector<16x16xf32>
    %74 = tpu.matmul %69, %71, %cst_38 {dimension_numbers = #tpu.dot_dimension_numbers<[1], [1], [0], [0], [0, 0, 1, 0], [], []>} : vector<16x128xbf16>, vector<16x128xbf16>, vector<16x16xf32> -> vector<16x16xf32>
    "tpu.trace_stop"() : () -> ()
    %75 = arith.addf %74, %38 : vector<16x16xf32>
    %cst_39 = arith.constant dense<0xFF800000> : vector<16xf32>
    %76 = vector.multi_reduction <maximumf>, %75, %cst_39 [1] : vector<16x16xf32> to vector<16xf32>
    %77 = vector.shape_cast %76 : vector<16xf32> to vector<16x1xf32>
    %78 = vector.broadcast %77 : vector<16x1xf32> to vector<16x16xf32>
    %79 = arith.subf %75, %78 : vector<16x16xf32>
    %80 = math.exp %79 : vector<16x16xf32>
    %cst_40 = arith.constant dense<0.000000e+00> : vector<16xf32>
    %81 = vector.multi_reduction <add>, %80, %cst_40 [1] : vector<16x16xf32> to vector<16xf32>
    %82 = vector.shape_cast %81 : vector<16xf32> to vector<16x1xf32>
    %83 = tpu.reciprocal %82 {approx = true} : vector<16x1xf32> -> vector<16x1xf32>
    %84 = vector.broadcast %83 : vector<16x1xf32> to vector<16x16xf32>
    %85 = arith.mulf %80, %84 : vector<16x16xf32>
    %86 = arith.truncf %85 : vector<16x16xf32> to vector<16x16xbf16>
    %cst_41 = arith.constant dense<0.000000e+00> : vector<16x128xf32>
    %87 = tpu.matmul %86, %73, %cst_41 {dimension_numbers = #tpu.dot_dimension_numbers<[1], [0], [0], [1], [0, 0, 1, 1], [], []>} : vector<16x16xbf16>, vector<16x128xbf16>, vector<16x128xf32> -> vector<16x128xf32>
    %c0_42 = arith.constant 0 : index
    %c0_43 = arith.constant 0 : index
    %c768_44 = arith.constant 768 : index
    %88 = vector.load %arg5[%c0_42, %c0_43, %c768_44] : memref<1x256x2048xbf16, #tpu.memory_space<vmem>>, vector<1x128x256xbf16>
    %89 = vector.shape_cast %88 : vector<1x128x256xbf16> to vector<128x256xbf16>
    %90 = arith.truncf %87 : vector<16x128xf32> to vector<16x128xbf16>
    %cst_45 = arith.constant dense<0.000000e+00> : vector<16x256xf32>
    %91 = tpu.matmul %90, %89, %cst_45 {dimension_numbers = #tpu.dot_dimension_numbers<[1], [0], [0], [1], [0, 0, 1, 1], [], []>} : vector<16x128xbf16>, vector<128x256xbf16>, vector<16x256xf32> -> vector<16x256xf32>
    %92 = arith.addf %67, %91 : vector<16x256xf32>
    %93 = vector.extract_strided_slice %66 {offsets = [0, 128], sizes = [16, 128], strides = [1, 1]} : vector<16x768xf32> to vector<16x128xf32>
    %94 = arith.truncf %93 : vector<16x128xf32> to vector<16x128xbf16>
    %95 = vector.extract_strided_slice %66 {offsets = [0, 384], sizes = [16, 128], strides = [1, 1]} : vector<16x768xf32> to vector<16x128xf32>
    %96 = arith.truncf %95 : vector<16x128xf32> to vector<16x128xbf16>
    %97 = vector.extract_strided_slice %66 {offsets = [0, 640], sizes = [16, 128], strides = [1, 1]} : vector<16x768xf32> to vector<16x128xf32>
    %98 = arith.truncf %97 : vector<16x128xf32> to vector<16x128xbf16>
    "tpu.trace_start"() <{level = 10 : i32, message = "td,sd->ts"}> : () -> ()
    %cst_46 = arith.constant dense<0.000000e+00> : vector<16x16xf32>
    %99 = tpu.matmul %94, %96, %cst_46 {dimension_numbers = #tpu.dot_dimension_numbers<[1], [1], [0], [0], [0, 0, 1, 0], [], []>} : vector<16x128xbf16>, vector<16x128xbf16>, vector<16x16xf32> -> vector<16x16xf32>
    "tpu.trace_stop"() : () -> ()
    %100 = arith.addf %99, %38 : vector<16x16xf32>
    %cst_47 = arith.constant dense<0xFF800000> : vector<16xf32>
    %101 = vector.multi_reduction <maximumf>, %100, %cst_47 [1] : vector<16x16xf32> to vector<16xf32>
    %102 = vector.shape_cast %101 : vector<16xf32> to vector<16x1xf32>
    %103 = vector.broadcast %102 : vector<16x1xf32> to vector<16x16xf32>
    %104 = arith.subf %100, %103 : vector<16x16xf32>
    %105 = math.exp %104 : vector<16x16xf32>
    %cst_48 = arith.constant dense<0.000000e+00> : vector<16xf32>
    %106 = vector.multi_reduction <add>, %105, %cst_48 [1] : vector<16x16xf32> to vector<16xf32>
    %107 = vector.shape_cast %106 : vector<16xf32> to vector<16x1xf32>
    %108 = tpu.reciprocal %107 {approx = true} : vector<16x1xf32> -> vector<16x1xf32>
    %109 = vector.broadcast %108 : vector<16x1xf32> to vector<16x16xf32>
    %110 = arith.mulf %105, %109 : vector<16x16xf32>
    %111 = arith.truncf %110 : vector<16x16xf32> to vector<16x16xbf16>
    %cst_49 = arith.constant dense<0.000000e+00> : vector<16x128xf32>
    %112 = tpu.matmul %111, %98, %cst_49 {dimension_numbers = #tpu.dot_dimension_numbers<[1], [0], [0], [1], [0, 0, 1, 1], [], []>} : vector<16x16xbf16>, vector<16x128xbf16>, vector<16x128xf32> -> vector<16x128xf32>
    %c0_50 = arith.constant 0 : index
    %c128 = arith.constant 128 : index
    %c768_51 = arith.constant 768 : index
    %113 = vector.load %arg5[%c0_50, %c128, %c768_51] : memref<1x256x2048xbf16, #tpu.memory_space<vmem>>, vector<1x128x256xbf16>
    %114 = vector.shape_cast %113 : vector<1x128x256xbf16> to vector<128x256xbf16>
    %115 = arith.truncf %112 : vector<16x128xf32> to vector<16x128xbf16>
    %cst_52 = arith.constant dense<0.000000e+00> : vector<16x256xf32>
    %116 = tpu.matmul %115, %114, %cst_52 {dimension_numbers = #tpu.dot_dimension_numbers<[1], [0], [0], [1], [0, 0, 1, 1], [], []>} : vector<16x128xbf16>, vector<128x256xbf16>, vector<16x256xf32> -> vector<16x256xf32>
    %117 = arith.addf %92, %116 : vector<16x256xf32>
    %118 = arith.addf %3, %117 : vector<16x256xf32>
    %119 = vector.broadcast %15 : vector<1x256xf32> to vector<16x256xf32>
    %120 = arith.addf %118, %119 : vector<16x256xf32>
    %cst_53 = arith.constant dense<0.000000e+00> : vector<16xf32>
    %121 = vector.multi_reduction <add>, %120, %cst_53 [1] : vector<16x256xf32> to vector<16xf32>
    %122 = vector.shape_cast %121 : vector<16xf32> to vector<16x1xf32>
    %cst_54 = arith.constant 2.560000e+02 : f32
    %123 = vector.broadcast %cst_54 : f32 to vector<16x1xf32>
    %124 = arith.divf %122, %123 : vector<16x1xf32>
    %125 = vector.broadcast %124 : vector<16x1xf32> to vector<16x256xf32>
    %126 = arith.subf %120, %125 : vector<16x256xf32>
    %127 = arith.mulf %126, %126 : vector<16x256xf32>
    %cst_55 = arith.constant dense<0.000000e+00> : vector<16xf32>
    %128 = vector.multi_reduction <add>, %127, %cst_55 [1] : vector<16x256xf32> to vector<16xf32>
    %129 = vector.shape_cast %128 : vector<16xf32> to vector<16x1xf32>
    %cst_56 = arith.constant 2.560000e+02 : f32
    %130 = vector.broadcast %cst_56 : f32 to vector<16x1xf32>
    %131 = arith.divf %129, %130 : vector<16x1xf32>
    %132 = vector.broadcast %124 : vector<16x1xf32> to vector<16x256xf32>
    %133 = arith.subf %120, %132 : vector<16x256xf32>
    %cst_57 = arith.constant 9.99999996E-13 : f32
    %134 = vector.broadcast %cst_57 : f32 to vector<16x1xf32>
    %135 = arith.addf %131, %134 : vector<16x1xf32>
    %136 = math.rsqrt %135 : vector<16x1xf32>
    %137 = vector.broadcast %136 : vector<16x1xf32> to vector<16x256xf32>
    %138 = arith.mulf %133, %137 : vector<16x256xf32>
    %139 = vector.broadcast %9 : vector<1x256xf32> to vector<16x256xf32>
    %140 = arith.mulf %138, %139 : vector<16x256xf32>
    %141 = vector.broadcast %11 : vector<1x256xf32> to vector<16x256xf32>
    %142 = arith.addf %140, %141 : vector<16x256xf32>
    %143 = arith.truncf %142 : vector<16x256xf32> to vector<16x256xbf16>
    %c0_58 = arith.constant 0 : index
    %c0_59 = arith.constant 0 : index
    %c1024 = arith.constant 1024 : index
    %144 = vector.load %arg5[%c0_58, %c0_59, %c1024] : memref<1x256x2048xbf16, #tpu.memory_space<vmem>>, vector<1x256x1024xbf16>
    %145 = vector.shape_cast %144 : vector<1x256x1024xbf16> to vector<256x1024xbf16>
    %cst_60 = arith.constant dense<0.000000e+00> : vector<16x1024xf32>
    %146 = tpu.matmul %143, %145, %cst_60 {dimension_numbers = #tpu.dot_dimension_numbers<[1], [0], [0], [1], [0, 0, 1, 1], [], []>} : vector<16x256xbf16>, vector<256x1024xbf16>, vector<16x1024xf32> -> vector<16x1024xf32>
    %147 = vector.broadcast %17 : vector<1x1024xf32> to vector<16x1024xf32>
    %148 = arith.addf %146, %147 : vector<16x1024xf32>
    %cst_61 = arith.constant 5.000000e-01 : f32
    %149 = vector.broadcast %cst_61 : f32 to vector<16x1024xf32>
    %150 = arith.mulf %149, %148 : vector<16x1024xf32>
    %cst_62 = arith.constant 4.471500e-02 : f32
    %151 = vector.broadcast %cst_62 : f32 to vector<16x1024xf32>
    %152 = arith.mulf %151, %148 : vector<16x1024xf32>
    %153 = arith.mulf %152, %148 : vector<16x1024xf32>
    %154 = arith.mulf %153, %148 : vector<16x1024xf32>
    %155 = arith.addf %148, %154 : vector<16x1024xf32>
    %cst_63 = arith.constant 0.797884583 : f32
    %156 = vector.broadcast %cst_63 : f32 to vector<16x1024xf32>
    %157 = arith.mulf %156, %155 : vector<16x1024xf32>
    %158 = math.tanh %157 : vector<16x1024xf32>
    %cst_64 = arith.constant 1.000000e+00 : f32
    %159 = vector.broadcast %cst_64 : f32 to vector<16x1024xf32>
    %160 = arith.addf %159, %158 : vector<16x1024xf32>
    %161 = arith.mulf %150, %160 : vector<16x1024xf32>
    %162 = arith.truncf %161 : vector<16x1024xf32> to vector<16x1024xbf16>
    %c0_65 = arith.constant 0 : index
    %c0_66 = arith.constant 0 : index
    %c0_67 = arith.constant 0 : index
    %163 = vector.load %arg6[%c0_65, %c0_66, %c0_67] : memref<1x1024x256xbf16, #tpu.memory_space<vmem>>, vector<1x1024x256xbf16>
    %164 = vector.shape_cast %163 : vector<1x1024x256xbf16> to vector<1024x256xbf16>
    %cst_68 = arith.constant dense<0.000000e+00> : vector<16x256xf32>
    %165 = tpu.matmul %162, %164, %cst_68 {dimension_numbers = #tpu.dot_dimension_numbers<[1], [0], [0], [1], [0, 0, 1, 1], [], []>} : vector<16x1024xbf16>, vector<1024x256xbf16>, vector<16x256xf32> -> vector<16x256xf32>
    %166 = vector.broadcast %19 : vector<1x256xf32> to vector<16x256xf32>
    %167 = arith.addf %165, %166 : vector<16x256xf32>
    %168 = arith.addf %120, %167 : vector<16x256xf32>
    %c0_69 = arith.constant 0 : index
    %c0_70 = arith.constant 0 : index
    %169 = vector.load %arg9[%c0_69, %c0_70] : memref<16x256xf32, #tpu.memory_space<vmem>>, vector<16x256xf32>
    tpu.vector_store %arg9[%c0_69, %c0_70], %168 {strides = array<i32>} : memref<16x256xf32, #tpu.memory_space<vmem>>, vector<16x256xf32>,
    %c1_i32 = arith.constant 1 : i32
    %170 = arith.cmpi eq, %arg1, %c1_i32 : i32
    %171 = arith.extui %170 : i1 to i32
    %c0_i32_71 = arith.constant 0 : i32
    %172 = arith.cmpi ne, %171, %c0_i32_71 : i32
    scf.if %172 {
      %cst_72 = arith.constant dense<0.000000e+00> : vector<16xf32>
      %173 = vector.multi_reduction <add>, %168, %cst_72 [1] : vector<16x256xf32> to vector<16xf32>
      %174 = vector.shape_cast %173 : vector<16xf32> to vector<16x1xf32>
      %cst_73 = arith.constant 2.560000e+02 : f32
      %175 = vector.broadcast %cst_73 : f32 to vector<16x1xf32>
      %176 = arith.divf %174, %175 : vector<16x1xf32>
      %177 = vector.broadcast %176 : vector<16x1xf32> to vector<16x256xf32>
      %178 = arith.subf %168, %177 : vector<16x256xf32>
      %179 = arith.mulf %178, %178 : vector<16x256xf32>
      %cst_74 = arith.constant dense<0.000000e+00> : vector<16xf32>
      %180 = vector.multi_reduction <add>, %179, %cst_74 [1] : vector<16x256xf32> to vector<16xf32>
      %181 = vector.shape_cast %180 : vector<16xf32> to vector<16x1xf32>
      %cst_75 = arith.constant 2.560000e+02 : f32
      %182 = vector.broadcast %cst_75 : f32 to vector<16x1xf32>
      %183 = arith.divf %181, %182 : vector<16x1xf32>
      %184 = vector.broadcast %176 : vector<16x1xf32> to vector<16x256xf32>
      %185 = arith.subf %168, %184 : vector<16x256xf32>
      %cst_76 = arith.constant 9.99999996E-13 : f32
      %186 = vector.broadcast %cst_76 : f32 to vector<16x1xf32>
      %187 = arith.addf %183, %186 : vector<16x1xf32>
      %188 = math.rsqrt %187 : vector<16x1xf32>
      %189 = vector.broadcast %188 : vector<16x1xf32> to vector<16x256xf32>
      %190 = arith.mulf %185, %189 : vector<16x256xf32>
      %191 = vector.broadcast %21 : vector<1x256xf32> to vector<16x256xf32>
      %192 = arith.mulf %190, %191 : vector<16x256xf32>
      %193 = vector.broadcast %23 : vector<1x256xf32> to vector<16x256xf32>
      %194 = arith.addf %192, %193 : vector<16x256xf32>
      %c0_77 = arith.constant 0 : index
      %c0_78 = arith.constant 0 : index
      %195 = vector.load %arg8[%c0_77, %c0_78] : memref<16x256xf32, #tpu.memory_space<vmem>>, vector<16x256xf32>
      tpu.vector_store %arg8[%c0_77, %c0_78], %194 {strides = array<i32>} : memref<16x256xf32, #tpu.memory_space<vmem>>, vector<16x256xf32>,
    } else {
    }
    return
  }
  func.func @transform_0(%arg0: i32, %arg1: i32) -> (i32, i32) {
    %c0_i32 = arith.constant 0 : i32
    %c0_i32_0 = arith.constant 0 : i32
    return %arg0, %c0_i32 : i32, i32
  }
  func.func @transform_1(%arg0: i32, %arg1: i32) -> (i32, i32) {
    %c0_i32 = arith.constant 0 : i32
    %c0_i32_0 = arith.constant 0 : i32
    %c0_i32_1 = arith.constant 0 : i32
    return %c0_i32, %c0_i32_0 : i32, i32
  }
  func.func @transform_2(%arg0: i32, %arg1: i32) -> (i32, i32) {
    %c0_i32 = arith.constant 0 : i32
    %c0_i32_0 = arith.constant 0 : i32
    return %arg0, %c0_i32 : i32, i32
  }
  func.func @transform_3(%arg0: i32, %arg1: i32) -> (i32, i32, i32) {
    %c0_i32 = arith.constant 0 : i32
    %c0_i32_0 = arith.constant 0 : i32
    %c0_i32_1 = arith.constant 0 : i32
    return %arg1, %c0_i32, %c0_i32_0 : i32, i32, i32
  }
  func.func @transform_4(%arg0: i32, %arg1: i32) -> (i32, i32, i32) {
    %c0_i32 = arith.constant 0 : i32
    %c0_i32_0 = arith.constant 0 : i32
    %c0_i32_1 = arith.constant 0 : i32
    return %arg1, %c0_i32, %c0_i32_0 : i32, i32, i32
  }
  func.func @transform_5(%arg0: i32, %arg1: i32) -> (i32, i32, i32) {
    %c0_i32 = arith.constant 0 : i32
    %c0_i32_0 = arith.constant 0 : i32
    %c0_i32_1 = arith.constant 0 : i32
    return %arg1, %c0_i32, %c0_i32_0 : i32, i32, i32
  }
  func.func @transform_6(%arg0: i32, %arg1: i32) -> (i32, i32) {
    %c0_i32 = arith.constant 0 : i32
    %c0_i32_0 = arith.constant 0 : i32
    return %arg0, %c0_i32 : i32, i32
  }
}

</mosaic_0001>

<llo_original>
// kernel: image_encoder_forward.1
$region0: #{image_encoder_forward.1}
  #allocation0 [shape = 'u32[]', space=smem, size = 0x4, offset = 0x4, fixed_abs, tag = 'smem constant byte address 0x4 - core index']
  #allocation1 [shape = 'u32[72,128]{1,0:T(1,128)}', space=vmem, size = 0x9000, scoped, tag = 'internal scratch']
  #allocation2 [shape = 'f32[16,256]{1,0:T(8,128)}', space=vmem, size = 0x4000, scoped, tag = 'scratch operand']
  %s0 = inlined_call_operand.vmem [shape: bf16[16,768], index: 0, kind: input, shape index: {}]
  %s1 = inlined_call_operand.vmem [shape: bf16[768,256], index: 1, kind: input, shape index: {}]
  %s2 = inlined_call_operand.vmem [shape: f32[16,256], index: 2, kind: input, shape index: {}]
  %s3 = inlined_call_operand.vmem [shape: bf16[2,256,2048], index: 3, kind: input, shape index: {}]
  %s4 = inlined_call_operand.vmem [shape: bf16[2,1024,256], index: 4, kind: input, shape index: {}]
  %s5 = inlined_call_operand.vmem [shape: f32[2,8,1024], index: 5, kind: input, shape index: {}]
  %s6 = inlined_call_operand.vmem [shape: f32[16,256], index: 6, kind: output, shape index: {}]
  %s7 = sld [smem:[#allocation0]]
  $region65: #{image_encoder_forward.1} parent=0
    _
  %s9 = ssub.s32 1, %s7
  %s10 = scalar_select 0, %s9, %s7
  loop: start=0, step=1, limit=4
  $region2: #{image_encoder_forward.1} parent=0 // loop_pre_header
    _
  $region3: #{image_encoder_forward.1} parent=0 // loop_header
    %s12 = sphi 0, %s16
    %p13 = scmp.ge.s32.totalorder %s12, 4
    %s19 = sphi 0, %s31
    %s20 = sphi 0, %s27
    %s21 = sphi 0, %s19
    %s22 = sphi 0, %s20
    %s23 = sphi 0, %s21
    %s24 = sphi 0, %s22
    %s34 = sphi 0, %s36
    %s37 = sphi 0, %s34
    %s38 = sphi 0, %s37
    %s54 = sphi 0, %s38
    %s58 = sphi 0, %s58
    %s60 = sphi 0, %s58
    %s61 = sphi 0, %s60
    %s75 = sphi 0, %s61
    %s81 = sphi 0, %s83
    %s84 = sphi 0, %s81
    %s85 = sphi 0, %s84
    %s101 = sphi 0, %s85
    %s107 = sphi 0, %s109
    %s110 = sphi 0, %s107
    %s111 = sphi 0, %s110
    %s127 = sphi 0, %s111
    %s133 = sphi 0, %s135
    %s136 = sphi 0, %s133
    %s137 = sphi 0, %s136
    %s153 = sphi 0, %s137
    %s159 = sphi 0, %s161
    %s162 = sphi 0, %s159
    %s163 = sphi 0, %s162
    %s179 = sphi 0, %s163
    %s185 = sphi 0, %s187
    %s188 = sphi 0, %s185
    %s189 = sphi 0, %s188
    %s205 = sphi 0, %s189
  $region4: #{image_encoder_forward.1} parent=0 // loop_header_branch
    %15 = sbr.rel (%p13) target = $region8
  $region5: #{image_encoder_forward.1} parent=0 // loop_body
    %s17 = ssub.s32 %s12, 1
    %s18 = ssub.s32 %s12, 2
    %s25 = sadd.s32 1, %s20
    %p26 = scmp.ge.s32.totalorder %s25, 2
    %s27 = scalar_select %p26, 0, %s25
    %s28 = sadd.s32 1, %s19
    %s29 = scalar_select %p26, %s28, %s19
    %p30 = scmp.ge.s32.totalorder %s29, 1
    %s31 = scalar_select %p30, 0, %s29
    %s32 = ssub.s32 %s19, %s31
    %p33 = scmp.eq.s32.totalorder %s32, 0
    %s35 = sadd.s32 %s34, 1
    %s36 = scalar_select %p33, %s34, %s35
    %p39 = pneg %p33
    %p40 = scmp.eq.s32.totalorder %s12, 1
    %p41 = por %p39, %p40
    %p42 = scmp.ne.s32.totalorder %s34, %s37
    %p43 = scmp.eq.s32.totalorder %s12, 0
    %p44 = por %p42, %p43
    %p45 = scmp.ne.s32.totalorder %s34, %s37
    %p46 = scmp.eq.s32.totalorder %s17, 1
    %p47 = por %p45, %p46
    %p48 = scmp.ne.s32.totalorder %s37, %s38
    %p49 = scmp.eq.s32.totalorder %s17, 0
    %p50 = por %p48, %p49
    %p51 = scmp.ne.s32.totalorder %s37, %s38
    %p52 = scmp.eq.s32.totalorder %s18, 1
    %p53 = por %p51, %p52
    %p55 = scmp.ne.s32.totalorder %s38, %s54
    %p56 = scmp.eq.s32.totalorder %s18, 0
    %p57 = por %p55, %p56
    %s59 = sadd.s32 %s58, 1
    %p62 = scmp.eq.s32.totalorder %s12, 1
    %p63 = scmp.ne.s32.totalorder %s58, %s60
    %p64 = scmp.eq.s32.totalorder %s12, 0
    %p65 = por %p63, %p64
    %p66 = scmp.ne.s32.totalorder %s58, %s60
    %p67 = scmp.eq.s32.totalorder %s17, 1
    %p68 = por %p66, %p67
    %p69 = scmp.ne.s32.totalorder %s60, %s61
    %p70 = scmp.eq.s32.totalorder %s17, 0
    %p71 = por %p69, %p70
    %p72 = scmp.ne.s32.totalorder %s60, %s61
    %p73 = scmp.eq.s32.totalorder %s18, 1
    %p74 = por %p72, %p73
    %p76 = scmp.ne.s32.totalorder %s61, %s75
    %p77 = scmp.eq.s32.totalorder %s18, 0
    %p78 = por %p76, %p77
    %s79 = ssub.s32 %s19, %s31
    %p80 = scmp.eq.s32.totalorder %s79, 0
    %s82 = sadd.s32 %s81, 1
    %s83 = scalar_select %p80, %s81, %s82
    %p86 = pneg %p80
    %p87 = scmp.eq.s32.totalorder %s12, 1
    %p88 = por %p86, %p87
    %p89 = scmp.ne.s32.totalorder %s81, %s84
    %p90 = scmp.eq.s32.totalorder %s12, 0
    %p91 = por %p89, %p90
    %p92 = scmp.ne.s32.totalorder %s81, %s84
    %p93 = scmp.eq.s32.totalorder %s17, 1
    %p94 = por %p92, %p93
    %p95 = scmp.ne.s32.totalorder %s84, %s85
    %p96 = scmp.eq.s32.totalorder %s17, 0
    %p97 = por %p95, %p96
    %p98 = scmp.ne.s32.totalorder %s84, %s85
    %p99 = scmp.eq.s32.totalorder %s18, 1
    %p100 = por %p98, %p99
    %p102 = scmp.ne.s32.totalorder %s85, %s101
    %p103 = scmp.eq.s32.totalorder %s18, 0
    %p104 = por %p102, %p103
    %s105 = ssub.s32 %s20, %s27
    %p106 = scmp.eq.s32.totalorder %s105, 0
    %s108 = sadd.s32 %s107, 1
    %s109 = scalar_select %p106, %s107, %s108
    %p112 = pneg %p106
    %p113 = scmp.eq.s32.totalorder %s12, 1
    %p114 = por %p112, %p113
    %p115 = scmp.ne.s32.totalorder %s107, %s110
    %p116 = scmp.eq.s32.totalorder %s12, 0
    %p117 = por %p115, %p116
    %p118 = scmp.ne.s32.totalorder %s107, %s110
    %p119 = scmp.eq.s32.totalorder %s17, 1
    %p120 = por %p118, %p119
    %p121 = scmp.ne.s32.totalorder %s110, %s111
    %p122 = scmp.eq.s32.totalorder %s17, 0
    %p123 = por %p121, %p122
    %p124 = scmp.ne.s32.totalorder %s110, %s111
    %p125 = scmp.eq.s32.totalorder %s18, 1
    %p126 = por %p124, %p125
    %p128 = scmp.ne.s32.totalorder %s111, %s127
    %p129 = scmp.eq.s32.totalorder %s18, 0
    %p130 = por %p128, %p129
    %s131 = ssub.s32 %s20, %s27
    %p132 = scmp.eq.s32.totalorder %s131, 0
    %s134 = sadd.s32 %s133, 1
    %s135 = scalar_select %p132, %s133, %s134
    %p138 = pneg %p132
    %p139 = scmp.eq.s32.totalorder %s12, 1
    %p140 = por %p138, %p139
    %p141 = scmp.ne.s32.totalorder %s133, %s136
    %p142 = scmp.eq.s32.totalorder %s12, 0
    %p143 = por %p141, %p142
    %p144 = scmp.ne.s32.totalorder %s133, %s136
    %p145 = scmp.eq.s32.totalorder %s17, 1
    %p146 = por %p144, %p145
    %p147 = scmp.ne.s32.totalorder %s136, %s137
    %p148 = scmp.eq.s32.totalorder %s17, 0
    %p149 = por %p147, %p148
    %p150 = scmp.ne.s32.totalorder %s136, %s137
    %p151 = scmp.eq.s32.totalorder %s18, 1
    %p152 = por %p150, %p151
    %p154 = scmp.ne.s32.totalorder %s137, %s153
    %p155 = scmp.eq.s32.totalorder %s18, 0
    %p156 = por %p154, %p155
    %s157 = ssub.s32 %s20, %s27
    %p158 = scmp.eq.s32.totalorder %s157, 0
    %s160 = sadd.s32 %s159, 1
    %s161 = scalar_select %p158, %s159, %s160
    %p164 = pneg %p158
    %p165 = scmp.eq.s32.totalorder %s12, 1
    %p166 = por %p164, %p165
    %p167 = scmp.ne.s32.totalorder %s159, %s162
    %p168 = scmp.eq.s32.totalorder %s12, 0
    %p169 = por %p167, %p168
    %p170 = scmp.ne.s32.totalorder %s159, %s162
    %p171 = scmp.eq.s32.totalorder %s17, 1
    %p172 = por %p170, %p171
    %p173 = scmp.ne.s32.totalorder %s162, %s163
    %p174 = scmp.eq.s32.totalorder %s17, 0
    %p175 = por %p173, %p174
    %p176 = scmp.ne.s32.totalorder %s162, %s163
    %p177 = scmp.eq.s32.totalorder %s18, 1
    %p178 = por %p176, %p177
    %p180 = scmp.ne.s32.totalorder %s163, %s179
    %p181 = scmp.eq.s32.totalorder %s18, 0
    %p182 = por %p180, %p181
    %s183 = ssub.s32 %s19, %s31
    %p184 = scmp.eq.s32.totalorder %s183, 0
    %s186 = sadd.s32 %s185, 1
    %s187 = scalar_select %p184, %s185, %s186
    %p190 = pneg %p184
    %p191 = scmp.eq.s32.totalorder %s12, 1
    %p192 = por %p190, %p191
    %p193 = scmp.ne.s32.totalorder %s185, %s188
    %p194 = scmp.eq.s32.totalorder %s12, 0
    %p195 = por %p193, %p194
    %p196 = scmp.ne.s32.totalorder %s185, %s188
    %p197 = scmp.eq.s32.totalorder %s17, 1
    %p198 = por %p196, %p197
    %p199 = scmp.ne.s32.totalorder %s188, %s189
    %p200 = scmp.eq.s32.totalorder %s17, 0
    %p201 = por %p199, %p200
    %p202 = scmp.ne.s32.totalorder %s188, %s189
    %p203 = scmp.eq.s32.totalorder %s18, 1
    %p204 = por %p202, %p203
    %p206 = scmp.ne.s32.totalorder %s189, %s205
    %p207 = scmp.eq.s32.totalorder %s18, 0
    %p208 = por %p206, %p207
    %p209 = scmp.le.s32.totalorder 1, %s12
    %p210 = scmp.lt.s32.totalorder %s12, 3
    %p211 = pnand %p209, %p210
    %p212 = pneg %p211
    // Predicated region
    $region9: #{image_encoder_forward.1} parent=5 // pred_check
      _
    $region10: #{image_encoder_forward.1} parent=5 // pred_check_branch
      %214 = sbr.rel (%p211) target = $region12
    $region11: #{image_encoder_forward.1} parent=5 // pred_region
      %s215 = ssub.s32 %s12, 1
      // Predicated region
      $region13: #{image_encoder_forward.1} parent=11 // pred_check
        %p216 = pneg %p50
      $region14: #{image_encoder_forward.1} parent=11 // pred_check_branch
        %218 = sbr.rel (%p216) target = $region16
      $region15: #{image_encoder_forward.1} parent=11 // pred_region
        %s219 = smul.u32 2, %s21
        %p220 = scmp.lt.s32.totalorder %s219, 1
        %s221 = scalar_select %p220, %s219, 1
        %s222 = smul.addr %s221, 6
        %s223 = smul.addr %s222, 4
        %s224 = scalar_lea.vmem %s0, %s223
        %s225 = smul.u32 2, %s21
      $region16: #{image_encoder_forward.1} parent=11 // pred_fallthru
        _
      // Predicated region
      $region17: #{image_encoder_forward.1} parent=11 // pred_check
        %p226 = pneg %p71
      $region18: #{image_encoder_forward.1} parent=11 // pred_check_branch
        %228 = sbr.rel (%p226) target = $region20
      $region19: #{image_encoder_forward.1} parent=11 // pred_region
        _
      $region20: #{image_encoder_forward.1} parent=11 // pred_fallthru
        _
      // Predicated region
      $region21: #{image_encoder_forward.1} parent=11 // pred_check
        %p229 = pneg %p97
      $region22: #{image_encoder_forward.1} parent=11 // pred_check_branch
        %231 = sbr.rel (%p229) target = $region24
      $region23: #{image_encoder_forward.1} parent=11 // pred_region
        %s232 = smul.u32 2, %s21
        %p233 = scmp.lt.s32.totalorder %s232, 1
        %s234 = scalar_select %p233, %s232, 1
        %s235 = smul.addr %s234, 2
        %s236 = smul.addr %s235, 8
        %s237 = scalar_lea.vmem %s2, %s236
        %s238 = smul.u32 2, %s21
      $region24: #{image_encoder_forward.1} parent=11 // pred_fallthru
        _
    $region12: #{image_encoder_forward.1} parent=5 // pred_fallthru
      _
    %p239 = scmp.lt.s32.totalorder %s12, 2
    // Predicated region
    $region25: #{image_encoder_forward.1} parent=5 // pred_check
      %p240 = pneg %p239
    $region26: #{image_encoder_forward.1} parent=5 // pred_check_branch
      %242 = sbr.rel (%p240) target = $region28
    $region27: #{image_encoder_forward.1} parent=5 // pred_region
      // Predicated region
      $region29: #{image_encoder_forward.1} parent=27 // pred_check
        %p243 = pneg %p117
      $region30: #{image_encoder_forward.1} parent=27 // pred_check_branch
        %245 = sbr.rel (%p243) target = $region32
      $region31: #{image_encoder_forward.1} parent=27 // pred_region
        %p246 = scmp.lt.s32.totalorder %s20, 1
        %s247 = scalar_select %p246, %s20, 1
        %s248 = smul.addr %s247, 512
        %s249 = smul.addr %s248, 4
        %s250 = scalar_lea.vmem %s3, %s249
      $region32: #{image_encoder_forward.1} parent=27 // pred_fallthru
        _
      // Predicated region
      $region33: #{image_encoder_forward.1} parent=27 // pred_check
        %p251 = pneg %p143
      $region34: #{image_encoder_forward.1} parent=27 // pred_check_branch
        %253 = sbr.rel (%p251) target = $region36
      $region35: #{image_encoder_forward.1} parent=27 // pred_region
        %p254 = scmp.lt.s32.totalorder %s20, 1
        %s255 = scalar_select %p254, %s20, 1
        %s256 = smul.addr %s255, 256
        %s257 = smul.addr %s256, 4
        %s258 = scalar_lea.vmem %s4, %s257
      $region36: #{image_encoder_forward.1} parent=27 // pred_fallthru
        _
      // Predicated region
      $region37: #{image_encoder_forward.1} parent=27 // pred_check
        %p259 = pneg %p169
      $region38: #{image_encoder_forward.1} parent=27 // pred_check_branch
        %261 = sbr.rel (%p259) target = $region40
      $region39: #{image_encoder_forward.1} parent=27 // pred_region
        %p262 = scmp.lt.s32.totalorder %s20, 1
        %s263 = scalar_select %p262, %s20, 1
        %s264 = smul.addr %s263, 8
        %s265 = smul.addr %s264, 8
        %s266 = scalar_lea.vmem %s5, %s265
      $region40: #{image_encoder_forward.1} parent=27 // pred_fallthru
        _
    $region28: #{image_encoder_forward.1} parent=5 // pred_fallthru
      _
    %p267 = scmp.le.s32.totalorder 1, %s12
    %p268 = scmp.lt.s32.totalorder %s12, 3
    %p269 = pnand %p267, %p268
    %p270 = pneg %p269
    // Predicated region
    $region41: #{image_encoder_forward.1} parent=5 // pred_check
      _
    $region42: #{image_encoder_forward.1} parent=5 // pred_check_branch
      %272 = sbr.rel (%p269) target = $region44
    $region43: #{image_encoder_forward.1} parent=5 // pred_region
      %s273 = ssub.s32 %s12, 1
      %s274 = smul.u32 2, %s21
      %p275 = scmp.lt.s32.totalorder %s274, 1
      %s276 = scalar_select %p275, %s274, 1
      %s277 = smul.addr %s276, 6
      %s278 = smul.addr %s277, 4
      %s279 = scalar_lea.vmem %s0, %s278
      %p280 = pneg %p50
      %p281 = pneg %p47
      %p282 = pneg %p71
      %p283 = pneg %p68
      %s284 = smul.u32 2, %s21
      %p285 = scmp.lt.s32.totalorder %s284, 1
      %s286 = scalar_select %p285, %s284, 1
      %s287 = smul.addr %s286, 2
      %s288 = smul.addr %s287, 8
      %s289 = scalar_lea.vmem %s2, %s288
      %p290 = pneg %p97
      %p291 = pneg %p94
      %p292 = scmp.lt.s32.totalorder %s22, 1
      %s293 = scalar_select %p292, %s22, 1
      %s294 = smul.addr %s293, 512
      %s295 = smul.addr %s294, 4
      %s296 = scalar_lea.vmem %s3, %s295
      %p297 = pneg %p123
      %p298 = pneg %p120
      %p299 = scmp.lt.s32.totalorder %s22, 1
      %s300 = scalar_select %p299, %s22, 1
      %s301 = smul.addr %s300, 256
      %s302 = smul.addr %s301, 4
      %s303 = scalar_lea.vmem %s4, %s302
      %p304 = pneg %p149
      %p305 = pneg %p146
      %p306 = scmp.lt.s32.totalorder %s22, 1
      %s307 = scalar_select %p306, %s22, 1
      %s308 = smul.addr %s307, 8
      %s309 = smul.addr %s308, 8
      %s310 = scalar_lea.vmem %s5, %s309
      %p311 = pneg %p175
      %p312 = pneg %p172
      %p313 = pneg %p201
      %p314 = pneg %p198
      %s315 = smul.u32 2, %s21
      %p316 = scmp.lt.s32.totalorder %s315, 1
      %s317 = scalar_select %p316, %s315, 1
      %s318 = smul.addr %s317, 2
      %s319 = smul.addr %s318, 8
      %s320 = scalar_lea.vmem %s6, %s319
      %s321 = smul.u32 2, %s21
      %p322 = scmp.lt.s32.totalorder %s321, 1
      %s323 = scalar_select %p322, %s321, 1
      %s324 = smul.addr %s323, 6
      %s325 = smul.addr %s324, 4
      %s326 = scalar_lea.vmem %s0, %s325
      %s327 = smul.u32 2, %s21
      %s328 = smul.u32 2, %s21
      %p329 = scmp.lt.s32.totalorder %s328, 1
      %s330 = scalar_select %p329, %s328, 1
      %s331 = smul.addr %s330, 2
      %s332 = smul.addr %s331, 8
      %s333 = scalar_lea.vmem %s2, %s332
      %s334 = smul.u32 2, %s21
      %p335 = scmp.lt.s32.totalorder %s22, 1
      %s336 = scalar_select %p335, %s22, 1
      %s337 = smul.addr %s336, 512
      %s338 = smul.addr %s337, 4
      %s339 = scalar_lea.vmem %s3, %s338
      %p340 = scmp.lt.s32.totalorder %s22, 1
      %s341 = scalar_select %p340, %s22, 1
      %s342 = smul.addr %s341, 256
      %s343 = smul.addr %s342, 4
      %s344 = scalar_lea.vmem %s4, %s343
      %p345 = scmp.lt.s32.totalorder %s22, 1
      %s346 = scalar_select %p345, %s22, 1
      %s347 = smul.addr %s346, 8
      %s348 = smul.addr %s347, 8
      %s349 = scalar_lea.vmem %s5, %s348
      %s350 = smul.u32 2, %s21
      %p351 = scmp.lt.s32.totalorder %s350, 1
      %s352 = scalar_select %p351, %s350, 1
      %s353 = smul.addr %s352, 2
      %s354 = smul.addr %s353, 8
      %s355 = scalar_lea.vmem %s6, %s354
      %s356 = smul.u32 2, %s21
      %p358 = scmp.eq.s32.totalorder %s22, 0
      // Predicated region
      $region45: #{image_encoder_forward.1} parent=43 // pred_check
        %p359 = pneg %p358
      $region46: #{image_encoder_forward.1} parent=43 // pred_check_branch
        %361 = sbr.rel (%p359) target = $region48
      $region47: #{image_encoder_forward.1} parent=43 // pred_region
        %v362 = vld [vmem:[%s326] sm:$0xff]
        %v363 = vld [vmem:[%s326 + $0x8] sm:$0xff]
        %v364 = vld [vmem:[%s326 + $0x10] sm:$0xff]
        %v365 = vld [vmem:[%s326 + $0x18] sm:$0xff]
        %v366 = vld [vmem:[%s326 + $0x20] sm:$0xff]
        %v367 = vld [vmem:[%s326 + $0x28] sm:$0xff]
        %v368 = vld [vmem:[%s1] sm:$0xff]
        %v369 = vld [vmem:[%s1 + $0x8] sm:$0xff]
        %v370 = vld [vmem:[%s1 + $0x10] sm:$0xff]
        %v371 = vld [vmem:[%s1 + $0x18] sm:$0xff]
        %v372 = vld [vmem:[%s1 + $0x20] sm:$0xff]
        %v373 = vld [vmem:[%s1 + $0x28] sm:$0xff]
        %v374 = vld [vmem:[%s1 + $0x30] sm:$0xff]
        %v375 = vld [vmem:[%s1 + $0x38] sm:$0xff]
        %v376 = vld [vmem:[%s1 + $0x40] sm:$0xff]
        %v377 = vld [vmem:[%s1 + $0x48] sm:$0xff]
        %v378 = vld [vmem:[%s1 + $0x50] sm:$0xff]
        %v379 = vld [vmem:[%s1 + $0x58] sm:$0xff]
        %v380 = vld [vmem:[%s1 + $0x60] sm:$0xff]
        %v381 = vld [vmem:[%s1 + $0x68] sm:$0xff]
        %v382 = vld [vmem:[%s1 + $0x70] sm:$0xff]
        %v383 = vld [vmem:[%s1 + $0x78] sm:$0xff]
        %v384 = vld [vmem:[%s1 + $0x80] sm:$0xff]
        %v385 = vld [vmem:[%s1 + $0x88] sm:$0xff]
        %v386 = vld [vmem:[%s1 + $0x90] sm:$0xff]
        %v387 = vld [vmem:[%s1 + $0x98] sm:$0xff]
        %v388 = vld [vmem:[%s1 + $0xa0] sm:$0xff]
        %v389 = vld [vmem:[%s1 + $0xa8] sm:$0xff]
        %v390 = vld [vmem:[%s1 + $0xb0] sm:$0xff]
        %v391 = vld [vmem:[%s1 + $0xb8] sm:$0xff]
        %v392 = vld [vmem:[%s1 + $0xc0] sm:$0xff]
        %v393 = vld [vmem:[%s1 + $0xc8] sm:$0xff]
        %v394 = vld [vmem:[%s1 + $0xd0] sm:$0xff]
        %v395 = vld [vmem:[%s1 + $0xd8] sm:$0xff]
        %v396 = vld [vmem:[%s1 + $0xe0] sm:$0xff]
        %v397 = vld [vmem:[%s1 + $0xe8] sm:$0xff]
        %v398 = vld [vmem:[%s1 + $0xf0] sm:$0xff]
        %v399 = vld [vmem:[%s1 + $0xf8] sm:$0xff]
        %v400 = vld [vmem:[%s1 + $0x100] sm:$0xff]
        %v401 = vld [vmem:[%s1 + $0x108] sm:$0xff]
        %v402 = vld [vmem:[%s1 + $0x110] sm:$0xff]
        %v403 = vld [vmem:[%s1 + $0x118] sm:$0xff]
        %v404 = vld [vmem:[%s1 + $0x120] sm:$0xff]
        %v405 = vld [vmem:[%s1 + $0x128] sm:$0xff]
        %v406 = vld [vmem:[%s1 + $0x130] sm:$0xff]
        %v407 = vld [vmem:[%s1 + $0x138] sm:$0xff]
        %v408 = vld [vmem:[%s1 + $0x140] sm:$0xff]
        %v409 = vld [vmem:[%s1 + $0x148] sm:$0xff]
        %v410 = vld [vmem:[%s1 + $0x150] sm:$0xff]
        %v411 = vld [vmem:[%s1 + $0x158] sm:$0xff]
        %v412 = vld [vmem:[%s1 + $0x160] sm:$0xff]
        %v413 = vld [vmem:[%s1 + $0x168] sm:$0xff]
        %v414 = vld [vmem:[%s1 + $0x170] sm:$0xff]
        %v415 = vld [vmem:[%s1 + $0x178] sm:$0xff]
        %v416 = vld [vmem:[%s1 + $0x180] sm:$0xff]
        %v417 = vld [vmem:[%s1 + $0x188] sm:$0xff]
        %v418 = vld [vmem:[%s1 + $0x190] sm:$0xff]
        %v419 = vld [vmem:[%s1 + $0x198] sm:$0xff]
        %v420 = vld [vmem:[%s1 + $0x1a0] sm:$0xff]
        %v421 = vld [vmem:[%s1 + $0x1a8] sm:$0xff]
        %v422 = vld [vmem:[%s1 + $0x1b0] sm:$0xff]
        %v423 = vld [vmem:[%s1 + $0x1b8] sm:$0xff]
        %v424 = vld [vmem:[%s1 + $0x1c0] sm:$0xff]
        %v425 = vld [vmem:[%s1 + $0x1c8] sm:$0xff]
        %v426 = vld [vmem:[%s1 + $0x1d0] sm:$0xff]
        %v427 = vld [vmem:[%s1 + $0x1d8] sm:$0xff]
        %v428 = vld [vmem:[%s1 + $0x1e0] sm:$0xff]
        %v429 = vld [vmem:[%s1 + $0x1e8] sm:$0xff]
        %v430 = vld [vmem:[%s1 + $0x1f0] sm:$0xff]
        %v431 = vld [vmem:[%s1 + $0x1f8] sm:$0xff]
        %v432 = vld [vmem:[%s1 + $0x200] sm:$0xff]
        %v433 = vld [vmem:[%s1 + $0x208] sm:$0xff]
        %v434 = vld [vmem:[%s1 + $0x210] sm:$0xff]
        %v435 = vld [vmem:[%s1 + $0x218] sm:$0xff]
        %v436 = vld [vmem:[%s1 + $0x220] sm:$0xff]
        %v437 = vld [vmem:[%s1 + $0x228] sm:$0xff]
        %v438 = vld [vmem:[%s1 + $0x230] sm:$0xff]
        %v439 = vld [vmem:[%s1 + $0x238] sm:$0xff]
        %v440 = vld [vmem:[%s1 + $0x240] sm:$0xff]
        %v441 = vld [vmem:[%s1 + $0x248] sm:$0xff]
        %v442 = vld [vmem:[%s1 + $0x250] sm:$0xff]
        %v443 = vld [vmem:[%s1 + $0x258] sm:$0xff]
        %v444 = vld [vmem:[%s1 + $0x260] sm:$0xff]
        %v445 = vld [vmem:[%s1 + $0x268] sm:$0xff]
        %v446 = vld [vmem:[%s1 + $0x270] sm:$0xff]
        %v447 = vld [vmem:[%s1 + $0x278] sm:$0xff]
        %v448 = vld [vmem:[%s1 + $0x280] sm:$0xff]
        %v449 = vld [vmem:[%s1 + $0x288] sm:$0xff]
        %v450 = vld [vmem:[%s1 + $0x290] sm:$0xff]
        %v451 = vld [vmem:[%s1 + $0x298] sm:$0xff]
        %v452 = vld [vmem:[%s1 + $0x2a0] sm:$0xff]
        %v453 = vld [vmem:[%s1 + $0x2a8] sm:$0xff]
        %v454 = vld [vmem:[%s1 + $0x2b0] sm:$0xff]
        %v455 = vld [vmem:[%s1 + $0x2b8] sm:$0xff]
        %v456 = vld [vmem:[%s1 + $0x2c0] sm:$0xff]
        %v457 = vld [vmem:[%s1 + $0x2c8] sm:$0xff]
        %v458 = vld [vmem:[%s1 + $0x2d0] sm:$0xff]
        %v459 = vld [vmem:[%s1 + $0x2d8] sm:$0xff]
        %v460 = vld [vmem:[%s1 + $0x2e0] sm:$0xff]
        %v461 = vld [vmem:[%s1 + $0x2e8] sm:$0xff]
        %v462 = vld [vmem:[%s1 + $0x2f0] sm:$0xff]
        %v463 = vld [vmem:[%s1 + $0x2f8] sm:$0xff]
        %v464 = vld [vmem:[%s333] sm:$0xff]
        %v465 = vld [vmem:[%s333 + $0x8] sm:$0xff]
        %v466 = vld [vmem:[%s333 + $0x10] sm:$0xff]
        %v467 = vld [vmem:[%s333 + $0x18] sm:$0xff]
        %v474 = vunpack.c.l.b16 %v362
        %v475 = vunpack.c.h.b16 %v362
        %v476 = vunpack.c.l.b16 %v363
        %v477 = vunpack.c.h.b16 %v363
        %v478 = vunpack.c.l.b16 %v364
        %v479 = vunpack.c.h.b16 %v364
        %v480 = vunpack.c.l.b16 %v365
        %v481 = vunpack.c.h.b16 %v365
        %v482 = vunpack.c.l.b16 %v366
        %v483 = vunpack.c.h.b16 %v366
        %v484 = vunpack.c.l.b16 %v367
        %v485 = vunpack.c.h.b16 %v367
        %v486 = vpack.c.b16 %v480, %v474
        %v487 = vpack.c.b16 %v481, %v475
        %v488 = vpack.c.b16 %v482, %v476
        %v489 = vpack.c.b16 %v483, %v477
        %v490 = vpack.c.b16 %v484, %v478
        %v491 = vpack.c.b16 %v485, %v479
        %v594 = vunpack.c.l.b16 %v368
        %v595 = vunpack.c.h.b16 %v368
        %v596 = vunpack.c.l.b16 %v369
        %v597 = vunpack.c.h.b16 %v369
        %v598 = vunpack.c.l.b16 %v370
        %v599 = vunpack.c.h.b16 %v370
        %v600 = vunpack.c.l.b16 %v371
        %v601 = vunpack.c.h.b16 %v371
        %v602 = vunpack.c.l.b16 %v372
        %v603 = vunpack.c.h.b16 %v372
        %v604 = vunpack.c.l.b16 %v373
        %v605 = vunpack.c.h.b16 %v373
        %v606 = vunpack.c.l.b16 %v374
        %v607 = vunpack.c.h.b16 %v374
        %v608 = vunpack.c.l.b16 %v375
        %v609 = vunpack.c.h.b16 %v375
        %v610 = vunpack.c.l.b16 %v376
        %v611 = vunpack.c.h.b16 %v376
        %v612 = vunpack.c.l.b16 %v377
        %v613 = vunpack.c.h.b16 %v377
        %v614 = vunpack.c.l.b16 %v378
        %v615 = vunpack.c.h.b16 %v378
        %v616 = vunpack.c.l.b16 %v379
        %v617 = vunpack.c.h.b16 %v379
        %v618 = vunpack.c.l.b16 %v380
        %v619 = vunpack.c.h.b16 %v380
        %v620 = vunpack.c.l.b16 %v381
        %v621 = vunpack.c.h.b16 %v381
        %v622 = vunpack.c.l.b16 %v382
        %v623 = vunpack.c.h.b16 %v382
        %v624 = vunpack.c.l.b16 %v383
        %v625 = vunpack.c.h.b16 %v383
        %v626 = vunpack.c.l.b16 %v384
        %v627 = vunpack.c.h.b16 %v384
        %v628 = vunpack.c.l.b16 %v385
        %v629 = vunpack.c.h.b16 %v385
        %v630 = vunpack.c.l.b16 %v386
        %v631 = vunpack.c.h.b16 %v386
        %v632 = vunpack.c.l.b16 %v387
        %v633 = vunpack.c.h.b16 %v387
        %v634 = vunpack.c.l.b16 %v388
        %v635 = vunpack.c.h.b16 %v388
        %v636 = vunpack.c.l.b16 %v389
        %v637 = vunpack.c.h.b16 %v389
        %v638 = vunpack.c.l.b16 %v390
        %v639 = vunpack.c.h.b16 %v390
        %v640 = vunpack.c.l.b16 %v391
        %v641 = vunpack.c.h.b16 %v391
        %v642 = vunpack.c.l.b16 %v392
        %v643 = vunpack.c.h.b16 %v392
        %v644 = vunpack.c.l.b16 %v393
        %v645 = vunpack.c.h.b16 %v393
        %v646 = vunpack.c.l.b16 %v394
        %v647 = vunpack.c.h.b16 %v394
        %v648 = vunpack.c.l.b16 %v395
        %v649 = vunpack.c.h.b16 %v395
        %v650 = vunpack.c.l.b16 %v396
        %v651 = vunpack.c.h.b16 %v396
        %v652 = vunpack.c.l.b16 %v397
        %v653 = vunpack.c.h.b16 %v397
        %v654 = vunpack.c.l.b16 %v398
        %v655 = vunpack.c.h.b16 %v398
        %v656 = vunpack.c.l.b16 %v399
        %v657 = vunpack.c.h.b16 %v399
        %v658 = vunpack.c.l.b16 %v400
        %v659 = vunpack.c.h.b16 %v400
        %v660 = vunpack.c.l.b16 %v401
        %v661 = vunpack.c.h.b16 %v401
        %v662 = vunpack.c.l.b16 %v402
        %v663 = vunpack.c.h.b16 %v402
        %v664 = vunpack.c.l.b16 %v403
        %v665 = vunpack.c.h.b16 %v403
        %v666 = vunpack.c.l.b16 %v404
        %v667 = vunpack.c.h.b16 %v404
        %v668 = vunpack.c.l.b16 %v405
        %v669 = vunpack.c.h.b16 %v405
        %v670 = vunpack.c.l.b16 %v406
        %v671 = vunpack.c.h.b16 %v406
        %v672 = vunpack.c.l.b16 %v407
        %v673 = vunpack.c.h.b16 %v407
        %v674 = vunpack.c.l.b16 %v408
        %v675 = vunpack.c.h.b16 %v408
        %v676 = vunpack.c.l.b16 %v409
        %v677 = vunpack.c.h.b16 %v409
        %v678 = vunpack.c.l.b16 %v410
        %v679 = vunpack.c.h.b16 %v410
        %v680 = vunpack.c.l.b16 %v411
        %v681 = vunpack.c.h.b16 %v411
        %v682 = vunpack.c.l.b16 %v412
        %v683 = vunpack.c.h.b16 %v412
        %v684 = vunpack.c.l.b16 %v413
        %v685 = vunpack.c.h.b16 %v413
        %v686 = vunpack.c.l.b16 %v414
        %v687 = vunpack.c.h.b16 %v414
        %v688 = vunpack.c.l.b16 %v415
        %v689 = vunpack.c.h.b16 %v415
        %v690 = vunpack.c.l.b16 %v416
        %v691 = vunpack.c.h.b16 %v416
        %v692 = vunpack.c.l.b16 %v417
        %v693 = vunpack.c.h.b16 %v417
        %v694 = vunpack.c.l.b16 %v418
        %v695 = vunpack.c.h.b16 %v418
        %v696 = vunpack.c.l.b16 %v419
        %v697 = vunpack.c.h.b16 %v419
        %v698 = vunpack.c.l.b16 %v420
        %v699 = vunpack.c.h.b16 %v420
        %v700 = vunpack.c.l.b16 %v421
        %v701 = vunpack.c.h.b16 %v421
        %v702 = vunpack.c.l.b16 %v422
        %v703 = vunpack.c.h.b16 %v422
        %v704 = vunpack.c.l.b16 %v423
        %v705 = vunpack.c.h.b16 %v423
        %v706 = vunpack.c.l.b16 %v424
        %v707 = vunpack.c.h.b16 %v424
        %v708 = vunpack.c.l.b16 %v425
        %v709 = vunpack.c.h.b16 %v425
        %v710 = vunpack.c.l.b16 %v426
        %v711 = vunpack.c.h.b16 %v426
        %v712 = vunpack.c.l.b16 %v427
        %v713 = vunpack.c.h.b16 %v427
        %v714 = vunpack.c.l.b16 %v428
        %v715 = vunpack.c.h.b16 %v428
        %v716 = vunpack.c.l.b16 %v429
        %v717 = vunpack.c.h.b16 %v429
        %v718 = vunpack.c.l.b16 %v430
        %v719 = vunpack.c.h.b16 %v430
        %v720 = vunpack.c.l.b16 %v431
        %v721 = vunpack.c.h.b16 %v431
        %v722 = vunpack.c.l.b16 %v432
        %v723 = vunpack.c.h.b16 %v432
        %v724 = vunpack.c.l.b16 %v433
        %v725 = vunpack.c.h.b16 %v433
        %v726 = vunpack.c.l.b16 %v434
        %v727 = vunpack.c.h.b16 %v434
        %v728 = vunpack.c.l.b16 %v435
        %v729 = vunpack.c.h.b16 %v435
        %v730 = vunpack.c.l.b16 %v436
        %v731 = vunpack.c.h.b16 %v436
        %v732 = vunpack.c.l.b16 %v437
        %v733 = vunpack.c.h.b16 %v437
        %v734 = vunpack.c.l.b16 %v438
        %v735 = vunpack.c.h.b16 %v438
        %v736 = vunpack.c.l.b16 %v439
        %v737 = vunpack.c.h.b16 %v439
        %v738 = vunpack.c.l.b16 %v440
        %v739 = vunpack.c.h.b16 %v440
        %v740 = vunpack.c.l.b16 %v441
        %v741 = vunpack.c.h.b16 %v441
        %v742 = vunpack.c.l.b16 %v442
        %v743 = vunpack.c.h.b16 %v442
        %v744 = vunpack.c.l.b16 %v443
        %v745 = vunpack.c.h.b16 %v443
        %v746 = vunpack.c.l.b16 %v444
        %v747 = vunpack.c.h.b16 %v444
        %v748 = vunpack.c.l.b16 %v445
        %v749 = vunpack.c.h.b16 %v445
        %v750 = vunpack.c.l.b16 %v446
        %v751 = vunpack.c.h.b16 %v446
        %v752 = vunpack.c.l.b16 %v447
        %v753 = vunpack.c.h.b16 %v447
        %v754 = vunpack.c.l.b16 %v448
        %v755 = vunpack.c.h.b16 %v448
        %v756 = vunpack.c.l.b16 %v449
        %v757 = vunpack.c.h.b16 %v449
        %v758 = vunpack.c.l.b16 %v450
        %v759 = vunpack.c.h.b16 %v450
        %v760 = vunpack.c.l.b16 %v451
        %v761 = vunpack.c.h.b16 %v451
        %v762 = vunpack.c.l.b16 %v452
        %v763 = vunpack.c.h.b16 %v452
        %v764 = vunpack.c.l.b16 %v453
        %v765 = vunpack.c.h.b16 %v453
        %v766 = vunpack.c.l.b16 %v454
        %v767 = vunpack.c.h.b16 %v454
        %v768 = vunpack.c.l.b16 %v455
        %v769 = vunpack.c.h.b16 %v455
        %v770 = vunpack.c.l.b16 %v456
        %v771 = vunpack.c.h.b16 %v456
        %v772 = vunpack.c.l.b16 %v457
        %v773 = vunpack.c.h.b16 %v457
        %v774 = vunpack.c.l.b16 %v458
        %v775 = vunpack.c.h.b16 %v458
        %v776 = vunpack.c.l.b16 %v459
        %v777 = vunpack.c.h.b16 %v459
        %v778 = vunpack.c.l.b16 %v460
        %v779 = vunpack.c.h.b16 %v460
        %v780 = vunpack.c.l.b16 %v461
        %v781 = vunpack.c.h.b16 %v461
        %v782 = vunpack.c.l.b16 %v462
        %v783 = vunpack.c.h.b16 %v462
        %v784 = vunpack.c.l.b16 %v463
        %v785 = vunpack.c.h.b16 %v463
        %v786 = vpack.c.b16 %v596, %v594
        %v787 = vpack.c.b16 %v597, %v595
        %v788 = vpack.c.b16 %v600, %v598
        %v789 = vpack.c.b16 %v601, %v599
        %v790 = vpack.c.b16 %v604, %v602
        %v791 = vpack.c.b16 %v605, %v603
        %v792 = vpack.c.b16 %v608, %v606
        %v793 = vpack.c.b16 %v609, %v607
        %v794 = vpack.c.b16 %v612, %v610
        %v795 = vpack.c.b16 %v613, %v611
        %v796 = vpack.c.b16 %v616, %v614
        %v797 = vpack.c.b16 %v617, %v615
        %v798 = vpack.c.b16 %v620, %v618
        %v799 = vpack.c.b16 %v621, %v619
        %v800 = vpack.c.b16 %v624, %v622
        %v801 = vpack.c.b16 %v625, %v623
        %v802 = vpack.c.b16 %v628, %v626
        %v803 = vpack.c.b16 %v629, %v627
        %v804 = vpack.c.b16 %v632, %v630
        %v805 = vpack.c.b16 %v633, %v631
        %v806 = vpack.c.b16 %v636, %v634
        %v807 = vpack.c.b16 %v637, %v635
        %v808 = vpack.c.b16 %v640, %v638
        %v809 = vpack.c.b16 %v641, %v639
        %v810 = vpack.c.b16 %v644, %v642
        %v811 = vpack.c.b16 %v645, %v643
        %v812 = vpack.c.b16 %v648, %v646
        %v813 = vpack.c.b16 %v649, %v647
        %v814 = vpack.c.b16 %v652, %v650
        %v815 = vpack.c.b16 %v653, %v651
        %v816 = vpack.c.b16 %v656, %v654
        %v817 = vpack.c.b16 %v657, %v655
        %v818 = vpack.c.b16 %v660, %v658
        %v819 = vpack.c.b16 %v661, %v659
        %v820 = vpack.c.b16 %v664, %v662
        %v821 = vpack.c.b16 %v665, %v663
        %v822 = vpack.c.b16 %v668, %v666
        %v823 = vpack.c.b16 %v669, %v667
        %v824 = vpack.c.b16 %v672, %v670
        %v825 = vpack.c.b16 %v673, %v671
        %v826 = vpack.c.b16 %v676, %v674
        %v827 = vpack.c.b16 %v677, %v675
        %v828 = vpack.c.b16 %v680, %v678
        %v829 = vpack.c.b16 %v681, %v679
        %v830 = vpack.c.b16 %v684, %v682
        %v831 = vpack.c.b16 %v685, %v683
        %v832 = vpack.c.b16 %v688, %v686
        %v833 = vpack.c.b16 %v689, %v687
        %v834 = vpack.c.b16 %v692, %v690
        %v835 = vpack.c.b16 %v693, %v691
        %v836 = vpack.c.b16 %v696, %v694
        %v837 = vpack.c.b16 %v697, %v695
        %v838 = vpack.c.b16 %v700, %v698
        %v839 = vpack.c.b16 %v701, %v699
        %v840 = vpack.c.b16 %v704, %v702
        %v841 = vpack.c.b16 %v705, %v703
        %v842 = vpack.c.b16 %v708, %v706
        %v843 = vpack.c.b16 %v709, %v707
        %v844 = vpack.c.b16 %v712, %v710
        %v845 = vpack.c.b16 %v713, %v711
        %v846 = vpack.c.b16 %v716, %v714
        %v847 = vpack.c.b16 %v717, %v715
        %v848 = vpack.c.b16 %v720, %v718
        %v849 = vpack.c.b16 %v721, %v719
        %v850 = vpack.c.b16 %v724, %v722
        %v851 = vpack.c.b16 %v725, %v723
        %v852 = vpack.c.b16 %v728, %v726
        %v853 = vpack.c.b16 %v729, %v727
        %v854 = vpack.c.b16 %v732, %v730
        %v855 = vpack.c.b16 %v733, %v731
        %v856 = vpack.c.b16 %v736, %v734
        %v857 = vpack.c.b16 %v737, %v735
        %v858 = vpack.c.b16 %v740, %v738
        %v859 = vpack.c.b16 %v741, %v739
        %v860 = vpack.c.b16 %v744, %v742
        %v861 = vpack.c.b16 %v745, %v743
        %v862 = vpack.c.b16 %v748, %v746
        %v863 = vpack.c.b16 %v749, %v747
        %v864 = vpack.c.b16 %v752, %v750
        %v865 = vpack.c.b16 %v753, %v751
        %v866 = vpack.c.b16 %v756, %v754
        %v867 = vpack.c.b16 %v757, %v755
        %v868 = vpack.c.b16 %v760, %v758
        %v869 = vpack.c.b16 %v761, %v759
        %v870 = vpack.c.b16 %v764, %v762
        %v871 = vpack.c.b16 %v765, %v763
        %v872 = vpack.c.b16 %v768, %v766
        %v873 = vpack.c.b16 %v769, %v767
        %v874 = vpack.c.b16 %v772, %v770
        %v875 = vpack.c.b16 %v773, %v771
        %v876 = vpack.c.b16 %v776, %v774
        %v877 = vpack.c.b16 %v777, %v775
        %v878 = vpack.c.b16 %v780, %v778
        %v879 = vpack.c.b16 %v781, %v779
        %v880 = vpack.c.b16 %v784, %v782
        %v881 = vpack.c.b16 %v785, %v783
        %978 = vmatpush.bf16.msra.mxu0 %v800
        %979 = vmatpush.bf16.msra.mxu0 %v798
        %980 = vmatpush.bf16.msra.mxu0 %v796
        %981 = vmatpush.bf16.msra.mxu0 %v794
        %982 = vmatpush.bf16.msra.mxu0 %v792
        %983 = vmatpush.bf16.msra.mxu0 %v790
        %984 = vmatpush.bf16.msra.mxu0 %v788
        %985 = vmatpush.bf16.msra.mxu0 %v786
        %986 = vmatmul.bf16.gmra.mxu0 %v486
        %v987 = vpop.f32.mrf.mxu0
        %v988 = vadd.f32 %v464, %v987
        %v989 = vpop.f32.mrf.mxu0
        %v990 = vadd.f32 %v466, %v989
        %991 = vdwg.mxu0
        %992 = vmatpush.bf16.msra.mxu0 %v816
        %993 = vmatpush.bf16.msra.mxu0 %v814
        %994 = vmatpush.bf16.msra.mxu0 %v812
        %995 = vmatpush.bf16.msra.mxu0 %v810
        %996 = vmatpush.bf16.msra.mxu0 %v808
        %997 = vmatpush.bf16.msra.mxu0 %v806
        %998 = vmatpush.bf16.msra.mxu0 %v804
        %999 = vmatpush.bf16.msra.mxu0 %v802
        %1000 = vmatmul.bf16.gmra.mxu0 %v487
        %v1001 = vpop.f32.mrf.mxu0
        %v1002 = vadd.f32 %v988, %v1001
        %v1003 = vpop.f32.mrf.mxu0
        %v1004 = vadd.f32 %v990, %v1003
        %1005 = vdwg.mxu0
        %1006 = vmatpush.bf16.msra.mxu0 %v832
        %1007 = vmatpush.bf16.msra.mxu0 %v830
        %1008 = vmatpush.bf16.msra.mxu0 %v828
        %1009 = vmatpush.bf16.msra.mxu0 %v826
        %1010 = vmatpush.bf16.msra.mxu0 %v824
        %1011 = vmatpush.bf16.msra.mxu0 %v822
        %1012 = vmatpush.bf16.msra.mxu0 %v820
        %1013 = vmatpush.bf16.msra.mxu0 %v818
        %1014 = vmatmul.bf16.gmra.mxu0 %v488
        %v1015 = vpop.f32.mrf.mxu0
        %v1016 = vadd.f32 %v1002, %v1015
        %v1017 = vpop.f32.mrf.mxu0
        %v1018 = vadd.f32 %v1004, %v1017
        %1019 = vdwg.mxu0
        %1020 = vmatpush.bf16.msra.mxu0 %v848
        %1021 = vmatpush.bf16.msra.mxu0 %v846
        %1022 = vmatpush.bf16.msra.mxu0 %v844
        %1023 = vmatpush.bf16.msra.mxu0 %v842
        %1024 = vmatpush.bf16.msra.mxu0 %v840
        %1025 = vmatpush.bf16.msra.mxu0 %v838
        %1026 = vmatpush.bf16.msra.mxu0 %v836
        %1027 = vmatpush.bf16.msra.mxu0 %v834
        %1028 = vmatmul.bf16.gmra.mxu0 %v489
        %v1029 = vpop.f32.mrf.mxu0
        %v1030 = vadd.f32 %v1016, %v1029
        %v1031 = vpop.f32.mrf.mxu0
        %v1032 = vadd.f32 %v1018, %v1031
        %1033 = vdwg.mxu0
        %1034 = vmatpush.bf16.msra.mxu0 %v864
        %1035 = vmatpush.bf16.msra.mxu0 %v862
        %1036 = vmatpush.bf16.msra.mxu0 %v860
        %1037 = vmatpush.bf16.msra.mxu0 %v858
        %1038 = vmatpush.bf16.msra.mxu0 %v856
        %1039 = vmatpush.bf16.msra.mxu0 %v854
        %1040 = vmatpush.bf16.msra.mxu0 %v852
        %1041 = vmatpush.bf16.msra.mxu0 %v850
        %1042 = vmatmul.bf16.gmra.mxu0 %v490
        %v1043 = vpop.f32.mrf.mxu0
        %v1044 = vadd.f32 %v1030, %v1043
        %v1045 = vpop.f32.mrf.mxu0
        %v1046 = vadd.f32 %v1032, %v1045
        %1047 = vdwg.mxu0
        %1048 = vmatpush.bf16.msra.mxu0 %v880
        %1049 = vmatpush.bf16.msra.mxu0 %v878
        %1050 = vmatpush.bf16.msra.mxu0 %v876
        %1051 = vmatpush.bf16.msra.mxu0 %v874
        %1052 = vmatpush.bf16.msra.mxu0 %v872
        %1053 = vmatpush.bf16.msra.mxu0 %v870
        %1054 = vmatpush.bf16.msra.mxu0 %v868
        %1055 = vmatpush.bf16.msra.mxu0 %v866
        %1056 = vmatmul.bf16.gmra.mxu0 %v491
        %v1057 = vpop.f32.mrf.mxu0
        %v1058 = vadd.f32 %v1044, %v1057
        %v1059 = vpop.f32.mrf.mxu0
        %v1060 = vadd.f32 %v1046, %v1059
        %1061 = vdwg.mxu0
        %1062 = vmatpush.bf16.msra.mxu0 %v801
        %1063 = vmatpush.bf16.msra.mxu0 %v799
        %1064 = vmatpush.bf16.msra.mxu0 %v797
        %1065 = vmatpush.bf16.msra.mxu0 %v795
        %1066 = vmatpush.bf16.msra.mxu0 %v793
        %1067 = vmatpush.bf16.msra.mxu0 %v791
        %1068 = vmatpush.bf16.msra.mxu0 %v789
        %1069 = vmatpush.bf16.msra.mxu0 %v787
        %1070 = vmatmul.bf16.gmra.mxu0 %v486
        %v1071 = vpop.f32.mrf.mxu0
        %v1072 = vadd.f32 %v465, %v1071
        %v1073 = vpop.f32.mrf.mxu0
        %v1074 = vadd.f32 %v467, %v1073
        %1075 = vdwg.mxu0
        %1076 = vmatpush.bf16.msra.mxu0 %v817
        %1077 = vmatpush.bf16.msra.mxu0 %v815
        %1078 = vmatpush.bf16.msra.mxu0 %v813
        %1079 = vmatpush.bf16.msra.mxu0 %v811
        %1080 = vmatpush.bf16.msra.mxu0 %v809
        %1081 = vmatpush.bf16.msra.mxu0 %v807
        %1082 = vmatpush.bf16.msra.mxu0 %v805
        %1083 = vmatpush.bf16.msra.mxu0 %v803
        %1084 = vmatmul.bf16.gmra.mxu0 %v487
        %v1085 = vpop.f32.mrf.mxu0
        %v1086 = vadd.f32 %v1072, %v1085
        %v1087 = vpop.f32.mrf.mxu0
        %v1088 = vadd.f32 %v1074, %v1087
        %1089 = vdwg.mxu0
        %1090 = vmatpush.bf16.msra.mxu0 %v833
        %1091 = vmatpush.bf16.msra.mxu0 %v831
        %1092 = vmatpush.bf16.msra.mxu0 %v829
        %1093 = vmatpush.bf16.msra.mxu0 %v827
        %1094 = vmatpush.bf16.msra.mxu0 %v825
        %1095 = vmatpush.bf16.msra.mxu0 %v823
        %1096 = vmatpush.bf16.msra.mxu0 %v821
        %1097 = vmatpush.bf16.msra.mxu0 %v819
        %1098 = vmatmul.bf16.gmra.mxu0 %v488
        %v1099 = vpop.f32.mrf.mxu0
        %v1100 = vadd.f32 %v1086, %v1099
        %v1101 = vpop.f32.mrf.mxu0
        %v1102 = vadd.f32 %v1088, %v1101
        %1103 = vdwg.mxu0
        %1104 = vmatpush.bf16.msra.mxu0 %v849
        %1105 = vmatpush.bf16.msra.mxu0 %v847
        %1106 = vmatpush.bf16.msra.mxu0 %v845
        %1107 = vmatpush.bf16.msra.mxu0 %v843
        %1108 = vmatpush.bf16.msra.mxu0 %v841
        %1109 = vmatpush.bf16.msra.mxu0 %v839
        %1110 = vmatpush.bf16.msra.mxu0 %v837
        %1111 = vmatpush.bf16.msra.mxu0 %v835
        %1112 = vmatmul.bf16.gmra.mxu0 %v489
        %v1113 = vpop.f32.mrf.mxu0
        %v1114 = vadd.f32 %v1100, %v1113
        %v1115 = vpop.f32.mrf.mxu0
        %v1116 = vadd.f32 %v1102, %v1115
        %1117 = vdwg.mxu0
        %1118 = vmatpush.bf16.msra.mxu0 %v865
        %1119 = vmatpush.bf16.msra.mxu0 %v863
        %1120 = vmatpush.bf16.msra.mxu0 %v861
        %1121 = vmatpush.bf16.msra.mxu0 %v859
        %1122 = vmatpush.bf16.msra.mxu0 %v857
        %1123 = vmatpush.bf16.msra.mxu0 %v855
        %1124 = vmatpush.bf16.msra.mxu0 %v853
        %1125 = vmatpush.bf16.msra.mxu0 %v851
        %1126 = vmatmul.bf16.gmra.mxu0 %v490
        %v1127 = vpop.f32.mrf.mxu0
        %v1128 = vadd.f32 %v1114, %v1127
        %v1129 = vpop.f32.mrf.mxu0
        %v1130 = vadd.f32 %v1116, %v1129
        %1131 = vdwg.mxu0
        %1132 = vmatpush.bf16.msra.mxu0 %v881
        %1133 = vmatpush.bf16.msra.mxu0 %v879
        %1134 = vmatpush.bf16.msra.mxu0 %v877
        %1135 = vmatpush.bf16.msra.mxu0 %v875
        %1136 = vmatpush.bf16.msra.mxu0 %v873
        %1137 = vmatpush.bf16.msra.mxu0 %v871
        %1138 = vmatpush.bf16.msra.mxu0 %v869
        %1139 = vmatpush.bf16.msra.mxu0 %v867
        %1140 = vmatmul.bf16.gmra.mxu0 %v491
        %v1141 = vpop.f32.mrf.mxu0
        %v1142 = vadd.f32 %v1128, %v1141
        %v1143 = vpop.f32.mrf.mxu0
        %v1144 = vadd.f32 %v1130, %v1143
        %1145 = vdwg.mxu0
        %1146 = vst [vmem:[#allocation2] sm:$0xff] %v1058
        %1147 = vst [vmem:[#allocation2 + $0x8] sm:$0xff] %v1142
        %1148 = vst [vmem:[#allocation2 + $0x10] sm:$0xff] %v1060
        %1149 = vst [vmem:[#allocation2 + $0x18] sm:$0xff] %v1144
      $region48: #{image_encoder_forward.1} parent=43 // pred_fallthru
        _
      %v1150 = vld [vmem:[#allocation2] sm:$0xff]
      %v1151 = vld [vmem:[#allocation2 + $0x8] sm:$0xff]
      %v1152 = vld [vmem:[#allocation2 + $0x10] sm:$0xff]
      %v1153 = vld [vmem:[#allocation2 + $0x18] sm:$0xff]
      %v1154 = vld [vmem:[%s349] ss:$8 sm:$0x3]
      %s1155 = scalar_lea.vmem %s349, 16
      %v1156 = vld [vmem:[%s1155] ss:$8 sm:$0x3]
      %s1157 = scalar_lea.vmem %s349, 32
      %v1158 = vld [vmem:[%s1157] ss:$8 sm:$0x3]
      %s1159 = scalar_lea.vmem %s349, 48
      %v1160 = vld [vmem:[%s1159] ss:$8 sm:$0x3]
      %s1161 = scalar_lea.vmem %s349, 1
      %v1162 = vld [vmem:[%s1161] ss:$8 sm:$0xf]
      %v1163 = vld [vmem:[%s1161] ss:$8 sm:$0x30]
      %v1164 = vor.u32 %v1162, %v1163
      %s1165 = scalar_lea.vmem %s349, 49
      %v1166 = vld [vmem:[%s1165] ss:$8 sm:$0x3]
      %s1167 = scalar_lea.vmem %s349, 2
      %v1168 = vld [vmem:[%s1167] ss:$8 sm:$0xf]
      %v1169 = vld [vmem:[%s1167] ss:$8 sm:$0xf0]
      %v1170 = vor.u32 %v1168, %v1169
      %s1171 = scalar_lea.vmem %s349, 3
      %v1172 = vld [vmem:[%s1171] ss:$8 sm:$0x3]
      %s1173 = scalar_lea.vmem %s349, 19
      %v1174 = vld [vmem:[%s1173] ss:$8 sm:$0x3]
      %s1175 = scalar_lea.vmem %s349, 35
      %v1176 = vld [vmem:[%s1175] ss:$8 sm:$0x3]
      %v1177 = vlaneseq
      %v1178 = vshrl.u32 %v1177, 7
      %v1179 = vadd.s32 %v1178, 8
      %v1180 = vlaneseq
      %v1181 = vand.u32 %v1180, 127
      %v1182 = vshra.s32 %v1178, 3
      %v1183 = vshra.s32 %v1179, 3
      %v1184 = vshra.s32 %v1181, 3
      %vm1185 = vcmp.eq.s32.totalorder %v1182, %v1184
      %vm1186 = vcmp.eq.s32.totalorder %v1183, %v1184
      %v1187 = vand.u32 %v1181, 7
      %vm1188 = vcmp.lt.s32.totalorder %v1187, 5
      %vm1189 = vmand %vm1185, %vm1188
      %vm1190 = vmand %vm1186, %vm1188
      %v1191 = vsel %vm1189, 0.0, -1e+09
      %v1192 = vsel %vm1190, 0.0, -1e+09
      %v1193 = vadd.f32 %v1150, %v1151
      %1194 = vadd.xlane.f32.xlu0 %v1193
      %v1195 = vpop.xlane.xlu0 %1194
      %v1196 = vadd.f32 %v1152, %v1153
      %1197 = vadd.xlane.f32.xlu0 %v1196
      %v1198 = vpop.xlane.xlu0 %1197
      %v1199 = vrcp.pop 256.0
      %v1200 = vmul.f32 256.0, %v1199
      %v1201 = vsub.f32 1.0, %v1200
      %v1202 = vmul.f32 %v1199, %v1201
      %v1203 = vadd.f32 %v1199, %v1202
      %vm1204 = vweird.f32 %v1199
      %v1205 = vsel %vm1204, %v1199, %v1203
      %v1206 = vmul.f32 %v1195, %v1205
      %v1207 = vmul.f32 %v1198, %v1205
      %v1208 = vsub.f32 %v1150, %v1206
      %v1209 = vsub.f32 %v1151, %v1206
      %v1210 = vsub.f32 %v1152, %v1207
      %v1211 = vsub.f32 %v1153, %v1207
      %v1212 = vmul.f32 %v1208, %v1208
      %v1213 = vmul.f32 %v1209, %v1209
      %v1214 = vmul.f32 %v1210, %v1210
      %v1215 = vmul.f32 %v1211, %v1211
      %v1216 = vadd.f32 %v1212, %v1213
      %1217 = vadd.xlane.f32.xlu0 %v1216
      %v1218 = vpop.xlane.xlu0 %1217
      %v1219 = vadd.f32 %v1214, %v1215
      %1220 = vadd.xlane.f32.xlu0 %v1219
      %v1221 = vpop.xlane.xlu0 %1220
      %v1222 = vmul.f32 %v1218, %v1205
      %v1223 = vmul.f32 %v1221, %v1205
      %v1224 = vadd.f32 %v1222, 1e-12
      %v1225 = vadd.f32 %v1223, 1e-12
      %v1226 = vrsqrt.pop %v1224
      %v1227 = vmul.f32 %v1226, %v1224
      %v1228 = vmul.f32 %v1227, %v1226
      %v1229 = vmul.f32 0.5, %v1228
      %v1230 = vsub.f32 1.5, %v1229
      %v1231 = vmul.f32 %v1226, %v1230
      %vm1232 = vweird.f32 %v1224
      %vm1233 = vweird.f32 %v1226
      %vm1234 = vmor %vm1232, %vm1233
      %v1235 = vsel %vm1234, %v1226, %v1231
      %v1236 = vrsqrt.pop %v1225
      %v1237 = vmul.f32 %v1236, %v1225
      %v1238 = vmul.f32 %v1237, %v1236
      %v1239 = vmul.f32 0.5, %v1238
      %v1240 = vsub.f32 1.5, %v1239
      %v1241 = vmul.f32 %v1236, %v1240
      %vm1242 = vweird.f32 %v1225
      %vm1243 = vweird.f32 %v1236
      %vm1244 = vmor %vm1242, %vm1243
      %v1245 = vsel %vm1244, %v1236, %v1241
      %v1246 = vmul.f32 %v1208, %v1235
      %v1247 = vmul.f32 %v1209, %v1235
      %v1248 = vmul.f32 %v1210, %v1245
      %v1249 = vmul.f32 %v1211, %v1245
      %v1251 = vperm.slane %v1154, 0
      %v1252 = vperm.slane %v1154, 1
      %v1255 = vmul.f32 %v1246, %v1251
      %v1256 = vmul.f32 %v1247, %v1252
      %v1257 = vmul.f32 %v1248, %v1251
      %v1258 = vmul.f32 %v1249, %v1252
      %v1260 = vperm.slane %v1156, 0
      %v1261 = vperm.slane %v1156, 1
      %v1264 = vadd.f32 %v1255, %v1260
      %v1265 = vadd.f32 %v1256, %v1261
      %v1266 = vadd.f32 %v1257, %v1260
      %v1267 = vadd.f32 %v1258, %v1261
      %v1268 = vpack.c.bf16 %v1266, %v1264
      %v1269 = vpack.c.bf16 %v1267, %v1265
      %v1270 = vld [vmem:[%s339] sm:$0xff]
      %v1271 = vld [vmem:[%s339 + $0x8] sm:$0xff]
      %v1272 = vld [vmem:[%s339 + $0x10] sm:$0xff]
      %v1273 = vld [vmem:[%s339 + $0x40] sm:$0xff]
      %v1274 = vld [vmem:[%s339 + $0x48] sm:$0xff]
      %v1275 = vld [vmem:[%s339 + $0x50] sm:$0xff]
      %v1276 = vld [vmem:[%s339 + $0x80] sm:$0xff]
      %v1277 = vld [vmem:[%s339 + $0x88] sm:$0xff]
      %v1278 = vld [vmem:[%s339 + $0x90] sm:$0xff]
      %v1279 = vld [vmem:[%s339 + $0xc0] sm:$0xff]
      %v1280 = vld [vmem:[%s339 + $0xc8] sm:$0xff]
      %v1281 = vld [vmem:[%s339 + $0xd0] sm:$0xff]
      %v1282 = vld [vmem:[%s339 + $0x100] sm:$0xff]
      %v1283 = vld [vmem:[%s339 + $0x108] sm:$0xff]
      %v1284 = vld [vmem:[%s339 + $0x110] sm:$0xff]
      %v1285 = vld [vmem:[%s339 + $0x140] sm:$0xff]
      %v1286 = vld [vmem:[%s339 + $0x148] sm:$0xff]
      %v1287 = vld [vmem:[%s339 + $0x150] sm:$0xff]
      %v1288 = vld [vmem:[%s339 + $0x180] sm:$0xff]
      %v1289 = vld [vmem:[%s339 + $0x188] sm:$0xff]
      %v1290 = vld [vmem:[%s339 + $0x190] sm:$0xff]
      %v1291 = vld [vmem:[%s339 + $0x1c0] sm:$0xff]
      %v1292 = vld [vmem:[%s339 + $0x1c8] sm:$0xff]
      %v1293 = vld [vmem:[%s339 + $0x1d0] sm:$0xff]
      %v1294 = vld [vmem:[%s339 + $0x200] sm:$0xff]
      %v1295 = vld [vmem:[%s339 + $0x208] sm:$0xff]
      %v1296 = vld [vmem:[%s339 + $0x210] sm:$0xff]
      %v1297 = vld [vmem:[%s339 + $0x240] sm:$0xff]
      %v1298 = vld [vmem:[%s339 + $0x248] sm:$0xff]
      %v1299 = vld [vmem:[%s339 + $0x250] sm:$0xff]
      %v1300 = vld [vmem:[%s339 + $0x280] sm:$0xff]
      %v1301 = vld [vmem:[%s339 + $0x288] sm:$0xff]
      %v1302 = vld [vmem:[%s339 + $0x290] sm:$0xff]
      %v1303 = vld [vmem:[%s339 + $0x2c0] sm:$0xff]
      %v1304 = vld [vmem:[%s339 + $0x2c8] sm:$0xff]
      %v1305 = vld [vmem:[%s339 + $0x2d0] sm:$0xff]
      %v1306 = vld [vmem:[%s339 + $0x300] sm:$0xff]
      %v1307 = vld [vmem:[%s339 + $0x308] sm:$0xff]
      %v1308 = vld [vmem:[%s339 + $0x310] sm:$0xff]
      %v1309 = vld [vmem:[%s339 + $0x340] sm:$0xff]
      %v1310 = vld [vmem:[%s339 + $0x348] sm:$0xff]
      %v1311 = vld [vmem:[%s339 + $0x350] sm:$0xff]
      %v1312 = vld [vmem:[%s339 + $0x380] sm:$0xff]
      %v1313 = vld [vmem:[%s339 + $0x388] sm:$0xff]
      %v1314 = vld [vmem:[%s339 + $0x390] sm:$0xff]
      %v1315 = vld [vmem:[%s339 + $0x3c0] sm:$0xff]
      %v1316 = vld [vmem:[%s339 + $0x3c8] sm:$0xff]
      %v1317 = vld [vmem:[%s339 + $0x3d0] sm:$0xff]
      %v1318 = vld [vmem:[%s339 + $0x400] sm:$0xff]
      %v1319 = vld [vmem:[%s339 + $0x408] sm:$0xff]
      %v1320 = vld [vmem:[%s339 + $0x410] sm:$0xff]
      %v1321 = vld [vmem:[%s339 + $0x440] sm:$0xff]
      %v1322 = vld [vmem:[%s339 + $0x448] sm:$0xff]
      %v1323 = vld [vmem:[%s339 + $0x450] sm:$0xff]
      %v1324 = vld [vmem:[%s339 + $0x480] sm:$0xff]
      %v1325 = vld [vmem:[%s339 + $0x488] sm:$0xff]
      %v1326 = vld [vmem:[%s339 + $0x490] sm:$0xff]
      %v1327 = vld [vmem:[%s339 + $0x4c0] sm:$0xff]
      %v1328 = vld [vmem:[%s339 + $0x4c8] sm:$0xff]
      %v1329 = vld [vmem:[%s339 + $0x4d0] sm:$0xff]
      %v1330 = vld [vmem:[%s339 + $0x500] sm:$0xff]
      %v1331 = vld [vmem:[%s339 + $0x508] sm:$0xff]
      %v1332 = vld [vmem:[%s339 + $0x510] sm:$0xff]
      %v1333 = vld [vmem:[%s339 + $0x540] sm:$0xff]
      %v1334 = vld [vmem:[%s339 + $0x548] sm:$0xff]
      %v1335 = vld [vmem:[%s339 + $0x550] sm:$0xff]
      %v1336 = vld [vmem:[%s339 + $0x580] sm:$0xff]
      %v1337 = vld [vmem:[%s339 + $0x588] sm:$0xff]
      %v1338 = vld [vmem:[%s339 + $0x590] sm:$0xff]
      %v1339 = vld [vmem:[%s339 + $0x5c0] sm:$0xff]
      %v1340 = vld [vmem:[%s339 + $0x5c8] sm:$0xff]
      %v1341 = vld [vmem:[%s339 + $0x5d0] sm:$0xff]
      %v1342 = vld [vmem:[%s339 + $0x600] sm:$0xff]
      %v1343 = vld [vmem:[%s339 + $0x608] sm:$0xff]
      %v1344 = vld [vmem:[%s339 + $0x610] sm:$0xff]
      %v1345 = vld [vmem:[%s339 + $0x640] sm:$0xff]
      %v1346 = vld [vmem:[%s339 + $0x648] sm:$0xff]
      %v1347 = vld [vmem:[%s339 + $0x650] sm:$0xff]
      %v1348 = vld [vmem:[%s339 + $0x680] sm:$0xff]
      %v1349 = vld [vmem:[%s339 + $0x688] sm:$0xff]
      %v1350 = vld [vmem:[%s339 + $0x690] sm:$0xff]
      %v1351 = vld [vmem:[%s339 + $0x6c0] sm:$0xff]
      %v1352 = vld [vmem:[%s339 + $0x6c8] sm:$0xff]
      %v1353 = vld [vmem:[%s339 + $0x6d0] sm:$0xff]
      %v1354 = vld [vmem:[%s339 + $0x700] sm:$0xff]
      %v1355 = vld [vmem:[%s339 + $0x708] sm:$0xff]
      %v1356 = vld [vmem:[%s339 + $0x710] sm:$0xff]
      %v1357 = vld [vmem:[%s339 + $0x740] sm:$0xff]
      %v1358 = vld [vmem:[%s339 + $0x748] sm:$0xff]
      %v1359 = vld [vmem:[%s339 + $0x750] sm:$0xff]
      %v1360 = vld [vmem:[%s339 + $0x780] sm:$0xff]
      %v1361 = vld [vmem:[%s339 + $0x788] sm:$0xff]
      %v1362 = vld [vmem:[%s339 + $0x790] sm:$0xff]
      %v1363 = vld [vmem:[%s339 + $0x7c0] sm:$0xff]
      %v1364 = vld [vmem:[%s339 + $0x7c8] sm:$0xff]
      %v1365 = vld [vmem:[%s339 + $0x7d0] sm:$0xff]
      %v1367 = vperm.slane %v1164, 0
      %v1368 = vperm.slane %v1164, 1
      %v1369 = vperm.slane %v1164, 2
      %v1370 = vperm.slane %v1164, 3
      %v1371 = vperm.slane %v1164, 4
      %v1372 = vperm.slane %v1164, 5
      %v1475 = vunpack.c.l.b16 %v1270
      %v1476 = vunpack.c.h.b16 %v1270
      %v1477 = vunpack.c.l.b16 %v1271
      %v1478 = vunpack.c.h.b16 %v1271
      %v1479 = vunpack.c.l.b16 %v1272
      %v1480 = vunpack.c.h.b16 %v1272
      %v1481 = vunpack.c.l.b16 %v1273
      %v1482 = vunpack.c.h.b16 %v1273
      %v1483 = vunpack.c.l.b16 %v1274
      %v1484 = vunpack.c.h.b16 %v1274
      %v1485 = vunpack.c.l.b16 %v1275
      %v1486 = vunpack.c.h.b16 %v1275
      %v1487 = vunpack.c.l.b16 %v1276
      %v1488 = vunpack.c.h.b16 %v1276
      %v1489 = vunpack.c.l.b16 %v1277
      %v1490 = vunpack.c.h.b16 %v1277
      %v1491 = vunpack.c.l.b16 %v1278
      %v1492 = vunpack.c.h.b16 %v1278
      %v1493 = vunpack.c.l.b16 %v1279
      %v1494 = vunpack.c.h.b16 %v1279
      %v1495 = vunpack.c.l.b16 %v1280
      %v1496 = vunpack.c.h.b16 %v1280
      %v1497 = vunpack.c.l.b16 %v1281
      %v1498 = vunpack.c.h.b16 %v1281
      %v1499 = vunpack.c.l.b16 %v1282
      %v1500 = vunpack.c.h.b16 %v1282
      %v1501 = vunpack.c.l.b16 %v1283
      %v1502 = vunpack.c.h.b16 %v1283
      %v1503 = vunpack.c.l.b16 %v1284
      %v1504 = vunpack.c.h.b16 %v1284
      %v1505 = vunpack.c.l.b16 %v1285
      %v1506 = vunpack.c.h.b16 %v1285
      %v1507 = vunpack.c.l.b16 %v1286
      %v1508 = vunpack.c.h.b16 %v1286
      %v1509 = vunpack.c.l.b16 %v1287
      %v1510 = vunpack.c.h.b16 %v1287
      %v1511 = vunpack.c.l.b16 %v1288
      %v1512 = vunpack.c.h.b16 %v1288
      %v1513 = vunpack.c.l.b16 %v1289
      %v1514 = vunpack.c.h.b16 %v1289
      %v1515 = vunpack.c.l.b16 %v1290
      %v1516 = vunpack.c.h.b16 %v1290
      %v1517 = vunpack.c.l.b16 %v1291
      %v1518 = vunpack.c.h.b16 %v1291
      %v1519 = vunpack.c.l.b16 %v1292
      %v1520 = vunpack.c.h.b16 %v1292
      %v1521 = vunpack.c.l.b16 %v1293
      %v1522 = vunpack.c.h.b16 %v1293
      %v1523 = vunpack.c.l.b16 %v1294
      %v1524 = vunpack.c.h.b16 %v1294
      %v1525 = vunpack.c.l.b16 %v1295
      %v1526 = vunpack.c.h.b16 %v1295
      %v1527 = vunpack.c.l.b16 %v1296
      %v1528 = vunpack.c.h.b16 %v1296
      %v1529 = vunpack.c.l.b16 %v1297
      %v1530 = vunpack.c.h.b16 %v1297
      %v1531 = vunpack.c.l.b16 %v1298
      %v1532 = vunpack.c.h.b16 %v1298
      %v1533 = vunpack.c.l.b16 %v1299
      %v1534 = vunpack.c.h.b16 %v1299
      %v1535 = vunpack.c.l.b16 %v1300
      %v1536 = vunpack.c.h.b16 %v1300
      %v1537 = vunpack.c.l.b16 %v1301
      %v1538 = vunpack.c.h.b16 %v1301
      %v1539 = vunpack.c.l.b16 %v1302
      %v1540 = vunpack.c.h.b16 %v1302
      %v1541 = vunpack.c.l.b16 %v1303
      %v1542 = vunpack.c.h.b16 %v1303
      %v1543 = vunpack.c.l.b16 %v1304
      %v1544 = vunpack.c.h.b16 %v1304
      %v1545 = vunpack.c.l.b16 %v1305
      %v1546 = vunpack.c.h.b16 %v1305
      %v1547 = vunpack.c.l.b16 %v1306
      %v1548 = vunpack.c.h.b16 %v1306
      %v1549 = vunpack.c.l.b16 %v1307
      %v1550 = vunpack.c.h.b16 %v1307
      %v1551 = vunpack.c.l.b16 %v1308
      %v1552 = vunpack.c.h.b16 %v1308
      %v1553 = vunpack.c.l.b16 %v1309
      %v1554 = vunpack.c.h.b16 %v1309
      %v1555 = vunpack.c.l.b16 %v1310
      %v1556 = vunpack.c.h.b16 %v1310
      %v1557 = vunpack.c.l.b16 %v1311
      %v1558 = vunpack.c.h.b16 %v1311
      %v1559 = vunpack.c.l.b16 %v1312
      %v1560 = vunpack.c.h.b16 %v1312
      %v1561 = vunpack.c.l.b16 %v1313
      %v1562 = vunpack.c.h.b16 %v1313
      %v1563 = vunpack.c.l.b16 %v1314
      %v1564 = vunpack.c.h.b16 %v1314
      %v1565 = vunpack.c.l.b16 %v1315
      %v1566 = vunpack.c.h.b16 %v1315
      %v1567 = vunpack.c.l.b16 %v1316
      %v1568 = vunpack.c.h.b16 %v1316
      %v1569 = vunpack.c.l.b16 %v1317
      %v1570 = vunpack.c.h.b16 %v1317
      %v1571 = vunpack.c.l.b16 %v1318
      %v1572 = vunpack.c.h.b16 %v1318
      %v1573 = vunpack.c.l.b16 %v1319
      %v1574 = vunpack.c.h.b16 %v1319
      %v1575 = vunpack.c.l.b16 %v1320
      %v1576 = vunpack.c.h.b16 %v1320
      %v1577 = vunpack.c.l.b16 %v1321
      %v1578 = vunpack.c.h.b16 %v1321
      %v1579 = vunpack.c.l.b16 %v1322
      %v1580 = vunpack.c.h.b16 %v1322
      %v1581 = vunpack.c.l.b16 %v1323
      %v1582 = vunpack.c.h.b16 %v1323
      %v1583 = vunpack.c.l.b16 %v1324
      %v1584 = vunpack.c.h.b16 %v1324
      %v1585 = vunpack.c.l.b16 %v1325
      %v1586 = vunpack.c.h.b16 %v1325
      %v1587 = vunpack.c.l.b16 %v1326
      %v1588 = vunpack.c.h.b16 %v1326
      %v1589 = vunpack.c.l.b16 %v1327
      %v1590 = vunpack.c.h.b16 %v1327
      %v1591 = vunpack.c.l.b16 %v1328
      %v1592 = vunpack.c.h.b16 %v1328
      %v1593 = vunpack.c.l.b16 %v1329
      %v1594 = vunpack.c.h.b16 %v1329
      %v1595 = vunpack.c.l.b16 %v1330
      %v1596 = vunpack.c.h.b16 %v1330
      %v1597 = vunpack.c.l.b16 %v1331
      %v1598 = vunpack.c.h.b16 %v1331
      %v1599 = vunpack.c.l.b16 %v1332
      %v1600 = vunpack.c.h.b16 %v1332
      %v1601 = vunpack.c.l.b16 %v1333
      %v1602 = vunpack.c.h.b16 %v1333
      %v1603 = vunpack.c.l.b16 %v1334
      %v1604 = vunpack.c.h.b16 %v1334
      %v1605 = vunpack.c.l.b16 %v1335
      %v1606 = vunpack.c.h.b16 %v1335
      %v1607 = vunpack.c.l.b16 %v1336
      %v1608 = vunpack.c.h.b16 %v1336
      %v1609 = vunpack.c.l.b16 %v1337
      %v1610 = vunpack.c.h.b16 %v1337
      %v1611 = vunpack.c.l.b16 %v1338
      %v1612 = vunpack.c.h.b16 %v1338
      %v1613 = vunpack.c.l.b16 %v1339
      %v1614 = vunpack.c.h.b16 %v1339
      %v1615 = vunpack.c.l.b16 %v1340
      %v1616 = vunpack.c.h.b16 %v1340
      %v1617 = vunpack.c.l.b16 %v1341
      %v1618 = vunpack.c.h.b16 %v1341
      %v1619 = vunpack.c.l.b16 %v1342
      %v1620 = vunpack.c.h.b16 %v1342
      %v1621 = vunpack.c.l.b16 %v1343
      %v1622 = vunpack.c.h.b16 %v1343
      %v1623 = vunpack.c.l.b16 %v1344
      %v1624 = vunpack.c.h.b16 %v1344
      %v1625 = vunpack.c.l.b16 %v1345
      %v1626 = vunpack.c.h.b16 %v1345
      %v1627 = vunpack.c.l.b16 %v1346
      %v1628 = vunpack.c.h.b16 %v1346
      %v1629 = vunpack.c.l.b16 %v1347
      %v1630 = vunpack.c.h.b16 %v1347
      %v1631 = vunpack.c.l.b16 %v1348
      %v1632 = vunpack.c.h.b16 %v1348
      %v1633 = vunpack.c.l.b16 %v1349
      %v1634 = vunpack.c.h.b16 %v1349
      %v1635 = vunpack.c.l.b16 %v1350
      %v1636 = vunpack.c.h.b16 %v1350
      %v1637 = vunpack.c.l.b16 %v1351
      %v1638 = vunpack.c.h.b16 %v1351
      %v1639 = vunpack.c.l.b16 %v1352
      %v1640 = vunpack.c.h.b16 %v1352
      %v1641 = vunpack.c.l.b16 %v1353
      %v1642 = vunpack.c.h.b16 %v1353
      %v1643 = vunpack.c.l.b16 %v1354
      %v1644 = vunpack.c.h.b16 %v1354
      %v1645 = vunpack.c.l.b16 %v1355
      %v1646 = vunpack.c.h.b16 %v1355
      %v1647 = vunpack.c.l.b16 %v1356
      %v1648 = vunpack.c.h.b16 %v1356
      %v1649 = vunpack.c.l.b16 %v1357
      %v1650 = vunpack.c.h.b16 %v1357
      %v1651 = vunpack.c.l.b16 %v1358
      %v1652 = vunpack.c.h.b16 %v1358
      %v1653 = vunpack.c.l.b16 %v1359
      %v1654 = vunpack.c.h.b16 %v1359
      %v1655 = vunpack.c.l.b16 %v1360
      %v1656 = vunpack.c.h.b16 %v1360
      %v1657 = vunpack.c.l.b16 %v1361
      %v1658 = vunpack.c.h.b16 %v1361
      %v1659 = vunpack.c.l.b16 %v1362
      %v1660 = vunpack.c.h.b16 %v1362
      %v1661 = vunpack.c.l.b16 %v1363
      %v1662 = vunpack.c.h.b16 %v1363
      %v1663 = vunpack.c.l.b16 %v1364
      %v1664 = vunpack.c.h.b16 %v1364
      %v1665 = vunpack.c.l.b16 %v1365
      %v1666 = vunpack.c.h.b16 %v1365
      %v1667 = vpack.c.b16 %v1481, %v1475
      %v1668 = vpack.c.b16 %v1482, %v1476
      %v1669 = vpack.c.b16 %v1483, %v1477
      %v1670 = vpack.c.b16 %v1484, %v1478
      %v1671 = vpack.c.b16 %v1485, %v1479
      %v1672 = vpack.c.b16 %v1486, %v1480
      %v1673 = vpack.c.b16 %v1493, %v1487
      %v1674 = vpack.c.b16 %v1494, %v1488
      %v1675 = vpack.c.b16 %v1495, %v1489
      %v1676 = vpack.c.b16 %v1496, %v1490
      %v1677 = vpack.c.b16 %v1497, %v1491
      %v1678 = vpack.c.b16 %v1498, %v1492
      %v1679 = vpack.c.b16 %v1505, %v1499
      %v1680 = vpack.c.b16 %v1506, %v1500
      %v1681 = vpack.c.b16 %v1507, %v1501
      %v1682 = vpack.c.b16 %v1508, %v1502
      %v1683 = vpack.c.b16 %v1509, %v1503
      %v1684 = vpack.c.b16 %v1510, %v1504
      %v1685 = vpack.c.b16 %v1517, %v1511
      %v1686 = vpack.c.b16 %v1518, %v1512
      %v1687 = vpack.c.b16 %v1519, %v1513
      %v1688 = vpack.c.b16 %v1520, %v1514
      %v1689 = vpack.c.b16 %v1521, %v1515
      %v1690 = vpack.c.b16 %v1522, %v1516
      %v1691 = vpack.c.b16 %v1529, %v1523
      %v1692 = vpack.c.b16 %v1530, %v1524
      %v1693 = vpack.c.b16 %v1531, %v1525
      %v1694 = vpack.c.b16 %v1532, %v1526
      %v1695 = vpack.c.b16 %v1533, %v1527
      %v1696 = vpack.c.b16 %v1534, %v1528
      %v1697 = vpack.c.b16 %v1541, %v1535
      %v1698 = vpack.c.b16 %v1542, %v1536
      %v1699 = vpack.c.b16 %v1543, %v1537
      %v1700 = vpack.c.b16 %v1544, %v1538
      %v1701 = vpack.c.b16 %v1545, %v1539
      %v1702 = vpack.c.b16 %v1546, %v1540
      %v1703 = vpack.c.b16 %v1553, %v1547
      %v1704 = vpack.c.b16 %v1554, %v1548
      %v1705 = vpack.c.b16 %v1555, %v1549
      %v1706 = vpack.c.b16 %v1556, %v1550
      %v1707 = vpack.c.b16 %v1557, %v1551
      %v1708 = vpack.c.b16 %v1558, %v1552
      %v1709 = vpack.c.b16 %v1565, %v1559
      %v1710 = vpack.c.b16 %v1566, %v1560
      %v1711 = vpack.c.b16 %v1567, %v1561
      %v1712 = vpack.c.b16 %v1568, %v1562
      %v1713 = vpack.c.b16 %v1569, %v1563
      %v1714 = vpack.c.b16 %v1570, %v1564
      %v1715 = vpack.c.b16 %v1577, %v1571
      %v1716 = vpack.c.b16 %v1578, %v1572
      %v1717 = vpack.c.b16 %v1579, %v1573
      %v1718 = vpack.c.b16 %v1580, %v1574
      %v1719 = vpack.c.b16 %v1581, %v1575
      %v1720 = vpack.c.b16 %v1582, %v1576
      %v1721 = vpack.c.b16 %v1589, %v1583
      %v1722 = vpack.c.b16 %v1590, %v1584
      %v1723 = vpack.c.b16 %v1591, %v1585
      %v1724 = vpack.c.b16 %v1592, %v1586
      %v1725 = vpack.c.b16 %v1593, %v1587
      %v1726 = vpack.c.b16 %v1594, %v1588
      %v1727 = vpack.c.b16 %v1601, %v1595
      %v1728 = vpack.c.b16 %v1602, %v1596
      %v1729 = vpack.c.b16 %v1603, %v1597
      %v1730 = vpack.c.b16 %v1604, %v1598
      %v1731 = vpack.c.b16 %v1605, %v1599
      %v1732 = vpack.c.b16 %v1606, %v1600
      %v1733 = vpack.c.b16 %v1613, %v1607
      %v1734 = vpack.c.b16 %v1614, %v1608
      %v1735 = vpack.c.b16 %v1615, %v1609
      %v1736 = vpack.c.b16 %v1616, %v1610
      %v1737 = vpack.c.b16 %v1617, %v1611
      %v1738 = vpack.c.b16 %v1618, %v1612
      %v1739 = vpack.c.b16 %v1625, %v1619
      %v1740 = vpack.c.b16 %v1626, %v1620
      %v1741 = vpack.c.b16 %v1627, %v1621
      %v1742 = vpack.c.b16 %v1628, %v1622
      %v1743 = vpack.c.b16 %v1629, %v1623
      %v1744 = vpack.c.b16 %v1630, %v1624
      %v1745 = vpack.c.b16 %v1637, %v1631
      %v1746 = vpack.c.b16 %v1638, %v1632
      %v1747 = vpack.c.b16 %v1639, %v1633
      %v1748 = vpack.c.b16 %v1640, %v1634
      %v1749 = vpack.c.b16 %v1641, %v1635
      %v1750 = vpack.c.b16 %v1642, %v1636
      %v1751 = vpack.c.b16 %v1649, %v1643
      %v1752 = vpack.c.b16 %v1650, %v1644
      %v1753 = vpack.c.b16 %v1651, %v1645
      %v1754 = vpack.c.b16 %v1652, %v1646
      %v1755 = vpack.c.b16 %v1653, %v1647
      %v1756 = vpack.c.b16 %v1654, %v1648
      %v1757 = vpack.c.b16 %v1661, %v1655
      %v1758 = vpack.c.b16 %v1662, %v1656
      %v1759 = vpack.c.b16 %v1663, %v1657
      %v1760 = vpack.c.b16 %v1664, %v1658
      %v1761 = vpack.c.b16 %v1665, %v1659
      %v1762 = vpack.c.b16 %v1666, %v1660
      %1859 = vmatpush.bf16.msra.mxu0 %v1709
      %1860 = vmatpush.bf16.msra.mxu0 %v1703
      %1861 = vmatpush.bf16.msra.mxu0 %v1697
      %1862 = vmatpush.bf16.msra.mxu0 %v1691
      %1863 = vmatpush.bf16.msra.mxu0 %v1685
      %1864 = vmatpush.bf16.msra.mxu0 %v1679
      %1865 = vmatpush.bf16.msra.mxu0 %v1673
      %1866 = vmatpush.bf16.msra.mxu0 %v1667
      %1867 = vmatmul.bf16.gmra.mxu0 %v1268
      %v1868 = vpop.f32.mrf.mxu0
      %v1869 = vadd.f32 %v1367, %v1868
      %v1870 = vpop.f32.mrf.mxu0
      %v1871 = vadd.f32 %v1367, %v1870
      %1872 = vdwg.mxu0
      %1873 = vmatpush.bf16.msra.mxu0 %v1757
      %1874 = vmatpush.bf16.msra.mxu0 %v1751
      %1875 = vmatpush.bf16.msra.mxu0 %v1745
      %1876 = vmatpush.bf16.msra.mxu0 %v1739
      %1877 = vmatpush.bf16.msra.mxu0 %v1733
      %1878 = vmatpush.bf16.msra.mxu0 %v1727
      %1879 = vmatpush.bf16.msra.mxu0 %v1721
      %1880 = vmatpush.bf16.msra.mxu0 %v1715
      %1881 = vmatmul.bf16.gmra.mxu0 %v1269
      %v1882 = vpop.f32.mrf.mxu0
      %v1883 = vadd.f32 %v1869, %v1882
      %v1884 = vpop.f32.mrf.mxu0
      %v1885 = vadd.f32 %v1871, %v1884
      %1886 = vdwg.mxu0
      %1887 = vmatpush.bf16.msra.mxu0 %v1710
      %1888 = vmatpush.bf16.msra.mxu0 %v1704
      %1889 = vmatpush.bf16.msra.mxu0 %v1698
      %1890 = vmatpush.bf16.msra.mxu0 %v1692
      %1891 = vmatpush.bf16.msra.mxu0 %v1686
      %1892 = vmatpush.bf16.msra.mxu0 %v1680
      %1893 = vmatpush.bf16.msra.mxu0 %v1674
      %1894 = vmatpush.bf16.msra.mxu0 %v1668
      %1895 = vmatmul.bf16.gmra.mxu0 %v1268
      %v1896 = vpop.f32.mrf.mxu0
      %v1897 = vadd.f32 %v1368, %v1896
      %v1898 = vpop.f32.mrf.mxu0
      %v1899 = vadd.f32 %v1368, %v1898
      %1900 = vdwg.mxu0
      %1901 = vmatpush.bf16.msra.mxu0 %v1758
      %1902 = vmatpush.bf16.msra.mxu0 %v1752
      %1903 = vmatpush.bf16.msra.mxu0 %v1746
      %1904 = vmatpush.bf16.msra.mxu0 %v1740
      %1905 = vmatpush.bf16.msra.mxu0 %v1734
      %1906 = vmatpush.bf16.msra.mxu0 %v1728
      %1907 = vmatpush.bf16.msra.mxu0 %v1722
      %1908 = vmatpush.bf16.msra.mxu0 %v1716
      %1909 = vmatmul.bf16.gmra.mxu0 %v1269
      %v1910 = vpop.f32.mrf.mxu0
      %v1911 = vadd.f32 %v1897, %v1910
      %v1912 = vpop.f32.mrf.mxu0
      %v1913 = vadd.f32 %v1899, %v1912
      %1914 = vdwg.mxu0
      %1915 = vmatpush.bf16.msra.mxu0 %v1711
      %1916 = vmatpush.bf16.msra.mxu0 %v1705
      %1917 = vmatpush.bf16.msra.mxu0 %v1699
      %1918 = vmatpush.bf16.msra.mxu0 %v1693
      %1919 = vmatpush.bf16.msra.mxu0 %v1687
      %1920 = vmatpush.bf16.msra.mxu0 %v1681
      %1921 = vmatpush.bf16.msra.mxu0 %v1675
      %1922 = vmatpush.bf16.msra.mxu0 %v1669
      %1923 = vmatmul.bf16.gmra.mxu0 %v1268
      %v1924 = vpop.f32.mrf.mxu0
      %v1925 = vadd.f32 %v1369, %v1924
      %v1926 = vpop.f32.mrf.mxu0
      %v1927 = vadd.f32 %v1369, %v1926
      %1928 = vdwg.mxu0
      %1929 = vmatpush.bf16.msra.mxu0 %v1759
      %1930 = vmatpush.bf16.msra.mxu0 %v1753
      %1931 = vmatpush.bf16.msra.mxu0 %v1747
      %1932 = vmatpush.bf16.msra.mxu0 %v1741
      %1933 = vmatpush.bf16.msra.mxu0 %v1735
      %1934 = vmatpush.bf16.msra.mxu0 %v1729
      %1935 = vmatpush.bf16.msra.mxu0 %v1723
      %1936 = vmatpush.bf16.msra.mxu0 %v1717
      %1937 = vmatmul.bf16.gmra.mxu0 %v1269
      %v1938 = vpop.f32.mrf.mxu0
      %v1939 = vadd.f32 %v1925, %v1938
      %v1940 = vpop.f32.mrf.mxu0
      %v1941 = vadd.f32 %v1927, %v1940
      %1942 = vdwg.mxu0
      %1943 = vmatpush.bf16.msra.mxu0 %v1712
      %1944 = vmatpush.bf16.msra.mxu0 %v1706
      %1945 = vmatpush.bf16.msra.mxu0 %v1700
      %1946 = vmatpush.bf16.msra.mxu0 %v1694
      %1947 = vmatpush.bf16.msra.mxu0 %v1688
      %1948 = vmatpush.bf16.msra.mxu0 %v1682
      %1949 = vmatpush.bf16.msra.mxu0 %v1676
      %1950 = vmatpush.bf16.msra.mxu0 %v1670
      %1951 = vmatmul.bf16.gmra.mxu0 %v1268
      %v1952 = vpop.f32.mrf.mxu0
      %v1953 = vadd.f32 %v1370, %v1952
      %v1954 = vpop.f32.mrf.mxu0
      %v1955 = vadd.f32 %v1370, %v1954
      %1956 = vdwg.mxu0
      %1957 = vmatpush.bf16.msra.mxu0 %v1760
      %1958 = vmatpush.bf16.msra.mxu0 %v1754
      %1959 = vmatpush.bf16.msra.mxu0 %v1748
      %1960 = vmatpush.bf16.msra.mxu0 %v1742
      %1961 = vmatpush.bf16.msra.mxu0 %v1736
      %1962 = vmatpush.bf16.msra.mxu0 %v1730
      %1963 = vmatpush.bf16.msra.mxu0 %v1724
      %1964 = vmatpush.bf16.msra.mxu0 %v1718
      %1965 = vmatmul.bf16.gmra.mxu0 %v1269
      %v1966 = vpop.f32.mrf.mxu0
      %v1967 = vadd.f32 %v1953, %v1966
      %v1968 = vpop.f32.mrf.mxu0
      %v1969 = vadd.f32 %v1955, %v1968
      %1970 = vdwg.mxu0
      %1971 = vmatpush.bf16.msra.mxu0 %v1713
      %1972 = vmatpush.bf16.msra.mxu0 %v1707
      %1973 = vmatpush.bf16.msra.mxu0 %v1701
      %1974 = vmatpush.bf16.msra.mxu0 %v1695
      %1975 = vmatpush.bf16.msra.mxu0 %v1689
      %1976 = vmatpush.bf16.msra.mxu0 %v1683
      %1977 = vmatpush.bf16.msra.mxu0 %v1677
      %1978 = vmatpush.bf16.msra.mxu0 %v1671
      %1979 = vmatmul.bf16.gmra.mxu0 %v1268
      %v1980 = vpop.f32.mrf.mxu0
      %v1981 = vadd.f32 %v1371, %v1980
      %v1982 = vpop.f32.mrf.mxu0
      %v1983 = vadd.f32 %v1371, %v1982
      %1984 = vdwg.mxu0
      %1985 = vmatpush.bf16.msra.mxu0 %v1761
      %1986 = vmatpush.bf16.msra.mxu0 %v1755
      %1987 = vmatpush.bf16.msra.mxu0 %v1749
      %1988 = vmatpush.bf16.msra.mxu0 %v1743
      %1989 = vmatpush.bf16.msra.mxu0 %v1737
      %1990 = vmatpush.bf16.msra.mxu0 %v1731
      %1991 = vmatpush.bf16.msra.mxu0 %v1725
      %1992 = vmatpush.bf16.msra.mxu0 %v1719
      %1993 = vmatmul.bf16.gmra.mxu0 %v1269
      %v1994 = vpop.f32.mrf.mxu0
      %v1995 = vadd.f32 %v1981, %v1994
      %v1996 = vpop.f32.mrf.mxu0
      %v1997 = vadd.f32 %v1983, %v1996
      %1998 = vdwg.mxu0
      %1999 = vmatpush.bf16.msra.mxu0 %v1714
      %2000 = vmatpush.bf16.msra.mxu0 %v1708
      %2001 = vmatpush.bf16.msra.mxu0 %v1702
      %2002 = vmatpush.bf16.msra.mxu0 %v1696
      %2003 = vmatpush.bf16.msra.mxu0 %v1690
      %2004 = vmatpush.bf16.msra.mxu0 %v1684
      %2005 = vmatpush.bf16.msra.mxu0 %v1678
      %2006 = vmatpush.bf16.msra.mxu0 %v1672
      %2007 = vmatmul.bf16.gmra.mxu0 %v1268
      %v2008 = vpop.f32.mrf.mxu0
      %v2009 = vadd.f32 %v1372, %v2008
      %v2010 = vpop.f32.mrf.mxu0
      %v2011 = vadd.f32 %v1372, %v2010
      %2012 = vdwg.mxu0
      %2013 = vmatpush.bf16.msra.mxu0 %v1762
      %2014 = vmatpush.bf16.msra.mxu0 %v1756
      %2015 = vmatpush.bf16.msra.mxu0 %v1750
      %2016 = vmatpush.bf16.msra.mxu0 %v1744
      %2017 = vmatpush.bf16.msra.mxu0 %v1738
      %2018 = vmatpush.bf16.msra.mxu0 %v1732
      %2019 = vmatpush.bf16.msra.mxu0 %v1726
      %2020 = vmatpush.bf16.msra.mxu0 %v1720
      %2021 = vmatmul.bf16.gmra.mxu0 %v1269
      %v2022 = vpop.f32.mrf.mxu0
      %v2023 = vadd.f32 %v2009, %v2022
      %v2024 = vpop.f32.mrf.mxu0
      %v2025 = vadd.f32 %v2011, %v2024
      %2026 = vdwg.mxu0
      %v2027 = vpack.c.bf16 %v1885, %v1883
      %v2028 = vpack.c.bf16 %v1941, %v1939
      %v2029 = vpack.c.bf16 %v1997, %v1995
      %2030 = vmatpush.bf16.xpose.msra.mxu0 0
      %2031 = vmatpush.bf16.xpose.msra.mxu0 0
      %2032 = vmatpush.bf16.xpose.msra.mxu0 0
      %2033 = vmatpush.bf16.xpose.msra.mxu0 0
      %2034 = vmatpush.bf16.xpose.msra.mxu0 0
      %2035 = vmatpush.bf16.xpose.msra.mxu0 0
      %2036 = vmatpush.bf16.xpose.msra.mxu0 0
      %2037 = vmatpush.bf16.xpose.msra.mxu0 %v2028
      %2038 = vmatmul.bf16.gmra.mxu0 %v2027
      %v2039 = vpop.f32.mrf.mxu0
      %v2040 = vadd.f32 %v1191, %v2039
      %v2041 = vpop.f32.mrf.mxu0
      %v2042 = vadd.f32 %v1192, %v2041
      %2043 = vdwg.mxu0
      %vm2044 = vcmask 130048
      %v2045 = vsel %vm2044, %v2040, -inf
      %2046 = vmax.xlane.f32.xlu0 %v2045
      %v2047 = vpop.xlane.xlu0 %2046
      %v2048 = vsel %vm2044, %v2042, -inf
      %2049 = vmax.xlane.f32.xlu0 %v2048
      %v2050 = vpop.xlane.xlu0 %2049
      %v2051 = vsub.f32 %v2040, %v2047
      %v2052 = vsub.f32 %v2042, %v2050
      %v2053 = vmul.f32 %v2051, 1.442695
      %v2054 = vpow.pop %v2053
      %v2055 = vmul.f32 %v2052, 1.442695
      %v2056 = vpow.pop %v2055
      %v2057 = vsel %vm2044, %v2054, 0.0
      %2058 = vadd.xlane.f32.xlu0 %v2057
      %v2059 = vpop.xlane.xlu0 %2058
      %v2060 = vsel %vm2044, %v2056, 0.0
      %2061 = vadd.xlane.f32.xlu0 %v2060
      %v2062 = vpop.xlane.xlu0 %2061
      %v2063 = vrcp.pop %v2059
      %v2064 = vrcp.pop %v2062
      %v2065 = vmul.f32 %v2054, %v2063
      %v2066 = vmul.f32 %v2056, %v2064
      %v2067 = vpack.c.bf16 %v2066, %v2065
      %v2069 = vsel %vm2044, %v2067, 0
      %2071 = vmatpush.bf16.msra.mxu0 0
      %2072 = vmatpush.bf16.msra.mxu0 0
      %2073 = vmatpush.bf16.msra.mxu0 0
      %2074 = vmatpush.bf16.msra.mxu0 0
      %2075 = vmatpush.bf16.msra.mxu0 0
      %2076 = vmatpush.bf16.msra.mxu0 0
      %2077 = vmatpush.bf16.msra.mxu0 0
      %2078 = vmatpush.bf16.msra.mxu0 %v2029
      %2079 = vmatmul.bf16.gmra.mxu0 %v2069
      %v2080 = vpop.f32.mrf.mxu0
      %v2081 = vadd.f32 0.0, %v2080
      %v2082 = vpop.f32.mrf.mxu0
      %v2083 = vadd.f32 0.0, %v2082
      %2084 = vdwg.mxu0
      %v2085 = vld [vmem:[%s339 + $0x18] sm:$0xff]
      %v2086 = vld [vmem:[%s339 + $0x58] sm:$0xff]
      %v2087 = vld [vmem:[%s339 + $0x98] sm:$0xff]
      %v2088 = vld [vmem:[%s339 + $0xd8] sm:$0xff]
      %v2089 = vld [vmem:[%s339 + $0x118] sm:$0xff]
      %v2090 = vld [vmem:[%s339 + $0x158] sm:$0xff]
      %v2091 = vld [vmem:[%s339 + $0x198] sm:$0xff]
      %v2092 = vld [vmem:[%s339 + $0x1d8] sm:$0xff]
      %v2093 = vld [vmem:[%s339 + $0x218] sm:$0xff]
      %v2094 = vld [vmem:[%s339 + $0x258] sm:$0xff]
      %v2095 = vld [vmem:[%s339 + $0x298] sm:$0xff]
      %v2096 = vld [vmem:[%s339 + $0x2d8] sm:$0xff]
      %v2097 = vld [vmem:[%s339 + $0x318] sm:$0xff]
      %v2098 = vld [vmem:[%s339 + $0x358] sm:$0xff]
      %v2099 = vld [vmem:[%s339 + $0x398] sm:$0xff]
      %v2100 = vld [vmem:[%s339 + $0x3d8] sm:$0xff]
      %v2101 = vpack.c.bf16 %v2083, %v2081
      %v2102 = vpack.c.bf16 %v1913, %v1911
      %v2103 = vpack.c.bf16 %v1969, %v1967
      %v2104 = vpack.c.bf16 %v2025, %v2023
      %2105 = vmatpush.bf16.xpose.msra.mxu0 0
      %2106 = vmatpush.bf16.xpose.msra.mxu0 0
      %2107 = vmatpush.bf16.xpose.msra.mxu0 0
      %2108 = vmatpush.bf16.xpose.msra.mxu0 0
      %2109 = vmatpush.bf16.xpose.msra.mxu0 0
      %2110 = vmatpush.bf16.xpose.msra.mxu0 0
      %2111 = vmatpush.bf16.xpose.msra.mxu0 0
      %2112 = vmatpush.bf16.xpose.msra.mxu0 %v2103
      %2113 = vmatmul.bf16.gmra.mxu0 %v2102
      %v2114 = vpop.f32.mrf.mxu0
      %v2115 = vadd.f32 %v1191, %v2114
      %v2116 = vpop.f32.mrf.mxu0
      %v2117 = vadd.f32 %v1192, %v2116
      %2118 = vdwg.mxu0
      %v2119 = vsel %vm2044, %v2115, -inf
      %2120 = vmax.xlane.f32.xlu0 %v2119
      %v2121 = vpop.xlane.xlu0 %2120
      %v2122 = vsel %vm2044, %v2117, -inf
      %2123 = vmax.xlane.f32.xlu0 %v2122
      %v2124 = vpop.xlane.xlu0 %2123
      %v2125 = vsub.f32 %v2115, %v2121
      %v2126 = vsub.f32 %v2117, %v2124
      %v2127 = vmul.f32 %v2125, 1.442695
      %v2128 = vpow.pop %v2127
      %v2129 = vmul.f32 %v2126, 1.442695
      %v2130 = vpow.pop %v2129
      %v2131 = vsel %vm2044, %v2128, 0.0
      %2132 = vadd.xlane.f32.xlu0 %v2131
      %v2133 = vpop.xlane.xlu0 %2132
      %v2134 = vsel %vm2044, %v2130, 0.0
      %2135 = vadd.xlane.f32.xlu0 %v2134
      %v2136 = vpop.xlane.xlu0 %2135
      %v2137 = vrcp.pop %v2133
      %v2138 = vrcp.pop %v2136
      %v2139 = vmul.f32 %v2128, %v2137
      %v2140 = vmul.f32 %v2130, %v2138
      %v2141 = vpack.c.bf16 %v2140, %v2139
      %v2143 = vsel %vm2044, %v2141, 0
      %2145 = vmatpush.bf16.msra.mxu0 0
      %2146 = vmatpush.bf16.msra.mxu0 0
      %2147 = vmatpush.bf16.msra.mxu0 0
      %2148 = vmatpush.bf16.msra.mxu0 0
      %2149 = vmatpush.bf16.msra.mxu0 0
      %2150 = vmatpush.bf16.msra.mxu0 0
      %2151 = vmatpush.bf16.msra.mxu0 0
      %2152 = vmatpush.bf16.msra.mxu0 %v2104
      %2153 = vmatmul.bf16.gmra.mxu0 %v2143
      %v2154 = vpop.f32.mrf.mxu0
      %v2155 = vadd.f32 0.0, %v2154
      %v2156 = vpop.f32.mrf.mxu0
      %v2157 = vadd.f32 0.0, %v2156
      %2158 = vdwg.mxu0
      %v2159 = vld [vmem:[%s339 + $0x418] sm:$0xff]
      %v2160 = vld [vmem:[%s339 + $0x458] sm:$0xff]
      %v2161 = vld [vmem:[%s339 + $0x498] sm:$0xff]
      %v2162 = vld [vmem:[%s339 + $0x4d8] sm:$0xff]
      %v2163 = vld [vmem:[%s339 + $0x518] sm:$0xff]
      %v2164 = vld [vmem:[%s339 + $0x558] sm:$0xff]
      %v2165 = vld [vmem:[%s339 + $0x598] sm:$0xff]
      %v2166 = vld [vmem:[%s339 + $0x5d8] sm:$0xff]
      %v2167 = vld [vmem:[%s339 + $0x618] sm:$0xff]
      %v2168 = vld [vmem:[%s339 + $0x658] sm:$0xff]
      %v2169 = vld [vmem:[%s339 + $0x698] sm:$0xff]
      %v2170 = vld [vmem:[%s339 + $0x6d8] sm:$0xff]
      %v2171 = vld [vmem:[%s339 + $0x718] sm:$0xff]
      %v2172 = vld [vmem:[%s339 + $0x758] sm:$0xff]
      %v2173 = vld [vmem:[%s339 + $0x798] sm:$0xff]
      %v2174 = vld [vmem:[%s339 + $0x7d8] sm:$0xff]
      %v2175 = vpack.c.bf16 %v2157, %v2155
      %v2192 = vunpack.c.l.b16 %v2159
      %v2193 = vunpack.c.h.b16 %v2159
      %v2194 = vunpack.c.l.b16 %v2160
      %v2195 = vunpack.c.h.b16 %v2160
      %v2196 = vunpack.c.l.b16 %v2161
      %v2197 = vunpack.c.h.b16 %v2161
      %v2198 = vunpack.c.l.b16 %v2162
      %v2199 = vunpack.c.h.b16 %v2162
      %v2200 = vunpack.c.l.b16 %v2163
      %v2201 = vunpack.c.h.b16 %v2163
      %v2202 = vunpack.c.l.b16 %v2164
      %v2203 = vunpack.c.h.b16 %v2164
      %v2204 = vunpack.c.l.b16 %v2165
      %v2205 = vunpack.c.h.b16 %v2165
      %v2206 = vunpack.c.l.b16 %v2166
      %v2207 = vunpack.c.h.b16 %v2166
      %v2208 = vunpack.c.l.b16 %v2167
      %v2209 = vunpack.c.h.b16 %v2167
      %v2210 = vunpack.c.l.b16 %v2168
      %v2211 = vunpack.c.h.b16 %v2168
      %v2212 = vunpack.c.l.b16 %v2169
      %v2213 = vunpack.c.h.b16 %v2169
      %v2214 = vunpack.c.l.b16 %v2170
      %v2215 = vunpack.c.h.b16 %v2170
      %v2216 = vunpack.c.l.b16 %v2171
      %v2217 = vunpack.c.h.b16 %v2171
      %v2218 = vunpack.c.l.b16 %v2172
      %v2219 = vunpack.c.h.b16 %v2172
      %v2220 = vunpack.c.l.b16 %v2173
      %v2221 = vunpack.c.h.b16 %v2173
      %v2222 = vunpack.c.l.b16 %v2174
      %v2223 = vunpack.c.h.b16 %v2174
      %v2224 = vpack.c.b16 %v2194, %v2192
      %v2225 = vpack.c.b16 %v2195, %v2193
      %v2226 = vpack.c.b16 %v2198, %v2196
      %v2227 = vpack.c.b16 %v2199, %v2197
      %v2228 = vpack.c.b16 %v2202, %v2200
      %v2229 = vpack.c.b16 %v2203, %v2201
      %v2230 = vpack.c.b16 %v2206, %v2204
      %v2231 = vpack.c.b16 %v2207, %v2205
      %v2232 = vpack.c.b16 %v2210, %v2208
      %v2233 = vpack.c.b16 %v2211, %v2209
      %v2234 = vpack.c.b16 %v2214, %v2212
      %v2235 = vpack.c.b16 %v2215, %v2213
      %v2236 = vpack.c.b16 %v2218, %v2216
      %v2237 = vpack.c.b16 %v2219, %v2217
      %v2238 = vpack.c.b16 %v2222, %v2220
      %v2239 = vpack.c.b16 %v2223, %v2221
      %2256 = vmatpush.bf16.msra.mxu0 %v2238
      %2257 = vmatpush.bf16.msra.mxu0 %v2236
      %2258 = vmatpush.bf16.msra.mxu0 %v2234
      %2259 = vmatpush.bf16.msra.mxu0 %v2232
      %2260 = vmatpush.bf16.msra.mxu0 %v2230
      %2261 = vmatpush.bf16.msra.mxu0 %v2228
      %2262 = vmatpush.bf16.msra.mxu0 %v2226
      %2263 = vmatpush.bf16.msra.mxu0 %v2224
      %2264 = vmatmul.bf16.gmra.mxu0 %v2175
      %v2265 = vpop.f32.mrf.mxu0
      %v2266 = vadd.f32 0.0, %v2265
      %v2267 = vpop.f32.mrf.mxu0
      %v2268 = vadd.f32 0.0, %v2267
      %2269 = vdwg.mxu0
      %2270 = vmatpush.bf16.msra.mxu0 %v2239
      %2271 = vmatpush.bf16.msra.mxu0 %v2237
      %2272 = vmatpush.bf16.msra.mxu0 %v2235
      %2273 = vmatpush.bf16.msra.mxu0 %v2233
      %2274 = vmatpush.bf16.msra.mxu0 %v2231
      %2275 = vmatpush.bf16.msra.mxu0 %v2229
      %2276 = vmatpush.bf16.msra.mxu0 %v2227
      %2277 = vmatpush.bf16.msra.mxu0 %v2225
      %2278 = vmatmul.bf16.gmra.mxu0 %v2175
      %v2279 = vpop.f32.mrf.mxu0
      %v2280 = vadd.f32 0.0, %v2279
      %v2281 = vpop.f32.mrf.mxu0
      %v2282 = vadd.f32 0.0, %v2281
      %2283 = vdwg.mxu0
      %v2300 = vunpack.c.l.b16 %v2085
      %v2301 = vunpack.c.h.b16 %v2085
      %v2302 = vunpack.c.l.b16 %v2086
      %v2303 = vunpack.c.h.b16 %v2086
      %v2304 = vunpack.c.l.b16 %v2087
      %v2305 = vunpack.c.h.b16 %v2087
      %v2306 = vunpack.c.l.b16 %v2088
      %v2307 = vunpack.c.h.b16 %v2088
      %v2308 = vunpack.c.l.b16 %v2089
      %v2309 = vunpack.c.h.b16 %v2089
      %v2310 = vunpack.c.l.b16 %v2090
      %v2311 = vunpack.c.h.b16 %v2090
      %v2312 = vunpack.c.l.b16 %v2091
      %v2313 = vunpack.c.h.b16 %v2091
      %v2314 = vunpack.c.l.b16 %v2092
      %v2315 = vunpack.c.h.b16 %v2092
      %v2316 = vunpack.c.l.b16 %v2093
      %v2317 = vunpack.c.h.b16 %v2093
      %v2318 = vunpack.c.l.b16 %v2094
      %v2319 = vunpack.c.h.b16 %v2094
      %v2320 = vunpack.c.l.b16 %v2095
      %v2321 = vunpack.c.h.b16 %v2095
      %v2322 = vunpack.c.l.b16 %v2096
      %v2323 = vunpack.c.h.b16 %v2096
      %v2324 = vunpack.c.l.b16 %v2097
      %v2325 = vunpack.c.h.b16 %v2097
      %v2326 = vunpack.c.l.b16 %v2098
      %v2327 = vunpack.c.h.b16 %v2098
      %v2328 = vunpack.c.l.b16 %v2099
      %v2329 = vunpack.c.h.b16 %v2099
      %v2330 = vunpack.c.l.b16 %v2100
      %v2331 = vunpack.c.h.b16 %v2100
      %v2332 = vpack.c.b16 %v2302, %v2300
      %v2333 = vpack.c.b16 %v2303, %v2301
      %v2334 = vpack.c.b16 %v2306, %v2304
      %v2335 = vpack.c.b16 %v2307, %v2305
      %v2336 = vpack.c.b16 %v2310, %v2308
      %v2337 = vpack.c.b16 %v2311, %v2309
      %v2338 = vpack.c.b16 %v2314, %v2312
      %v2339 = vpack.c.b16 %v2315, %v2313
      %v2340 = vpack.c.b16 %v2318, %v2316
      %v2341 = vpack.c.b16 %v2319, %v2317
      %v2342 = vpack.c.b16 %v2322, %v2320
      %v2343 = vpack.c.b16 %v2323, %v2321
      %v2344 = vpack.c.b16 %v2326, %v2324
      %v2345 = vpack.c.b16 %v2327, %v2325
      %v2346 = vpack.c.b16 %v2330, %v2328
      %v2347 = vpack.c.b16 %v2331, %v2329
      %2364 = vmatpush.bf16.msra.mxu0 %v2346
      %2365 = vmatpush.bf16.msra.mxu0 %v2344
      %2366 = vmatpush.bf16.msra.mxu0 %v2342
      %2367 = vmatpush.bf16.msra.mxu0 %v2340
      %2368 = vmatpush.bf16.msra.mxu0 %v2338
      %2369 = vmatpush.bf16.msra.mxu0 %v2336
      %2370 = vmatpush.bf16.msra.mxu0 %v2334
      %2371 = vmatpush.bf16.msra.mxu0 %v2332
      %2372 = vmatmul.bf16.gmra.mxu0 %v2101
      %v2373 = vpop.f32.mrf.mxu0
      %v2374 = vadd.f32 %v2266, %v2373
      %v2375 = vpop.f32.mrf.mxu0
      %v2376 = vadd.f32 %v2268, %v2375
      %2377 = vdwg.mxu0
      %2378 = vmatpush.bf16.msra.mxu0 %v2347
      %2379 = vmatpush.bf16.msra.mxu0 %v2345
      %2380 = vmatpush.bf16.msra.mxu0 %v2343
      %2381 = vmatpush.bf16.msra.mxu0 %v2341
      %2382 = vmatpush.bf16.msra.mxu0 %v2339
      %2383 = vmatpush.bf16.msra.mxu0 %v2337
      %2384 = vmatpush.bf16.msra.mxu0 %v2335
      %2385 = vmatpush.bf16.msra.mxu0 %v2333
      %2386 = vmatmul.bf16.gmra.mxu0 %v2101
      %v2387 = vpop.f32.mrf.mxu0
      %v2388 = vadd.f32 %v2280, %v2387
      %v2389 = vpop.f32.mrf.mxu0
      %v2390 = vadd.f32 %v2282, %v2389
      %2391 = vdwg.mxu0
      %v2392 = vadd.f32 %v1150, %v2374
      %v2393 = vadd.f32 %v1151, %v2388
      %v2394 = vadd.f32 %v1152, %v2376
      %v2395 = vadd.f32 %v1153, %v2390
      %v2397 = vperm.slane %v1166, 0
      %v2398 = vperm.slane %v1166, 1
      %v2401 = vadd.f32 %v2392, %v2397
      %v2402 = vadd.f32 %v2393, %v2398
      %v2403 = vadd.f32 %v2394, %v2397
      %v2404 = vadd.f32 %v2395, %v2398
      %v2405 = vadd.f32 %v2401, %v2402
      %2406 = vadd.xlane.f32.xlu0 %v2405
      %v2407 = vpop.xlane.xlu0 %2406
      %v2408 = vadd.f32 %v2403, %v2404
      %2409 = vadd.xlane.f32.xlu0 %v2408
      %v2410 = vpop.xlane.xlu0 %2409
      %v2411 = vmul.f32 %v2407, %v1205
      %v2412 = vmul.f32 %v2410, %v1205
      %v2413 = vsub.f32 %v2401, %v2411
      %v2414 = vsub.f32 %v2402, %v2411
      %v2415 = vsub.f32 %v2403, %v2412
      %v2416 = vsub.f32 %v2404, %v2412
      %v2417 = vmul.f32 %v2413, %v2413
      %v2418 = vmul.f32 %v2414, %v2414
      %v2419 = vmul.f32 %v2415, %v2415
      %v2420 = vmul.f32 %v2416, %v2416
      %v2421 = vadd.f32 %v2417, %v2418
      %2422 = vadd.xlane.f32.xlu0 %v2421
      %v2423 = vpop.xlane.xlu0 %2422
      %v2424 = vadd.f32 %v2419, %v2420
      %2425 = vadd.xlane.f32.xlu0 %v2424
      %v2426 = vpop.xlane.xlu0 %2425
      %v2427 = vmul.f32 %v2423, %v1205
      %v2428 = vmul.f32 %v2426, %v1205
      %v2429 = vadd.f32 %v2427, 1e-12
      %v2430 = vadd.f32 %v2428, 1e-12
      %v2431 = vrsqrt.pop %v2429
      %v2432 = vmul.f32 %v2431, %v2429
      %v2433 = vmul.f32 %v2432, %v2431
      %v2434 = vmul.f32 0.5, %v2433
      %v2435 = vsub.f32 1.5, %v2434
      %v2436 = vmul.f32 %v2431, %v2435
      %vm2437 = vweird.f32 %v2429
      %vm2438 = vweird.f32 %v2431
      %vm2439 = vmor %vm2437, %vm2438
      %v2440 = vsel %vm2439, %v2431, %v2436
      %v2441 = vrsqrt.pop %v2430
      %v2442 = vmul.f32 %v2441, %v2430
      %v2443 = vmul.f32 %v2442, %v2441
      %v2444 = vmul.f32 0.5, %v2443
      %v2445 = vsub.f32 1.5, %v2444
      %v2446 = vmul.f32 %v2441, %v2445
      %vm2447 = vweird.f32 %v2430
      %vm2448 = vweird.f32 %v2441
      %vm2449 = vmor %vm2447, %vm2448
      %v2450 = vsel %vm2449, %v2441, %v2446
      %v2451 = vmul.f32 %v2413, %v2440
      %v2452 = vmul.f32 %v2414, %v2440
      %v2453 = vmul.f32 %v2415, %v2450
      %v2454 = vmul.f32 %v2416, %v2450
      %v2456 = vperm.slane %v1158, 0
      %v2457 = vperm.slane %v1158, 1
      %v2460 = vmul.f32 %v2451, %v2456
      %v2461 = vmul.f32 %v2452, %v2457
      %v2462 = vmul.f32 %v2453, %v2456
      %v2463 = vmul.f32 %v2454, %v2457
      %v2465 = vperm.slane %v1160, 0
      %v2466 = vperm.slane %v1160, 1
      %v2469 = vadd.f32 %v2460, %v2465
      %v2470 = vadd.f32 %v2461, %v2466
      %v2471 = vadd.f32 %v2462, %v2465
      %v2472 = vadd.f32 %v2463, %v2466
      %v2473 = vpack.c.bf16 %v2471, %v2469
      %v2474 = vpack.c.bf16 %v2472, %v2470
      %v2475 = vld [vmem:[%s339 + $0x20] sm:$0xff]
      %v2476 = vld [vmem:[%s339 + $0x28] sm:$0xff]
      %v2477 = vld [vmem:[%s339 + $0x30] sm:$0xff]
      %v2478 = vld [vmem:[%s339 + $0x38] sm:$0xff]
      %v2479 = vld [vmem:[%s339 + $0x60] sm:$0xff]
      %v2480 = vld [vmem:[%s339 + $0x68] sm:$0xff]
      %v2481 = vld [vmem:[%s339 + $0x70] sm:$0xff]
      %v2482 = vld [vmem:[%s339 + $0x78] sm:$0xff]
      %v2483 = vld [vmem:[%s339 + $0xa0] sm:$0xff]
      %v2484 = vld [vmem:[%s339 + $0xa8] sm:$0xff]
      %v2485 = vld [vmem:[%s339 + $0xb0] sm:$0xff]
      %v2486 = vld [vmem:[%s339 + $0xb8] sm:$0xff]
      %v2487 = vld [vmem:[%s339 + $0xe0] sm:$0xff]
      %v2488 = vld [vmem:[%s339 + $0xe8] sm:$0xff]
      %v2489 = vld [vmem:[%s339 + $0xf0] sm:$0xff]
      %v2490 = vld [vmem:[%s339 + $0xf8] sm:$0xff]
      %v2491 = vld [vmem:[%s339 + $0x120] sm:$0xff]
      %v2492 = vld [vmem:[%s339 + $0x128] sm:$0xff]
      %v2493 = vld [vmem:[%s339 + $0x130] sm:$0xff]
      %v2494 = vld [vmem:[%s339 + $0x138] sm:$0xff]
      %v2495 = vld [vmem:[%s339 + $0x160] sm:$0xff]
      %v2496 = vld [vmem:[%s339 + $0x168] sm:$0xff]
      %v2497 = vld [vmem:[%s339 + $0x170] sm:$0xff]
      %v2498 = vld [vmem:[%s339 + $0x178] sm:$0xff]
      %v2499 = vld [vmem:[%s339 + $0x1a0] sm:$0xff]
      %v2500 = vld [vmem:[%s339 + $0x1a8] sm:$0xff]
      %v2501 = vld [vmem:[%s339 + $0x1b0] sm:$0xff]
      %v2502 = vld [vmem:[%s339 + $0x1b8] sm:$0xff]
      %v2503 = vld [vmem:[%s339 + $0x1e0] sm:$0xff]
      %v2504 = vld [vmem:[%s339 + $0x1e8] sm:$0xff]
      %v2505 = vld [vmem:[%s339 + $0x1f0] sm:$0xff]
      %v2506 = vld [vmem:[%s339 + $0x1f8] sm:$0xff]
      %v2507 = vld [vmem:[%s339 + $0x220] sm:$0xff]
      %v2508 = vld [vmem:[%s339 + $0x228] sm:$0xff]
      %v2509 = vld [vmem:[%s339 + $0x230] sm:$0xff]
      %v2510 = vld [vmem:[%s339 + $0x238] sm:$0xff]
      %v2511 = vld [vmem:[%s339 + $0x260] sm:$0xff]
      %v2512 = vld [vmem:[%s339 + $0x268] sm:$0xff]
      %v2513 = vld [vmem:[%s339 + $0x270] sm:$0xff]
      %v2514 = vld [vmem:[%s339 + $0x278] sm:$0xff]
      %v2515 = vld [vmem:[%s339 + $0x2a0] sm:$0xff]
      %v2516 = vld [vmem:[%s339 + $0x2a8] sm:$0xff]
      %v2517 = vld [vmem:[%s339 + $0x2b0] sm:$0xff]
      %v2518 = vld [vmem:[%s339 + $0x2b8] sm:$0xff]
      %v2519 = vld [vmem:[%s339 + $0x2e0] sm:$0xff]
      %v2520 = vld [vmem:[%s339 + $0x2e8] sm:$0xff]
      %v2521 = vld [vmem:[%s339 + $0x2f0] sm:$0xff]
      %v2522 = vld [vmem:[%s339 + $0x2f8] sm:$0xff]
      %v2523 = vld [vmem:[%s339 + $0x320] sm:$0xff]
      %v2524 = vld [vmem:[%s339 + $0x328] sm:$0xff]
      %v2525 = vld [vmem:[%s339 + $0x330] sm:$0xff]
      %v2526 = vld [vmem:[%s339 + $0x338] sm:$0xff]
      %v2527 = vld [vmem:[%s339 + $0x360] sm:$0xff]
      %v2528 = vld [vmem:[%s339 + $0x368] sm:$0xff]
      %v2529 = vld [vmem:[%s339 + $0x370] sm:$0xff]
      %v2530 = vld [vmem:[%s339 + $0x378] sm:$0xff]
      %v2531 = vld [vmem:[%s339 + $0x3a0] sm:$0xff]
      %v2532 = vld [vmem:[%s339 + $0x3a8] sm:$0xff]
      %v2533 = vld [vmem:[%s339 + $0x3b0] sm:$0xff]
      %v2534 = vld [vmem:[%s339 + $0x3b8] sm:$0xff]
      %v2535 = vld [vmem:[%s339 + $0x3e0] sm:$0xff]
      %v2536 = vld [vmem:[%s339 + $0x3e8] sm:$0xff]
      %v2537 = vld [vmem:[%s339 + $0x3f0] sm:$0xff]
      %v2538 = vld [vmem:[%s339 + $0x3f8] sm:$0xff]
      %v2539 = vld [vmem:[%s339 + $0x420] sm:$0xff]
      %v2540 = vld [vmem:[%s339 + $0x428] sm:$0xff]
      %v2541 = vld [vmem:[%s339 + $0x430] sm:$0xff]
      %v2542 = vld [vmem:[%s339 + $0x438] sm:$0xff]
      %v2543 = vld [vmem:[%s339 + $0x460] sm:$0xff]
      %v2544 = vld [vmem:[%s339 + $0x468] sm:$0xff]
      %v2545 = vld [vmem:[%s339 + $0x470] sm:$0xff]
      %v2546 = vld [vmem:[%s339 + $0x478] sm:$0xff]
      %v2547 = vld [vmem:[%s339 + $0x4a0] sm:$0xff]
      %v2548 = vld [vmem:[%s339 + $0x4a8] sm:$0xff]
      %v2549 = vld [vmem:[%s339 + $0x4b0] sm:$0xff]
      %v2550 = vld [vmem:[%s339 + $0x4b8] sm:$0xff]
      %v2551 = vld [vmem:[%s339 + $0x4e0] sm:$0xff]
      %v2552 = vld [vmem:[%s339 + $0x4e8] sm:$0xff]
      %v2553 = vld [vmem:[%s339 + $0x4f0] sm:$0xff]
      %v2554 = vld [vmem:[%s339 + $0x4f8] sm:$0xff]
      %v2555 = vld [vmem:[%s339 + $0x520] sm:$0xff]
      %v2556 = vld [vmem:[%s339 + $0x528] sm:$0xff]
      %v2557 = vld [vmem:[%s339 + $0x530] sm:$0xff]
      %v2558 = vld [vmem:[%s339 + $0x538] sm:$0xff]
      %v2559 = vld [vmem:[%s339 + $0x560] sm:$0xff]
      %v2560 = vld [vmem:[%s339 + $0x568] sm:$0xff]
      %v2561 = vld [vmem:[%s339 + $0x570] sm:$0xff]
      %v2562 = vld [vmem:[%s339 + $0x578] sm:$0xff]
      %v2563 = vld [vmem:[%s339 + $0x5a0] sm:$0xff]
      %v2564 = vld [vmem:[%s339 + $0x5a8] sm:$0xff]
      %v2565 = vld [vmem:[%s339 + $0x5b0] sm:$0xff]
      %v2566 = vld [vmem:[%s339 + $0x5b8] sm:$0xff]
      %v2567 = vld [vmem:[%s339 + $0x5e0] sm:$0xff]
      %v2568 = vld [vmem:[%s339 + $0x5e8] sm:$0xff]
      %v2569 = vld [vmem:[%s339 + $0x5f0] sm:$0xff]
      %v2570 = vld [vmem:[%s339 + $0x5f8] sm:$0xff]
      %v2571 = vld [vmem:[%s339 + $0x620] sm:$0xff]
      %v2572 = vld [vmem:[%s339 + $0x628] sm:$0xff]
      %v2573 = vld [vmem:[%s339 + $0x630] sm:$0xff]
      %v2574 = vld [vmem:[%s339 + $0x638] sm:$0xff]
      %v2575 = vld [vmem:[%s339 + $0x660] sm:$0xff]
      %v2576 = vld [vmem:[%s339 + $0x668] sm:$0xff]
      %v2577 = vld [vmem:[%s339 + $0x670] sm:$0xff]
      %v2578 = vld [vmem:[%s339 + $0x678] sm:$0xff]
      %v2579 = vld [vmem:[%s339 + $0x6a0] sm:$0xff]
      %v2580 = vld [vmem:[%s339 + $0x6a8] sm:$0xff]
      %v2581 = vld [vmem:[%s339 + $0x6b0] sm:$0xff]
      %v2582 = vld [vmem:[%s339 + $0x6b8] sm:$0xff]
      %v2583 = vld [vmem:[%s339 + $0x6e0] sm:$0xff]
      %v2584 = vld [vmem:[%s339 + $0x6e8] sm:$0xff]
      %v2585 = vld [vmem:[%s339 + $0x6f0] sm:$0xff]
      %v2586 = vld [vmem:[%s339 + $0x6f8] sm:$0xff]
      %v2587 = vld [vmem:[%s339 + $0x720] sm:$0xff]
      %v2588 = vld [vmem:[%s339 + $0x728] sm:$0xff]
      %v2589 = vld [vmem:[%s339 + $0x730] sm:$0xff]
      %v2590 = vld [vmem:[%s339 + $0x738] sm:$0xff]
      %v2591 = vld [vmem:[%s339 + $0x760] sm:$0xff]
      %v2592 = vld [vmem:[%s339 + $0x768] sm:$0xff]
      %v2593 = vld [vmem:[%s339 + $0x770] sm:$0xff]
      %v2594 = vld [vmem:[%s339 + $0x778] sm:$0xff]
      %v2595 = vld [vmem:[%s339 + $0x7a0] sm:$0xff]
      %v2596 = vld [vmem:[%s339 + $0x7a8] sm:$0xff]
      %v2597 = vld [vmem:[%s339 + $0x7b0] sm:$0xff]
      %v2598 = vld [vmem:[%s339 + $0x7b8] sm:$0xff]
      %v2599 = vld [vmem:[%s339 + $0x7e0] sm:$0xff]
      %v2600 = vld [vmem:[%s339 + $0x7e8] sm:$0xff]
      %v2601 = vld [vmem:[%s339 + $0x7f0] sm:$0xff]
      %v2602 = vld [vmem:[%s339 + $0x7f8] sm:$0xff]
      %v2604 = vperm.slane %v1170, 0
      %v2605 = vperm.slane %v1170, 1
      %v2606 = vperm.slane %v1170, 2
      %v2607 = vperm.slane %v1170, 3
      %v2608 = vperm.slane %v1170, 4
      %v2609 = vperm.slane %v1170, 5
      %v2610 = vperm.slane %v1170, 6
      %v2611 = vperm.slane %v1170, 7
      %v2748 = vunpack.c.l.b16 %v2475
      %v2749 = vunpack.c.h.b16 %v2475
      %v2750 = vunpack.c.l.b16 %v2476
      %v2751 = vunpack.c.h.b16 %v2476
      %v2752 = vunpack.c.l.b16 %v2477
      %v2753 = vunpack.c.h.b16 %v2477
      %v2754 = vunpack.c.l.b16 %v2478
      %v2755 = vunpack.c.h.b16 %v2478
      %v2756 = vunpack.c.l.b16 %v2479
      %v2757 = vunpack.c.h.b16 %v2479
      %v2758 = vunpack.c.l.b16 %v2480
      %v2759 = vunpack.c.h.b16 %v2480
      %v2760 = vunpack.c.l.b16 %v2481
      %v2761 = vunpack.c.h.b16 %v2481
      %v2762 = vunpack.c.l.b16 %v2482
      %v2763 = vunpack.c.h.b16 %v2482
      %v2764 = vunpack.c.l.b16 %v2483
      %v2765 = vunpack.c.h.b16 %v2483
      %v2766 = vunpack.c.l.b16 %v2484
      %v2767 = vunpack.c.h.b16 %v2484
      %v2768 = vunpack.c.l.b16 %v2485
      %v2769 = vunpack.c.h.b16 %v2485
      %v2770 = vunpack.c.l.b16 %v2486
      %v2771 = vunpack.c.h.b16 %v2486
      %v2772 = vunpack.c.l.b16 %v2487
      %v2773 = vunpack.c.h.b16 %v2487
      %v2774 = vunpack.c.l.b16 %v2488
      %v2775 = vunpack.c.h.b16 %v2488
      %v2776 = vunpack.c.l.b16 %v2489
      %v2777 = vunpack.c.h.b16 %v2489
      %v2778 = vunpack.c.l.b16 %v2490
      %v2779 = vunpack.c.h.b16 %v2490
      %v2780 = vunpack.c.l.b16 %v2491
      %v2781 = vunpack.c.h.b16 %v2491
      %v2782 = vunpack.c.l.b16 %v2492
      %v2783 = vunpack.c.h.b16 %v2492
      %v2784 = vunpack.c.l.b16 %v2493
      %v2785 = vunpack.c.h.b16 %v2493
      %v2786 = vunpack.c.l.b16 %v2494
      %v2787 = vunpack.c.h.b16 %v2494
      %v2788 = vunpack.c.l.b16 %v2495
      %v2789 = vunpack.c.h.b16 %v2495
      %v2790 = vunpack.c.l.b16 %v2496
      %v2791 = vunpack.c.h.b16 %v2496
      %v2792 = vunpack.c.l.b16 %v2497
      %v2793 = vunpack.c.h.b16 %v2497
      %v2794 = vunpack.c.l.b16 %v2498
      %v2795 = vunpack.c.h.b16 %v2498
      %v2796 = vunpack.c.l.b16 %v2499
      %v2797 = vunpack.c.h.b16 %v2499
      %v2798 = vunpack.c.l.b16 %v2500
      %v2799 = vunpack.c.h.b16 %v2500
      %v2800 = vunpack.c.l.b16 %v2501
      %v2801 = vunpack.c.h.b16 %v2501
      %v2802 = vunpack.c.l.b16 %v2502
      %v2803 = vunpack.c.h.b16 %v2502
      %v2804 = vunpack.c.l.b16 %v2503
      %v2805 = vunpack.c.h.b16 %v2503
      %v2806 = vunpack.c.l.b16 %v2504
      %v2807 = vunpack.c.h.b16 %v2504
      %v2808 = vunpack.c.l.b16 %v2505
      %v2809 = vunpack.c.h.b16 %v2505
      %v2810 = vunpack.c.l.b16 %v2506
      %v2811 = vunpack.c.h.b16 %v2506
      %v2812 = vunpack.c.l.b16 %v2507
      %v2813 = vunpack.c.h.b16 %v2507
      %v2814 = vunpack.c.l.b16 %v2508
      %v2815 = vunpack.c.h.b16 %v2508
      %v2816 = vunpack.c.l.b16 %v2509
      %v2817 = vunpack.c.h.b16 %v2509
      %v2818 = vunpack.c.l.b16 %v2510
      %v2819 = vunpack.c.h.b16 %v2510
      %v2820 = vunpack.c.l.b16 %v2511
      %v2821 = vunpack.c.h.b16 %v2511
      %v2822 = vunpack.c.l.b16 %v2512
      %v2823 = vunpack.c.h.b16 %v2512
      %v2824 = vunpack.c.l.b16 %v2513
      %v2825 = vunpack.c.h.b16 %v2513
      %v2826 = vunpack.c.l.b16 %v2514
      %v2827 = vunpack.c.h.b16 %v2514
      %v2828 = vunpack.c.l.b16 %v2515
      %v2829 = vunpack.c.h.b16 %v2515
      %v2830 = vunpack.c.l.b16 %v2516
      %v2831 = vunpack.c.h.b16 %v2516
      %v2832 = vunpack.c.l.b16 %v2517
      %v2833 = vunpack.c.h.b16 %v2517
      %v2834 = vunpack.c.l.b16 %v2518
      %v2835 = vunpack.c.h.b16 %v2518
      %v2836 = vunpack.c.l.b16 %v2519
      %v2837 = vunpack.c.h.b16 %v2519
      %v2838 = vunpack.c.l.b16 %v2520
      %v2839 = vunpack.c.h.b16 %v2520
      %v2840 = vunpack.c.l.b16 %v2521
      %v2841 = vunpack.c.h.b16 %v2521
      %v2842 = vunpack.c.l.b16 %v2522
      %v2843 = vunpack.c.h.b16 %v2522
      %v2844 = vunpack.c.l.b16 %v2523
      %v2845 = vunpack.c.h.b16 %v2523
      %v2846 = vunpack.c.l.b16 %v2524
      %v2847 = vunpack.c.h.b16 %v2524
      %v2848 = vunpack.c.l.b16 %v2525
      %v2849 = vunpack.c.h.b16 %v2525
      %v2850 = vunpack.c.l.b16 %v2526
      %v2851 = vunpack.c.h.b16 %v2526
      %v2852 = vunpack.c.l.b16 %v2527
      %v2853 = vunpack.c.h.b16 %v2527
      %v2854 = vunpack.c.l.b16 %v2528
      %v2855 = vunpack.c.h.b16 %v2528
      %v2856 = vunpack.c.l.b16 %v2529
      %v2857 = vunpack.c.h.b16 %v2529
      %v2858 = vunpack.c.l.b16 %v2530
      %v2859 = vunpack.c.h.b16 %v2530
      %v2860 = vunpack.c.l.b16 %v2531
      %v2861 = vunpack.c.h.b16 %v2531
      %v2862 = vunpack.c.l.b16 %v2532
      %v2863 = vunpack.c.h.b16 %v2532
      %v2864 = vunpack.c.l.b16 %v2533
      %v2865 = vunpack.c.h.b16 %v2533
      %v2866 = vunpack.c.l.b16 %v2534
      %v2867 = vunpack.c.h.b16 %v2534
      %v2868 = vunpack.c.l.b16 %v2535
      %v2869 = vunpack.c.h.b16 %v2535
      %v2870 = vunpack.c.l.b16 %v2536
      %v2871 = vunpack.c.h.b16 %v2536
      %v2872 = vunpack.c.l.b16 %v2537
      %v2873 = vunpack.c.h.b16 %v2537
      %v2874 = vunpack.c.l.b16 %v2538
      %v2875 = vunpack.c.h.b16 %v2538
      %v2876 = vunpack.c.l.b16 %v2539
      %v2877 = vunpack.c.h.b16 %v2539
      %v2878 = vunpack.c.l.b16 %v2540
      %v2879 = vunpack.c.h.b16 %v2540
      %v2880 = vunpack.c.l.b16 %v2541
      %v2881 = vunpack.c.h.b16 %v2541
      %v2882 = vunpack.c.l.b16 %v2542
      %v2883 = vunpack.c.h.b16 %v2542
      %v2884 = vunpack.c.l.b16 %v2543
      %v2885 = vunpack.c.h.b16 %v2543
      %v2886 = vunpack.c.l.b16 %v2544
      %v2887 = vunpack.c.h.b16 %v2544
      %v2888 = vunpack.c.l.b16 %v2545
      %v2889 = vunpack.c.h.b16 %v2545
      %v2890 = vunpack.c.l.b16 %v2546
      %v2891 = vunpack.c.h.b16 %v2546
      %v2892 = vunpack.c.l.b16 %v2547
      %v2893 = vunpack.c.h.b16 %v2547
      %v2894 = vunpack.c.l.b16 %v2548
      %v2895 = vunpack.c.h.b16 %v2548
      %v2896 = vunpack.c.l.b16 %v2549
      %v2897 = vunpack.c.h.b16 %v2549
      %v2898 = vunpack.c.l.b16 %v2550
      %v2899 = vunpack.c.h.b16 %v2550
      %v2900 = vunpack.c.l.b16 %v2551
      %v2901 = vunpack.c.h.b16 %v2551
      %v2902 = vunpack.c.l.b16 %v2552
      %v2903 = vunpack.c.h.b16 %v2552
      %v2904 = vunpack.c.l.b16 %v2553
      %v2905 = vunpack.c.h.b16 %v2553
      %v2906 = vunpack.c.l.b16 %v2554
      %v2907 = vunpack.c.h.b16 %v2554
      %v2908 = vunpack.c.l.b16 %v2555
      %v2909 = vunpack.c.h.b16 %v2555
      %v2910 = vunpack.c.l.b16 %v2556
      %v2911 = vunpack.c.h.b16 %v2556
      %v2912 = vunpack.c.l.b16 %v2557
      %v2913 = vunpack.c.h.b16 %v2557
      %v2914 = vunpack.c.l.b16 %v2558
      %v2915 = vunpack.c.h.b16 %v2558
      %v2916 = vunpack.c.l.b16 %v2559
      %v2917 = vunpack.c.h.b16 %v2559
      %v2918 = vunpack.c.l.b16 %v2560
      %v2919 = vunpack.c.h.b16 %v2560
      %v2920 = vunpack.c.l.b16 %v2561
      %v2921 = vunpack.c.h.b16 %v2561
      %v2922 = vunpack.c.l.b16 %v2562
      %v2923 = vunpack.c.h.b16 %v2562
      %v2924 = vunpack.c.l.b16 %v2563
      %v2925 = vunpack.c.h.b16 %v2563
      %v2926 = vunpack.c.l.b16 %v2564
      %v2927 = vunpack.c.h.b16 %v2564
      %v2928 = vunpack.c.l.b16 %v2565
      %v2929 = vunpack.c.h.b16 %v2565
      %v2930 = vunpack.c.l.b16 %v2566
      %v2931 = vunpack.c.h.b16 %v2566
      %v2932 = vunpack.c.l.b16 %v2567
      %v2933 = vunpack.c.h.b16 %v2567
      %v2934 = vunpack.c.l.b16 %v2568
      %v2935 = vunpack.c.h.b16 %v2568
      %v2936 = vunpack.c.l.b16 %v2569
      %v2937 = vunpack.c.h.b16 %v2569
      %v2938 = vunpack.c.l.b16 %v2570
      %v2939 = vunpack.c.h.b16 %v2570
      %v2940 = vunpack.c.l.b16 %v2571
      %v2941 = vunpack.c.h.b16 %v2571
      %v2942 = vunpack.c.l.b16 %v2572
      %v2943 = vunpack.c.h.b16 %v2572
      %v2944 = vunpack.c.l.b16 %v2573
      %v2945 = vunpack.c.h.b16 %v2573
      %v2946 = vunpack.c.l.b16 %v2574
      %v2947 = vunpack.c.h.b16 %v2574
      %v2948 = vunpack.c.l.b16 %v2575
      %v2949 = vunpack.c.h.b16 %v2575
      %v2950 = vunpack.c.l.b16 %v2576
      %v2951 = vunpack.c.h.b16 %v2576
      %v2952 = vunpack.c.l.b16 %v2577
      %v2953 = vunpack.c.h.b16 %v2577
      %v2954 = vunpack.c.l.b16 %v2578
      %v2955 = vunpack.c.h.b16 %v2578
      %v2956 = vunpack.c.l.b16 %v2579
      %v2957 = vunpack.c.h.b16 %v2579
      %v2958 = vunpack.c.l.b16 %v2580
      %v2959 = vunpack.c.h.b16 %v2580
      %v2960 = vunpack.c.l.b16 %v2581
      %v2961 = vunpack.c.h.b16 %v2581
      %v2962 = vunpack.c.l.b16 %v2582
      %v2963 = vunpack.c.h.b16 %v2582
      %v2964 = vunpack.c.l.b16 %v2583
      %v2965 = vunpack.c.h.b16 %v2583
      %v2966 = vunpack.c.l.b16 %v2584
      %v2967 = vunpack.c.h.b16 %v2584
      %v2968 = vunpack.c.l.b16 %v2585
      %v2969 = vunpack.c.h.b16 %v2585
      %v2970 = vunpack.c.l.b16 %v2586
      %v2971 = vunpack.c.h.b16 %v2586
      %v2972 = vunpack.c.l.b16 %v2587
      %v2973 = vunpack.c.h.b16 %v2587
      %v2974 = vunpack.c.l.b16 %v2588
      %v2975 = vunpack.c.h.b16 %v2588
      %v2976 = vunpack.c.l.b16 %v2589
      %v2977 = vunpack.c.h.b16 %v2589
      %v2978 = vunpack.c.l.b16 %v2590
      %v2979 = vunpack.c.h.b16 %v2590
      %v2980 = vunpack.c.l.b16 %v2591
      %v2981 = vunpack.c.h.b16 %v2591
      %v2982 = vunpack.c.l.b16 %v2592
      %v2983 = vunpack.c.h.b16 %v2592
      %v2984 = vunpack.c.l.b16 %v2593
      %v2985 = vunpack.c.h.b16 %v2593
      %v2986 = vunpack.c.l.b16 %v2594
      %v2987 = vunpack.c.h.b16 %v2594
      %v2988 = vunpack.c.l.b16 %v2595
      %v2989 = vunpack.c.h.b16 %v2595
      %v2990 = vunpack.c.l.b16 %v2596
      %v2991 = vunpack.c.h.b16 %v2596
      %v2992 = vunpack.c.l.b16 %v2597
      %v2993 = vunpack.c.h.b16 %v2597
      %v2994 = vunpack.c.l.b16 %v2598
      %v2995 = vunpack.c.h.b16 %v2598
      %v2996 = vunpack.c.l.b16 %v2599
      %v2997 = vunpack.c.h.b16 %v2599
      %v2998 = vunpack.c.l.b16 %v2600
      %v2999 = vunpack.c.h.b16 %v2600
      %v3000 = vunpack.c.l.b16 %v2601
      %v3001 = vunpack.c.h.b16 %v2601
      %v3002 = vunpack.c.l.b16 %v2602
      %v3003 = vunpack.c.h.b16 %v2602
      %v3004 = vpack.c.b16 %v2756, %v2748
      %v3005 = vpack.c.b16 %v2757, %v2749
      %v3006 = vpack.c.b16 %v2758, %v2750
      %v3007 = vpack.c.b16 %v2759, %v2751
      %v3008 = vpack.c.b16 %v2760, %v2752
      %v3009 = vpack.c.b16 %v2761, %v2753
      %v3010 = vpack.c.b16 %v2762, %v2754
      %v3011 = vpack.c.b16 %v2763, %v2755
      %v3012 = vpack.c.b16 %v2772, %v2764
      %v3013 = vpack.c.b16 %v2773, %v2765
      %v3014 = vpack.c.b16 %v2774, %v2766
      %v3015 = vpack.c.b16 %v2775, %v2767
      %v3016 = vpack.c.b16 %v2776, %v2768
      %v3017 = vpack.c.b16 %v2777, %v2769
      %v3018 = vpack.c.b16 %v2778, %v2770
      %v3019 = vpack.c.b16 %v2779, %v2771
      %v3020 = vpack.c.b16 %v2788, %v2780
      %v3021 = vpack.c.b16 %v2789, %v2781
      %v3022 = vpack.c.b16 %v2790, %v2782
      %v3023 = vpack.c.b16 %v2791, %v2783
      %v3024 = vpack.c.b16 %v2792, %v2784
      %v3025 = vpack.c.b16 %v2793, %v2785
      %v3026 = vpack.c.b16 %v2794, %v2786
      %v3027 = vpack.c.b16 %v2795, %v2787
      %v3028 = vpack.c.b16 %v2804, %v2796
      %v3029 = vpack.c.b16 %v2805, %v2797
      %v3030 = vpack.c.b16 %v2806, %v2798
      %v3031 = vpack.c.b16 %v2807, %v2799
      %v3032 = vpack.c.b16 %v2808, %v2800
      %v3033 = vpack.c.b16 %v2809, %v2801
      %v3034 = vpack.c.b16 %v2810, %v2802
      %v3035 = vpack.c.b16 %v2811, %v2803
      %v3036 = vpack.c.b16 %v2820, %v2812
      %v3037 = vpack.c.b16 %v2821, %v2813
      %v3038 = vpack.c.b16 %v2822, %v2814
      %v3039 = vpack.c.b16 %v2823, %v2815
      %v3040 = vpack.c.b16 %v2824, %v2816
      %v3041 = vpack.c.b16 %v2825, %v2817
      %v3042 = vpack.c.b16 %v2826, %v2818
      %v3043 = vpack.c.b16 %v2827, %v2819
      %v3044 = vpack.c.b16 %v2836, %v2828
      %v3045 = vpack.c.b16 %v2837, %v2829
      %v3046 = vpack.c.b16 %v2838, %v2830
      %v3047 = vpack.c.b16 %v2839, %v2831
      %v3048 = vpack.c.b16 %v2840, %v2832
      %v3049 = vpack.c.b16 %v2841, %v2833
      %v3050 = vpack.c.b16 %v2842, %v2834
      %v3051 = vpack.c.b16 %v2843, %v2835
      %v3052 = vpack.c.b16 %v2852, %v2844
      %v3053 = vpack.c.b16 %v2853, %v2845
      %v3054 = vpack.c.b16 %v2854, %v2846
      %v3055 = vpack.c.b16 %v2855, %v2847
      %v3056 = vpack.c.b16 %v2856, %v2848
      %v3057 = vpack.c.b16 %v2857, %v2849
      %v3058 = vpack.c.b16 %v2858, %v2850
      %v3059 = vpack.c.b16 %v2859, %v2851
      %v3060 = vpack.c.b16 %v2868, %v2860
      %v3061 = vpack.c.b16 %v2869, %v2861
      %v3062 = vpack.c.b16 %v2870, %v2862
      %v3063 = vpack.c.b16 %v2871, %v2863
      %v3064 = vpack.c.b16 %v2872, %v2864
      %v3065 = vpack.c.b16 %v2873, %v2865
      %v3066 = vpack.c.b16 %v2874, %v2866
      %v3067 = vpack.c.b16 %v2875, %v2867
      %v3068 = vpack.c.b16 %v2884, %v2876
      %v3069 = vpack.c.b16 %v2885, %v2877
      %v3070 = vpack.c.b16 %v2886, %v2878
      %v3071 = vpack.c.b16 %v2887, %v2879
      %v3072 = vpack.c.b16 %v2888, %v2880
      %v3073 = vpack.c.b16 %v2889, %v2881
      %v3074 = vpack.c.b16 %v2890, %v2882
      %v3075 = vpack.c.b16 %v2891, %v2883
      %v3076 = vpack.c.b16 %v2900, %v2892
      %v3077 = vpack.c.b16 %v2901, %v2893
      %v3078 = vpack.c.b16 %v2902, %v2894
      %v3079 = vpack.c.b16 %v2903, %v2895
      %v3080 = vpack.c.b16 %v2904, %v2896
      %v3081 = vpack.c.b16 %v2905, %v2897
      %v3082 = vpack.c.b16 %v2906, %v2898
      %v3083 = vpack.c.b16 %v2907, %v2899
      %v3084 = vpack.c.b16 %v2916, %v2908
      %v3085 = vpack.c.b16 %v2917, %v2909
      %v3086 = vpack.c.b16 %v2918, %v2910
      %v3087 = vpack.c.b16 %v2919, %v2911
      %v3088 = vpack.c.b16 %v2920, %v2912
      %v3089 = vpack.c.b16 %v2921, %v2913
      %v3090 = vpack.c.b16 %v2922, %v2914
      %v3091 = vpack.c.b16 %v2923, %v2915
      %v3092 = vpack.c.b16 %v2932, %v2924
      %v3093 = vpack.c.b16 %v2933, %v2925
      %v3094 = vpack.c.b16 %v2934, %v2926
      %v3095 = vpack.c.b16 %v2935, %v2927
      %v3096 = vpack.c.b16 %v2936, %v2928
      %v3097 = vpack.c.b16 %v2937, %v2929
      %v3098 = vpack.c.b16 %v2938, %v2930
      %v3099 = vpack.c.b16 %v2939, %v2931
      %v3100 = vpack.c.b16 %v2948, %v2940
      %v3101 = vpack.c.b16 %v2949, %v2941
      %v3102 = vpack.c.b16 %v2950, %v2942
      %v3103 = vpack.c.b16 %v2951, %v2943
      %v3104 = vpack.c.b16 %v2952, %v2944
      %v3105 = vpack.c.b16 %v2953, %v2945
      %v3106 = vpack.c.b16 %v2954, %v2946
      %v3107 = vpack.c.b16 %v2955, %v2947
      %v3108 = vpack.c.b16 %v2964, %v2956
      %v3109 = vpack.c.b16 %v2965, %v2957
      %v3110 = vpack.c.b16 %v2966, %v2958
      %v3111 = vpack.c.b16 %v2967, %v2959
      %v3112 = vpack.c.b16 %v2968, %v2960
      %v3113 = vpack.c.b16 %v2969, %v2961
      %v3114 = vpack.c.b16 %v2970, %v2962
      %v3115 = vpack.c.b16 %v2971, %v2963
      %v3116 = vpack.c.b16 %v2980, %v2972
      %v3117 = vpack.c.b16 %v2981, %v2973
      %v3118 = vpack.c.b16 %v2982, %v2974
      %v3119 = vpack.c.b16 %v2983, %v2975
      %v3120 = vpack.c.b16 %v2984, %v2976
      %v3121 = vpack.c.b16 %v2985, %v2977
      %v3122 = vpack.c.b16 %v2986, %v2978
      %v3123 = vpack.c.b16 %v2987, %v2979
      %v3124 = vpack.c.b16 %v2996, %v2988
      %v3125 = vpack.c.b16 %v2997, %v2989
      %v3126 = vpack.c.b16 %v2998, %v2990
      %v3127 = vpack.c.b16 %v2999, %v2991
      %v3128 = vpack.c.b16 %v3000, %v2992
      %v3129 = vpack.c.b16 %v3001, %v2993
      %v3130 = vpack.c.b16 %v3002, %v2994
      %v3131 = vpack.c.b16 %v3003, %v2995
      %3260 = vmatpush.bf16.msra.mxu0 %v3060
      %3261 = vmatpush.bf16.msra.mxu0 %v3052
      %3262 = vmatpush.bf16.msra.mxu0 %v3044
      %3263 = vmatpush.bf16.msra.mxu0 %v3036
      %3264 = vmatpush.bf16.msra.mxu0 %v3028
      %3265 = vmatpush.bf16.msra.mxu0 %v3020
      %3266 = vmatpush.bf16.msra.mxu0 %v3012
      %3267 = vmatpush.bf16.msra.mxu0 %v3004
      %3268 = vmatmul.bf16.gmra.mxu0 %v2473
      %v3269 = vpop.f32.mrf.mxu0
      %v3270 = vadd.f32 %v2604, %v3269
      %v3271 = vpop.f32.mrf.mxu0
      %v3272 = vadd.f32 %v2604, %v3271
      %3273 = vdwg.mxu0
      %3274 = vmatpush.bf16.msra.mxu0 %v3124
      %3275 = vmatpush.bf16.msra.mxu0 %v3116
      %3276 = vmatpush.bf16.msra.mxu0 %v3108
      %3277 = vmatpush.bf16.msra.mxu0 %v3100
      %3278 = vmatpush.bf16.msra.mxu0 %v3092
      %3279 = vmatpush.bf16.msra.mxu0 %v3084
      %3280 = vmatpush.bf16.msra.mxu0 %v3076
      %3281 = vmatpush.bf16.msra.mxu0 %v3068
      %3282 = vmatmul.bf16.gmra.mxu0 %v2474
      %v3283 = vpop.f32.mrf.mxu0
      %v3284 = vadd.f32 %v3270, %v3283
      %v3285 = vpop.f32.mrf.mxu0
      %v3286 = vadd.f32 %v3272, %v3285
      %3287 = vdwg.mxu0
      %3288 = vmatpush.bf16.msra.mxu0 %v3061
      %3289 = vmatpush.bf16.msra.mxu0 %v3053
      %3290 = vmatpush.bf16.msra.mxu0 %v3045
      %3291 = vmatpush.bf16.msra.mxu0 %v3037
      %3292 = vmatpush.bf16.msra.mxu0 %v3029
      %3293 = vmatpush.bf16.msra.mxu0 %v3021
      %3294 = vmatpush.bf16.msra.mxu0 %v3013
      %3295 = vmatpush.bf16.msra.mxu0 %v3005
      %3296 = vmatmul.bf16.gmra.mxu0 %v2473
      %v3297 = vpop.f32.mrf.mxu0
      %v3298 = vadd.f32 %v2605, %v3297
      %v3299 = vpop.f32.mrf.mxu0
      %v3300 = vadd.f32 %v2605, %v3299
      %3301 = vdwg.mxu0
      %3302 = vmatpush.bf16.msra.mxu0 %v3125
      %3303 = vmatpush.bf16.msra.mxu0 %v3117
      %3304 = vmatpush.bf16.msra.mxu0 %v3109
      %3305 = vmatpush.bf16.msra.mxu0 %v3101
      %3306 = vmatpush.bf16.msra.mxu0 %v3093
      %3307 = vmatpush.bf16.msra.mxu0 %v3085
      %3308 = vmatpush.bf16.msra.mxu0 %v3077
      %3309 = vmatpush.bf16.msra.mxu0 %v3069
      %3310 = vmatmul.bf16.gmra.mxu0 %v2474
      %v3311 = vpop.f32.mrf.mxu0
      %v3312 = vadd.f32 %v3298, %v3311
      %v3313 = vpop.f32.mrf.mxu0
      %v3314 = vadd.f32 %v3300, %v3313
      %3315 = vdwg.mxu0
      %3316 = vmatpush.bf16.msra.mxu0 %v3062
      %3317 = vmatpush.bf16.msra.mxu0 %v3054
      %3318 = vmatpush.bf16.msra.mxu0 %v3046
      %3319 = vmatpush.bf16.msra.mxu0 %v3038
      %3320 = vmatpush.bf16.msra.mxu0 %v3030
      %3321 = vmatpush.bf16.msra.mxu0 %v3022
      %3322 = vmatpush.bf16.msra.mxu0 %v3014
      %3323 = vmatpush.bf16.msra.mxu0 %v3006
      %3324 = vmatmul.bf16.gmra.mxu0 %v2473
      %v3325 = vpop.f32.mrf.mxu0
      %v3326 = vadd.f32 %v2606, %v3325
      %v3327 = vpop.f32.mrf.mxu0
      %v3328 = vadd.f32 %v2606, %v3327
      %3329 = vdwg.mxu0
      %3330 = vmatpush.bf16.msra.mxu0 %v3126
      %3331 = vmatpush.bf16.msra.mxu0 %v3118
      %3332 = vmatpush.bf16.msra.mxu0 %v3110
      %3333 = vmatpush.bf16.msra.mxu0 %v3102
      %3334 = vmatpush.bf16.msra.mxu0 %v3094
      %3335 = vmatpush.bf16.msra.mxu0 %v3086
      %3336 = vmatpush.bf16.msra.mxu0 %v3078
      %3337 = vmatpush.bf16.msra.mxu0 %v3070
      %3338 = vmatmul.bf16.gmra.mxu0 %v2474
      %v3339 = vpop.f32.mrf.mxu0
      %v3340 = vadd.f32 %v3326, %v3339
      %v3341 = vpop.f32.mrf.mxu0
      %v3342 = vadd.f32 %v3328, %v3341
      %3343 = vdwg.mxu0
      %3344 = vmatpush.bf16.msra.mxu0 %v3063
      %3345 = vmatpush.bf16.msra.mxu0 %v3055
      %3346 = vmatpush.bf16.msra.mxu0 %v3047
      %3347 = vmatpush.bf16.msra.mxu0 %v3039
      %3348 = vmatpush.bf16.msra.mxu0 %v3031
      %3349 = vmatpush.bf16.msra.mxu0 %v3023
      %3350 = vmatpush.bf16.msra.mxu0 %v3015
      %3351 = vmatpush.bf16.msra.mxu0 %v3007
      %3352 = vmatmul.bf16.gmra.mxu0 %v2473
      %v3353 = vpop.f32.mrf.mxu0
      %v3354 = vadd.f32 %v2607, %v3353
      %v3355 = vpop.f32.mrf.mxu0
      %v3356 = vadd.f32 %v2607, %v3355
      %3357 = vdwg.mxu0
      %3358 = vmatpush.bf16.msra.mxu0 %v3127
      %3359 = vmatpush.bf16.msra.mxu0 %v3119
      %3360 = vmatpush.bf16.msra.mxu0 %v3111
      %3361 = vmatpush.bf16.msra.mxu0 %v3103
      %3362 = vmatpush.bf16.msra.mxu0 %v3095
      %3363 = vmatpush.bf16.msra.mxu0 %v3087
      %3364 = vmatpush.bf16.msra.mxu0 %v3079
      %3365 = vmatpush.bf16.msra.mxu0 %v3071
      %3366 = vmatmul.bf16.gmra.mxu0 %v2474
      %v3367 = vpop.f32.mrf.mxu0
      %v3368 = vadd.f32 %v3354, %v3367
      %v3369 = vpop.f32.mrf.mxu0
      %v3370 = vadd.f32 %v3356, %v3369
      %3371 = vdwg.mxu0
      %3372 = vmatpush.bf16.msra.mxu0 %v3064
      %3373 = vmatpush.bf16.msra.mxu0 %v3056
      %3374 = vmatpush.bf16.msra.mxu0 %v3048
      %3375 = vmatpush.bf16.msra.mxu0 %v3040
      %3376 = vmatpush.bf16.msra.mxu0 %v3032
      %3377 = vmatpush.bf16.msra.mxu0 %v3024
      %3378 = vmatpush.bf16.msra.mxu0 %v3016
      %3379 = vmatpush.bf16.msra.mxu0 %v3008
      %3380 = vmatmul.bf16.gmra.mxu0 %v2473
      %v3381 = vpop.f32.mrf.mxu0
      %v3382 = vadd.f32 %v2608, %v3381
      %v3383 = vpop.f32.mrf.mxu0
      %v3384 = vadd.f32 %v2608, %v3383
      %3385 = vdwg.mxu0
      %3386 = vmatpush.bf16.msra.mxu0 %v3128
      %3387 = vmatpush.bf16.msra.mxu0 %v3120
      %3388 = vmatpush.bf16.msra.mxu0 %v3112
      %3389 = vmatpush.bf16.msra.mxu0 %v3104
      %3390 = vmatpush.bf16.msra.mxu0 %v3096
      %3391 = vmatpush.bf16.msra.mxu0 %v3088
      %3392 = vmatpush.bf16.msra.mxu0 %v3080
      %3393 = vmatpush.bf16.msra.mxu0 %v3072
      %3394 = vmatmul.bf16.gmra.mxu0 %v2474
      %v3395 = vpop.f32.mrf.mxu0
      %v3396 = vadd.f32 %v3382, %v3395
      %v3397 = vpop.f32.mrf.mxu0
      %v3398 = vadd.f32 %v3384, %v3397
      %3399 = vdwg.mxu0
      %3400 = vmatpush.bf16.msra.mxu0 %v3065
      %3401 = vmatpush.bf16.msra.mxu0 %v3057
      %3402 = vmatpush.bf16.msra.mxu0 %v3049
      %3403 = vmatpush.bf16.msra.mxu0 %v3041
      %3404 = vmatpush.bf16.msra.mxu0 %v3033
      %3405 = vmatpush.bf16.msra.mxu0 %v3025
      %3406 = vmatpush.bf16.msra.mxu0 %v3017
      %3407 = vmatpush.bf16.msra.mxu0 %v3009
      %3408 = vmatmul.bf16.gmra.mxu0 %v2473
      %v3409 = vpop.f32.mrf.mxu0
      %v3410 = vadd.f32 %v2609, %v3409
      %v3411 = vpop.f32.mrf.mxu0
      %v3412 = vadd.f32 %v2609, %v3411
      %3413 = vdwg.mxu0
      %3414 = vmatpush.bf16.msra.mxu0 %v3129
      %3415 = vmatpush.bf16.msra.mxu0 %v3121
      %3416 = vmatpush.bf16.msra.mxu0 %v3113
      %3417 = vmatpush.bf16.msra.mxu0 %v3105
      %3418 = vmatpush.bf16.msra.mxu0 %v3097
      %3419 = vmatpush.bf16.msra.mxu0 %v3089
      %3420 = vmatpush.bf16.msra.mxu0 %v3081
      %3421 = vmatpush.bf16.msra.mxu0 %v3073
      %3422 = vmatmul.bf16.gmra.mxu0 %v2474
      %v3423 = vpop.f32.mrf.mxu0
      %v3424 = vadd.f32 %v3410, %v3423
      %v3425 = vpop.f32.mrf.mxu0
      %v3426 = vadd.f32 %v3412, %v3425
      %3427 = vdwg.mxu0
      %3428 = vmatpush.bf16.msra.mxu0 %v3066
      %3429 = vmatpush.bf16.msra.mxu0 %v3058
      %3430 = vmatpush.bf16.msra.mxu0 %v3050
      %3431 = vmatpush.bf16.msra.mxu0 %v3042
      %3432 = vmatpush.bf16.msra.mxu0 %v3034
      %3433 = vmatpush.bf16.msra.mxu0 %v3026
      %3434 = vmatpush.bf16.msra.mxu0 %v3018
      %3435 = vmatpush.bf16.msra.mxu0 %v3010
      %3436 = vmatmul.bf16.gmra.mxu0 %v2473
      %v3437 = vpop.f32.mrf.mxu0
      %v3438 = vadd.f32 %v2610, %v3437
      %v3439 = vpop.f32.mrf.mxu0
      %v3440 = vadd.f32 %v2610, %v3439
      %3441 = vdwg.mxu0
      %3442 = vmatpush.bf16.msra.mxu0 %v3130
      %3443 = vmatpush.bf16.msra.mxu0 %v3122
      %3444 = vmatpush.bf16.msra.mxu0 %v3114
      %3445 = vmatpush.bf16.msra.mxu0 %v3106
      %3446 = vmatpush.bf16.msra.mxu0 %v3098
      %3447 = vmatpush.bf16.msra.mxu0 %v3090
      %3448 = vmatpush.bf16.msra.mxu0 %v3082
      %3449 = vmatpush.bf16.msra.mxu0 %v3074
      %3450 = vmatmul.bf16.gmra.mxu0 %v2474
      %v3451 = vpop.f32.mrf.mxu0
      %v3452 = vadd.f32 %v3438, %v3451
      %v3453 = vpop.f32.mrf.mxu0
      %v3454 = vadd.f32 %v3440, %v3453
      %3455 = vdwg.mxu0
      %3456 = vmatpush.bf16.msra.mxu0 %v3067
      %3457 = vmatpush.bf16.msra.mxu0 %v3059
      %3458 = vmatpush.bf16.msra.mxu0 %v3051
      %3459 = vmatpush.bf16.msra.mxu0 %v3043
      %3460 = vmatpush.bf16.msra.mxu0 %v3035
      %3461 = vmatpush.bf16.msra.mxu0 %v3027
      %3462 = vmatpush.bf16.msra.mxu0 %v3019
      %3463 = vmatpush.bf16.msra.mxu0 %v3011
      %3464 = vmatmul.bf16.gmra.mxu0 %v2473
      %v3465 = vpop.f32.mrf.mxu0
      %v3466 = vadd.f32 %v2611, %v3465
      %v3467 = vpop.f32.mrf.mxu0
      %v3468 = vadd.f32 %v2611, %v3467
      %3469 = vdwg.mxu0
      %3470 = vmatpush.bf16.msra.mxu0 %v3131
      %3471 = vmatpush.bf16.msra.mxu0 %v3123
      %3472 = vmatpush.bf16.msra.mxu0 %v3115
      %3473 = vmatpush.bf16.msra.mxu0 %v3107
      %3474 = vmatpush.bf16.msra.mxu0 %v3099
      %3475 = vmatpush.bf16.msra.mxu0 %v3091
      %3476 = vmatpush.bf16.msra.mxu0 %v3083
      %3477 = vmatpush.bf16.msra.mxu0 %v3075
      %3478 = vmatmul.bf16.gmra.mxu0 %v2474
      %v3479 = vpop.f32.mrf.mxu0
      %v3480 = vadd.f32 %v3466, %v3479
      %v3481 = vpop.f32.mrf.mxu0
      %v3482 = vadd.f32 %v3468, %v3481
      %3483 = vdwg.mxu0
      %v3484 = vmul.f32 %v3284, 0.5
      %v3485 = vmul.f32 %v3312, 0.5
      %v3486 = vmul.f32 %v3340, 0.5
      %v3487 = vmul.f32 %v3368, 0.5
      %v3488 = vmul.f32 %v3396, 0.5
      %v3489 = vmul.f32 %v3424, 0.5
      %v3490 = vmul.f32 %v3452, 0.5
      %v3491 = vmul.f32 %v3480, 0.5
      %v3492 = vmul.f32 %v3286, 0.5
      %v3493 = vmul.f32 %v3314, 0.5
      %v3494 = vmul.f32 %v3342, 0.5
      %v3495 = vmul.f32 %v3370, 0.5
      %v3496 = vmul.f32 %v3398, 0.5
      %v3497 = vmul.f32 %v3426, 0.5
      %v3498 = vmul.f32 %v3454, 0.5
      %v3499 = vmul.f32 %v3482, 0.5
      %v3500 = vmul.f32 %v3284, 0.044715
      %v3501 = vmul.f32 %v3312, 0.044715
      %v3502 = vmul.f32 %v3340, 0.044715
      %v3503 = vmul.f32 %v3368, 0.044715
      %v3504 = vmul.f32 %v3396, 0.044715
      %v3505 = vmul.f32 %v3424, 0.044715
      %v3506 = vmul.f32 %v3452, 0.044715
      %v3507 = vmul.f32 %v3480, 0.044715
      %v3508 = vmul.f32 %v3286, 0.044715
      %v3509 = vmul.f32 %v3314, 0.044715
      %v3510 = vmul.f32 %v3342, 0.044715
      %v3511 = vmul.f32 %v3370, 0.044715
      %v3512 = vmul.f32 %v3398, 0.044715
      %v3513 = vmul.f32 %v3426, 0.044715
      %v3514 = vmul.f32 %v3454, 0.044715
      %v3515 = vmul.f32 %v3482, 0.044715
      %v3516 = vmul.f32 %v3500, %v3284
      %v3517 = vmul.f32 %v3501, %v3312
      %v3518 = vmul.f32 %v3502, %v3340
      %v3519 = vmul.f32 %v3503, %v3368
      %v3520 = vmul.f32 %v3504, %v3396
      %v3521 = vmul.f32 %v3505, %v3424
      %v3522 = vmul.f32 %v3506, %v3452
      %v3523 = vmul.f32 %v3507, %v3480
      %v3524 = vmul.f32 %v3508, %v3286
      %v3525 = vmul.f32 %v3509, %v3314
      %v3526 = vmul.f32 %v3510, %v3342
      %v3527 = vmul.f32 %v3511, %v3370
      %v3528 = vmul.f32 %v3512, %v3398
      %v3529 = vmul.f32 %v3513, %v3426
      %v3530 = vmul.f32 %v3514, %v3454
      %v3531 = vmul.f32 %v3515, %v3482
      %v3532 = vmul.f32 %v3516, %v3284
      %v3533 = vmul.f32 %v3517, %v3312
      %v3534 = vmul.f32 %v3518, %v3340
      %v3535 = vmul.f32 %v3519, %v3368
      %v3536 = vmul.f32 %v3520, %v3396
      %v3537 = vmul.f32 %v3521, %v3424
      %v3538 = vmul.f32 %v3522, %v3452
      %v3539 = vmul.f32 %v3523, %v3480
      %v3540 = vmul.f32 %v3524, %v3286
      %v3541 = vmul.f32 %v3525, %v3314
      %v3542 = vmul.f32 %v3526, %v3342
      %v3543 = vmul.f32 %v3527, %v3370
      %v3544 = vmul.f32 %v3528, %v3398
      %v3545 = vmul.f32 %v3529, %v3426
      %v3546 = vmul.f32 %v3530, %v3454
      %v3547 = vmul.f32 %v3531, %v3482
      %v3548 = vadd.f32 %v3284, %v3532
      %v3549 = vadd.f32 %v3312, %v3533
      %v3550 = vadd.f32 %v3340, %v3534
      %v3551 = vadd.f32 %v3368, %v3535
      %v3552 = vadd.f32 %v3396, %v3536
      %v3553 = vadd.f32 %v3424, %v3537
      %v3554 = vadd.f32 %v3452, %v3538
      %v3555 = vadd.f32 %v3480, %v3539
      %v3556 = vadd.f32 %v3286, %v3540
      %v3557 = vadd.f32 %v3314, %v3541
      %v3558 = vadd.f32 %v3342, %v3542
      %v3559 = vadd.f32 %v3370, %v3543
      %v3560 = vadd.f32 %v3398, %v3544
      %v3561 = vadd.f32 %v3426, %v3545
      %v3562 = vadd.f32 %v3454, %v3546
      %v3563 = vadd.f32 %v3482, %v3547
      %v3564 = vmul.f32 %v3548, 0.7978846
      %v3565 = vmul.f32 %v3549, 0.7978846
      %v3566 = vmul.f32 %v3550, 0.7978846
      %v3567 = vmul.f32 %v3551, 0.7978846
      %v3568 = vmul.f32 %v3552, 0.7978846
      %v3569 = vmul.f32 %v3553, 0.7978846
      %v3570 = vmul.f32 %v3554, 0.7978846
      %v3571 = vmul.f32 %v3555, 0.7978846
      %v3572 = vmul.f32 %v3556, 0.7978846
      %v3573 = vmul.f32 %v3557, 0.7978846
      %v3574 = vmul.f32 %v3558, 0.7978846
      %v3575 = vmul.f32 %v3559, 0.7978846
      %v3576 = vmul.f32 %v3560, 0.7978846
      %v3577 = vmul.f32 %v3561, 0.7978846
      %v3578 = vmul.f32 %v3562, 0.7978846
      %v3579 = vmul.f32 %v3563, 0.7978846
      %v3580 = vtanh.pop %v3564
      %v3581 = vtanh.pop %v3565
      %v3582 = vtanh.pop %v3566
      %v3583 = vtanh.pop %v3567
      %v3584 = vtanh.pop %v3568
      %v3585 = vtanh.pop %v3569
      %v3586 = vtanh.pop %v3570
      %v3587 = vtanh.pop %v3571
      %v3588 = vtanh.pop %v3572
      %v3589 = vtanh.pop %v3573
      %v3590 = vtanh.pop %v3574
      %v3591 = vtanh.pop %v3575
      %v3592 = vtanh.pop %v3576
      %v3593 = vtanh.pop %v3577
      %v3594 = vtanh.pop %v3578
      %v3595 = vtanh.pop %v3579
      %v3596 = vadd.f32 %v3580, 1.0
      %v3597 = vadd.f32 %v3581, 1.0
      %v3598 = vadd.f32 %v3582, 1.0
      %v3599 = vadd.f32 %v3583, 1.0
      %v3600 = vadd.f32 %v3584, 1.0
      %v3601 = vadd.f32 %v3585, 1.0
      %v3602 = vadd.f32 %v3586, 1.0
      %v3603 = vadd.f32 %v3587, 1.0
      %v3604 = vadd.f32 %v3588, 1.0
      %v3605 = vadd.f32 %v3589, 1.0
      %v3606 = vadd.f32 %v3590, 1.0
      %v3607 = vadd.f32 %v3591, 1.0
      %v3608 = vadd.f32 %v3592, 1.0
      %v3609 = vadd.f32 %v3593, 1.0
      %v3610 = vadd.f32 %v3594, 1.0
      %v3611 = vadd.f32 %v3595, 1.0
      %v3612 = vmul.f32 %v3484, %v3596
      %v3613 = vmul.f32 %v3485, %v3597
      %v3614 = vmul.f32 %v3486, %v3598
      %v3615 = vmul.f32 %v3487, %v3599
      %v3616 = vmul.f32 %v3488, %v3600
      %v3617 = vmul.f32 %v3489, %v3601
      %v3618 = vmul.f32 %v3490, %v3602
      %v3619 = vmul.f32 %v3491, %v3603
      %v3620 = vmul.f32 %v3492, %v3604
      %v3621 = vmul.f32 %v3493, %v3605
      %v3622 = vmul.f32 %v3494, %v3606
      %v3623 = vmul.f32 %v3495, %v3607
      %v3624 = vmul.f32 %v3496, %v3608
      %v3625 = vmul.f32 %v3497, %v3609
      %v3626 = vmul.f32 %v3498, %v3610
      %v3627 = vmul.f32 %v3499, %v3611
      %v3628 = vpack.c.bf16 %v3620, %v3612
      %v3629 = vpack.c.bf16 %v3621, %v3613
      %v3630 = vpack.c.bf16 %v3622, %v3614
      %v3631 = vpack.c.bf16 %v3623, %v3615
      %v3632 = vpack.c.bf16 %v3624, %v3616
      %v3633 = vpack.c.bf16 %v3625, %v3617
      %v3634 = vpack.c.bf16 %v3626, %v3618
      %v3635 = vpack.c.bf16 %v3627, %v3619
      %v3636 = vld [vmem:[%s344] sm:$0xff]
      %v3637 = vld [vmem:[%s344 + $0x8] sm:$0xff]
      %v3638 = vld [vmem:[%s344 + $0x10] sm:$0xff]
      %v3639 = vld [vmem:[%s344 + $0x18] sm:$0xff]
      %v3640 = vld [vmem:[%s344 + $0x20] sm:$0xff]
      %v3641 = vld [vmem:[%s344 + $0x28] sm:$0xff]
      %v3642 = vld [vmem:[%s344 + $0x30] sm:$0xff]
      %v3643 = vld [vmem:[%s344 + $0x38] sm:$0xff]
      %v3644 = vld [vmem:[%s344 + $0x40] sm:$0xff]
      %v3645 = vld [vmem:[%s344 + $0x48] sm:$0xff]
      %v3646 = vld [vmem:[%s344 + $0x50] sm:$0xff]
      %v3647 = vld [vmem:[%s344 + $0x58] sm:$0xff]
      %v3648 = vld [vmem:[%s344 + $0x60] sm:$0xff]
      %v3649 = vld [vmem:[%s344 + $0x68] sm:$0xff]
      %v3650 = vld [vmem:[%s344 + $0x70] sm:$0xff]
      %v3651 = vld [vmem:[%s344 + $0x78] sm:$0xff]
      %v3652 = vld [vmem:[%s344 + $0x80] sm:$0xff]
      %v3653 = vld [vmem:[%s344 + $0x88] sm:$0xff]
      %v3654 = vld [vmem:[%s344 + $0x90] sm:$0xff]
      %v3655 = vld [vmem:[%s344 + $0x98] sm:$0xff]
      %v3656 = vld [vmem:[%s344 + $0xa0] sm:$0xff]
      %v3657 = vld [vmem:[%s344 + $0xa8] sm:$0xff]
      %v3658 = vld [vmem:[%s344 + $0xb0] sm:$0xff]
      %v3659 = vld [vmem:[%s344 + $0xb8] sm:$0xff]
      %v3660 = vld [vmem:[%s344 + $0xc0] sm:$0xff]
      %v3661 = vld [vmem:[%s344 + $0xc8] sm:$0xff]
      %v3662 = vld [vmem:[%s344 + $0xd0] sm:$0xff]
      %v3663 = vld [vmem:[%s344 + $0xd8] sm:$0xff]
      %v3664 = vld [vmem:[%s344 + $0xe0] sm:$0xff]
      %v3665 = vld [vmem:[%s344 + $0xe8] sm:$0xff]
      %v3666 = vld [vmem:[%s344 + $0xf0] sm:$0xff]
      %v3667 = vld [vmem:[%s344 + $0xf8] sm:$0xff]
      %v3668 = vld [vmem:[%s344 + $0x100] sm:$0xff]
      %v3669 = vld [vmem:[%s344 + $0x108] sm:$0xff]
      %v3670 = vld [vmem:[%s344 + $0x110] sm:$0xff]
      %v3671 = vld [vmem:[%s344 + $0x118] sm:$0xff]
      %v3672 = vld [vmem:[%s344 + $0x120] sm:$0xff]
      %v3673 = vld [vmem:[%s344 + $0x128] sm:$0xff]
      %v3674 = vld [vmem:[%s344 + $0x130] sm:$0xff]
      %v3675 = vld [vmem:[%s344 + $0x138] sm:$0xff]
      %v3676 = vld [vmem:[%s344 + $0x140] sm:$0xff]
      %v3677 = vld [vmem:[%s344 + $0x148] sm:$0xff]
      %v3678 = vld [vmem:[%s344 + $0x150] sm:$0xff]
      %v3679 = vld [vmem:[%s344 + $0x158] sm:$0xff]
      %v3680 = vld [vmem:[%s344 + $0x160] sm:$0xff]
      %v3681 = vld [vmem:[%s344 + $0x168] sm:$0xff]
      %v3682 = vld [vmem:[%s344 + $0x170] sm:$0xff]
      %v3683 = vld [vmem:[%s344 + $0x178] sm:$0xff]
      %v3684 = vld [vmem:[%s344 + $0x180] sm:$0xff]
      %v3685 = vld [vmem:[%s344 + $0x188] sm:$0xff]
      %v3686 = vld [vmem:[%s344 + $0x190] sm:$0xff]
      %v3687 = vld [vmem:[%s344 + $0x198] sm:$0xff]
      %v3688 = vld [vmem:[%s344 + $0x1a0] sm:$0xff]
      %v3689 = vld [vmem:[%s344 + $0x1a8] sm:$0xff]
      %v3690 = vld [vmem:[%s344 + $0x1b0] sm:$0xff]
      %v3691 = vld [vmem:[%s344 + $0x1b8] sm:$0xff]
      %v3692 = vld [vmem:[%s344 + $0x1c0] sm:$0xff]
      %v3693 = vld [vmem:[%s344 + $0x1c8] sm:$0xff]
      %v3694 = vld [vmem:[%s344 + $0x1d0] sm:$0xff]
      %v3695 = vld [vmem:[%s344 + $0x1d8] sm:$0xff]
      %v3696 = vld [vmem:[%s344 + $0x1e0] sm:$0xff]
      %v3697 = vld [vmem:[%s344 + $0x1e8] sm:$0xff]
      %v3698 = vld [vmem:[%s344 + $0x1f0] sm:$0xff]
      %v3699 = vld [vmem:[%s344 + $0x1f8] sm:$0xff]
      %v3700 = vld [vmem:[%s344 + $0x200] sm:$0xff]
      %v3701 = vld [vmem:[%s344 + $0x208] sm:$0xff]
      %v3702 = vld [vmem:[%s344 + $0x210] sm:$0xff]
      %v3703 = vld [vmem:[%s344 + $0x218] sm:$0xff]
      %v3704 = vld [vmem:[%s344 + $0x220] sm:$0xff]
      %v3705 = vld [vmem:[%s344 + $0x228] sm:$0xff]
      %v3706 = vld [vmem:[%s344 + $0x230] sm:$0xff]
      %v3707 = vld [vmem:[%s344 + $0x238] sm:$0xff]
      %v3708 = vld [vmem:[%s344 + $0x240] sm:$0xff]
      %v3709 = vld [vmem:[%s344 + $0x248] sm:$0xff]
      %v3710 = vld [vmem:[%s344 + $0x250] sm:$0xff]
      %v3711 = vld [vmem:[%s344 + $0x258] sm:$0xff]
      %v3712 = vld [vmem:[%s344 + $0x260] sm:$0xff]
      %v3713 = vld [vmem:[%s344 + $0x268] sm:$0xff]
      %v3714 = vld [vmem:[%s344 + $0x270] sm:$0xff]
      %v3715 = vld [vmem:[%s344 + $0x278] sm:$0xff]
      %v3716 = vld [vmem:[%s344 + $0x280] sm:$0xff]
      %v3717 = vld [vmem:[%s344 + $0x288] sm:$0xff]
      %v3718 = vld [vmem:[%s344 + $0x290] sm:$0xff]
      %v3719 = vld [vmem:[%s344 + $0x298] sm:$0xff]
      %v3720 = vld [vmem:[%s344 + $0x2a0] sm:$0xff]
      %v3721 = vld [vmem:[%s344 + $0x2a8] sm:$0xff]
      %v3722 = vld [vmem:[%s344 + $0x2b0] sm:$0xff]
      %v3723 = vld [vmem:[%s344 + $0x2b8] sm:$0xff]
      %v3724 = vld [vmem:[%s344 + $0x2c0] sm:$0xff]
      %v3725 = vld [vmem:[%s344 + $0x2c8] sm:$0xff]
      %v3726 = vld [vmem:[%s344 + $0x2d0] sm:$0xff]
      %v3727 = vld [vmem:[%s344 + $0x2d8] sm:$0xff]
      %v3728 = vld [vmem:[%s344 + $0x2e0] sm:$0xff]
      %v3729 = vld [vmem:[%s344 + $0x2e8] sm:$0xff]
      %v3730 = vld [vmem:[%s344 + $0x2f0] sm:$0xff]
      %v3731 = vld [vmem:[%s344 + $0x2f8] sm:$0xff]
      %v3732 = vld [vmem:[%s344 + $0x300] sm:$0xff]
      %v3733 = vld [vmem:[%s344 + $0x308] sm:$0xff]
      %v3734 = vld [vmem:[%s344 + $0x310] sm:$0xff]
      %v3735 = vld [vmem:[%s344 + $0x318] sm:$0xff]
      %v3736 = vld [vmem:[%s344 + $0x320] sm:$0xff]
      %v3737 = vld [vmem:[%s344 + $0x328] sm:$0xff]
      %v3738 = vld [vmem:[%s344 + $0x330] sm:$0xff]
      %v3739 = vld [vmem:[%s344 + $0x338] sm:$0xff]
      %v3740 = vld [vmem:[%s344 + $0x340] sm:$0xff]
      %v3741 = vld [vmem:[%s344 + $0x348] sm:$0xff]
      %v3742 = vld [vmem:[%s344 + $0x350] sm:$0xff]
      %v3743 = vld [vmem:[%s344 + $0x358] sm:$0xff]
      %v3744 = vld [vmem:[%s344 + $0x360] sm:$0xff]
      %v3745 = vld [vmem:[%s344 + $0x368] sm:$0xff]
      %v3746 = vld [vmem:[%s344 + $0x370] sm:$0xff]
      %v3747 = vld [vmem:[%s344 + $0x378] sm:$0xff]
      %v3748 = vld [vmem:[%s344 + $0x380] sm:$0xff]
      %v3749 = vld [vmem:[%s344 + $0x388] sm:$0xff]
      %v3750 = vld [vmem:[%s344 + $0x390] sm:$0xff]
      %v3751 = vld [vmem:[%s344 + $0x398] sm:$0xff]
      %v3752 = vld [vmem:[%s344 + $0x3a0] sm:$0xff]
      %v3753 = vld [vmem:[%s344 + $0x3a8] sm:$0xff]
      %v3754 = vld [vmem:[%s344 + $0x3b0] sm:$0xff]
      %v3755 = vld [vmem:[%s344 + $0x3b8] sm:$0xff]
      %v3756 = vld [vmem:[%s344 + $0x3c0] sm:$0xff]
      %v3757 = vld [vmem:[%s344 + $0x3c8] sm:$0xff]
      %v3758 = vld [vmem:[%s344 + $0x3d0] sm:$0xff]
      %v3759 = vld [vmem:[%s344 + $0x3d8] sm:$0xff]
      %v3760 = vld [vmem:[%s344 + $0x3e0] sm:$0xff]
      %v3761 = vld [vmem:[%s344 + $0x3e8] sm:$0xff]
      %v3762 = vld [vmem:[%s344 + $0x3f0] sm:$0xff]
      %v3763 = vld [vmem:[%s344 + $0x3f8] sm:$0xff]
      %v3765 = vperm.slane %v1172, 0
      %v3766 = vperm.slane %v1172, 1
      %v3897 = vunpack.c.l.b16 %v3636
      %v3898 = vunpack.c.h.b16 %v3636
      %v3899 = vunpack.c.l.b16 %v3637
      %v3900 = vunpack.c.h.b16 %v3637
      %v3901 = vunpack.c.l.b16 %v3638
      %v3902 = vunpack.c.h.b16 %v3638
      %v3903 = vunpack.c.l.b16 %v3639
      %v3904 = vunpack.c.h.b16 %v3639
      %v3905 = vunpack.c.l.b16 %v3640
      %v3906 = vunpack.c.h.b16 %v3640
      %v3907 = vunpack.c.l.b16 %v3641
      %v3908 = vunpack.c.h.b16 %v3641
      %v3909 = vunpack.c.l.b16 %v3642
      %v3910 = vunpack.c.h.b16 %v3642
      %v3911 = vunpack.c.l.b16 %v3643
      %v3912 = vunpack.c.h.b16 %v3643
      %v3913 = vunpack.c.l.b16 %v3644
      %v3914 = vunpack.c.h.b16 %v3644
      %v3915 = vunpack.c.l.b16 %v3645
      %v3916 = vunpack.c.h.b16 %v3645
      %v3917 = vunpack.c.l.b16 %v3646
      %v3918 = vunpack.c.h.b16 %v3646
      %v3919 = vunpack.c.l.b16 %v3647
      %v3920 = vunpack.c.h.b16 %v3647
      %v3921 = vunpack.c.l.b16 %v3648
      %v3922 = vunpack.c.h.b16 %v3648
      %v3923 = vunpack.c.l.b16 %v3649
      %v3924 = vunpack.c.h.b16 %v3649
      %v3925 = vunpack.c.l.b16 %v3650
      %v3926 = vunpack.c.h.b16 %v3650
      %v3927 = vunpack.c.l.b16 %v3651
      %v3928 = vunpack.c.h.b16 %v3651
      %v3929 = vunpack.c.l.b16 %v3652
      %v3930 = vunpack.c.h.b16 %v3652
      %v3931 = vunpack.c.l.b16 %v3653
      %v3932 = vunpack.c.h.b16 %v3653
      %v3933 = vunpack.c.l.b16 %v3654
      %v3934 = vunpack.c.h.b16 %v3654
      %v3935 = vunpack.c.l.b16 %v3655
      %v3936 = vunpack.c.h.b16 %v3655
      %v3937 = vunpack.c.l.b16 %v3656
      %v3938 = vunpack.c.h.b16 %v3656
      %v3939 = vunpack.c.l.b16 %v3657
      %v3940 = vunpack.c.h.b16 %v3657
      %v3941 = vunpack.c.l.b16 %v3658
      %v3942 = vunpack.c.h.b16 %v3658
      %v3943 = vunpack.c.l.b16 %v3659
      %v3944 = vunpack.c.h.b16 %v3659
      %v3945 = vunpack.c.l.b16 %v3660
      %v3946 = vunpack.c.h.b16 %v3660
      %v3947 = vunpack.c.l.b16 %v3661
      %v3948 = vunpack.c.h.b16 %v3661
      %v3949 = vunpack.c.l.b16 %v3662
      %v3950 = vunpack.c.h.b16 %v3662
      %v3951 = vunpack.c.l.b16 %v3663
      %v3952 = vunpack.c.h.b16 %v3663
      %v3953 = vunpack.c.l.b16 %v3664
      %v3954 = vunpack.c.h.b16 %v3664
      %v3955 = vunpack.c.l.b16 %v3665
      %v3956 = vunpack.c.h.b16 %v3665
      %v3957 = vunpack.c.l.b16 %v3666
      %v3958 = vunpack.c.h.b16 %v3666
      %v3959 = vunpack.c.l.b16 %v3667
      %v3960 = vunpack.c.h.b16 %v3667
      %v3961 = vunpack.c.l.b16 %v3668
      %v3962 = vunpack.c.h.b16 %v3668
      %v3963 = vunpack.c.l.b16 %v3669
      %v3964 = vunpack.c.h.b16 %v3669
      %v3965 = vunpack.c.l.b16 %v3670
      %v3966 = vunpack.c.h.b16 %v3670
      %v3967 = vunpack.c.l.b16 %v3671
      %v3968 = vunpack.c.h.b16 %v3671
      %v3969 = vunpack.c.l.b16 %v3672
      %v3970 = vunpack.c.h.b16 %v3672
      %v3971 = vunpack.c.l.b16 %v3673
      %v3972 = vunpack.c.h.b16 %v3673
      %v3973 = vunpack.c.l.b16 %v3674
      %v3974 = vunpack.c.h.b16 %v3674
      %v3975 = vunpack.c.l.b16 %v3675
      %v3976 = vunpack.c.h.b16 %v3675
      %v3977 = vunpack.c.l.b16 %v3676
      %v3978 = vunpack.c.h.b16 %v3676
      %v3979 = vunpack.c.l.b16 %v3677
      %v3980 = vunpack.c.h.b16 %v3677
      %v3981 = vunpack.c.l.b16 %v3678
      %v3982 = vunpack.c.h.b16 %v3678
      %v3983 = vunpack.c.l.b16 %v3679
      %v3984 = vunpack.c.h.b16 %v3679
      %v3985 = vunpack.c.l.b16 %v3680
      %v3986 = vunpack.c.h.b16 %v3680
      %v3987 = vunpack.c.l.b16 %v3681
      %v3988 = vunpack.c.h.b16 %v3681
      %v3989 = vunpack.c.l.b16 %v3682
      %v3990 = vunpack.c.h.b16 %v3682
      %v3991 = vunpack.c.l.b16 %v3683
      %v3992 = vunpack.c.h.b16 %v3683
      %v3993 = vunpack.c.l.b16 %v3684
      %v3994 = vunpack.c.h.b16 %v3684
      %v3995 = vunpack.c.l.b16 %v3685
      %v3996 = vunpack.c.h.b16 %v3685
      %v3997 = vunpack.c.l.b16 %v3686
      %v3998 = vunpack.c.h.b16 %v3686
      %v3999 = vunpack.c.l.b16 %v3687
      %v4000 = vunpack.c.h.b16 %v3687
      %v4001 = vunpack.c.l.b16 %v3688
      %v4002 = vunpack.c.h.b16 %v3688
      %v4003 = vunpack.c.l.b16 %v3689
      %v4004 = vunpack.c.h.b16 %v3689
      %v4005 = vunpack.c.l.b16 %v3690
      %v4006 = vunpack.c.h.b16 %v3690
      %v4007 = vunpack.c.l.b16 %v3691
      %v4008 = vunpack.c.h.b16 %v3691
      %v4009 = vunpack.c.l.b16 %v3692
      %v4010 = vunpack.c.h.b16 %v3692
      %v4011 = vunpack.c.l.b16 %v3693
      %v4012 = vunpack.c.h.b16 %v3693
      %v4013 = vunpack.c.l.b16 %v3694
      %v4014 = vunpack.c.h.b16 %v3694
      %v4015 = vunpack.c.l.b16 %v3695
      %v4016 = vunpack.c.h.b16 %v3695
      %v4017 = vunpack.c.l.b16 %v3696
      %v4018 = vunpack.c.h.b16 %v3696
      %v4019 = vunpack.c.l.b16 %v3697
      %v4020 = vunpack.c.h.b16 %v3697
      %v4021 = vunpack.c.l.b16 %v3698
      %v4022 = vunpack.c.h.b16 %v3698
      %v4023 = vunpack.c.l.b16 %v3699
      %v4024 = vunpack.c.h.b16 %v3699
      %v4025 = vunpack.c.l.b16 %v3700
      %v4026 = vunpack.c.h.b16 %v3700
      %v4027 = vunpack.c.l.b16 %v3701
      %v4028 = vunpack.c.h.b16 %v3701
      %v4029 = vunpack.c.l.b16 %v3702
      %v4030 = vunpack.c.h.b16 %v3702
      %v4031 = vunpack.c.l.b16 %v3703
      %v4032 = vunpack.c.h.b16 %v3703
      %v4033 = vunpack.c.l.b16 %v3704
      %v4034 = vunpack.c.h.b16 %v3704
      %v4035 = vunpack.c.l.b16 %v3705
      %v4036 = vunpack.c.h.b16 %v3705
      %v4037 = vunpack.c.l.b16 %v3706
      %v4038 = vunpack.c.h.b16 %v3706
      %v4039 = vunpack.c.l.b16 %v3707
      %v4040 = vunpack.c.h.b16 %v3707
      %v4041 = vunpack.c.l.b16 %v3708
      %v4042 = vunpack.c.h.b16 %v3708
      %v4043 = vunpack.c.l.b16 %v3709
      %v4044 = vunpack.c.h.b16 %v3709
      %v4045 = vunpack.c.l.b16 %v3710
      %v4046 = vunpack.c.h.b16 %v3710
      %v4047 = vunpack.c.l.b16 %v3711
      %v4048 = vunpack.c.h.b16 %v3711
      %v4049 = vunpack.c.l.b16 %v3712
      %v4050 = vunpack.c.h.b16 %v3712
      %v4051 = vunpack.c.l.b16 %v3713
      %v4052 = vunpack.c.h.b16 %v3713
      %v4053 = vunpack.c.l.b16 %v3714
      %v4054 = vunpack.c.h.b16 %v3714
      %v4055 = vunpack.c.l.b16 %v3715
      %v4056 = vunpack.c.h.b16 %v3715
      %v4057 = vunpack.c.l.b16 %v3716
      %v4058 = vunpack.c.h.b16 %v3716
      %v4059 = vunpack.c.l.b16 %v3717
      %v4060 = vunpack.c.h.b16 %v3717
      %v4061 = vunpack.c.l.b16 %v3718
      %v4062 = vunpack.c.h.b16 %v3718
      %v4063 = vunpack.c.l.b16 %v3719
      %v4064 = vunpack.c.h.b16 %v3719
      %v4065 = vunpack.c.l.b16 %v3720
      %v4066 = vunpack.c.h.b16 %v3720
      %v4067 = vunpack.c.l.b16 %v3721
      %v4068 = vunpack.c.h.b16 %v3721
      %v4069 = vunpack.c.l.b16 %v3722
      %v4070 = vunpack.c.h.b16 %v3722
      %v4071 = vunpack.c.l.b16 %v3723
      %v4072 = vunpack.c.h.b16 %v3723
      %v4073 = vunpack.c.l.b16 %v3724
      %v4074 = vunpack.c.h.b16 %v3724
      %v4075 = vunpack.c.l.b16 %v3725
      %v4076 = vunpack.c.h.b16 %v3725
      %v4077 = vunpack.c.l.b16 %v3726
      %v4078 = vunpack.c.h.b16 %v3726
      %v4079 = vunpack.c.l.b16 %v3727
      %v4080 = vunpack.c.h.b16 %v3727
      %v4081 = vunpack.c.l.b16 %v3728
      %v4082 = vunpack.c.h.b16 %v3728
      %v4083 = vunpack.c.l.b16 %v3729
      %v4084 = vunpack.c.h.b16 %v3729
      %v4085 = vunpack.c.l.b16 %v3730
      %v4086 = vunpack.c.h.b16 %v3730
      %v4087 = vunpack.c.l.b16 %v3731
      %v4088 = vunpack.c.h.b16 %v3731
      %v4089 = vunpack.c.l.b16 %v3732
      %v4090 = vunpack.c.h.b16 %v3732
      %v4091 = vunpack.c.l.b16 %v3733
      %v4092 = vunpack.c.h.b16 %v3733
      %v4093 = vunpack.c.l.b16 %v3734
      %v4094 = vunpack.c.h.b16 %v3734
      %v4095 = vunpack.c.l.b16 %v3735
      %v4096 = vunpack.c.h.b16 %v3735
      %v4097 = vunpack.c.l.b16 %v3736
      %v4098 = vunpack.c.h.b16 %v3736
      %v4099 = vunpack.c.l.b16 %v3737
      %v4100 = vunpack.c.h.b16 %v3737
      %v4101 = vunpack.c.l.b16 %v3738
      %v4102 = vunpack.c.h.b16 %v3738
      %v4103 = vunpack.c.l.b16 %v3739
      %v4104 = vunpack.c.h.b16 %v3739
      %v4105 = vunpack.c.l.b16 %v3740
      %v4106 = vunpack.c.h.b16 %v3740
      %v4107 = vunpack.c.l.b16 %v3741
      %v4108 = vunpack.c.h.b16 %v3741
      %v4109 = vunpack.c.l.b16 %v3742
      %v4110 = vunpack.c.h.b16 %v3742
      %v4111 = vunpack.c.l.b16 %v3743
      %v4112 = vunpack.c.h.b16 %v3743
      %v4113 = vunpack.c.l.b16 %v3744
      %v4114 = vunpack.c.h.b16 %v3744
      %v4115 = vunpack.c.l.b16 %v3745
      %v4116 = vunpack.c.h.b16 %v3745
      %v4117 = vunpack.c.l.b16 %v3746
      %v4118 = vunpack.c.h.b16 %v3746
      %v4119 = vunpack.c.l.b16 %v3747
      %v4120 = vunpack.c.h.b16 %v3747
      %v4121 = vunpack.c.l.b16 %v3748
      %v4122 = vunpack.c.h.b16 %v3748
      %v4123 = vunpack.c.l.b16 %v3749
      %v4124 = vunpack.c.h.b16 %v3749
      %v4125 = vunpack.c.l.b16 %v3750
      %v4126 = vunpack.c.h.b16 %v3750
      %v4127 = vunpack.c.l.b16 %v3751
      %v4128 = vunpack.c.h.b16 %v3751
      %v4129 = vunpack.c.l.b16 %v3752
      %v4130 = vunpack.c.h.b16 %v3752
      %v4131 = vunpack.c.l.b16 %v3753
      %v4132 = vunpack.c.h.b16 %v3753
      %v4133 = vunpack.c.l.b16 %v3754
      %v4134 = vunpack.c.h.b16 %v3754
      %v4135 = vunpack.c.l.b16 %v3755
      %v4136 = vunpack.c.h.b16 %v3755
      %v4137 = vunpack.c.l.b16 %v3756
      %v4138 = vunpack.c.h.b16 %v3756
      %v4139 = vunpack.c.l.b16 %v3757
      %v4140 = vunpack.c.h.b16 %v3757
      %v4141 = vunpack.c.l.b16 %v3758
      %v4142 = vunpack.c.h.b16 %v3758
      %v4143 = vunpack.c.l.b16 %v3759
      %v4144 = vunpack.c.h.b16 %v3759
      %v4145 = vunpack.c.l.b16 %v3760
      %v4146 = vunpack.c.h.b16 %v3760
      %v4147 = vunpack.c.l.b16 %v3761
      %v4148 = vunpack.c.h.b16 %v3761
      %v4149 = vunpack.c.l.b16 %v3762
      %v4150 = vunpack.c.h.b16 %v3762
      %v4151 = vunpack.c.l.b16 %v3763
      %v4152 = vunpack.c.h.b16 %v3763
      %v4153 = vpack.c.b16 %v3899, %v3897
      %v4154 = vpack.c.b16 %v3900, %v3898
      %v4155 = vpack.c.b16 %v3903, %v3901
      %v4156 = vpack.c.b16 %v3904, %v3902
      %v4157 = vpack.c.b16 %v3907, %v3905
      %v4158 = vpack.c.b16 %v3908, %v3906
      %v4159 = vpack.c.b16 %v3911, %v3909
      %v4160 = vpack.c.b16 %v3912, %v3910
      %v4161 = vpack.c.b16 %v3915, %v3913
      %v4162 = vpack.c.b16 %v3916, %v3914
      %v4163 = vpack.c.b16 %v3919, %v3917
      %v4164 = vpack.c.b16 %v3920, %v3918
      %v4165 = vpack.c.b16 %v3923, %v3921
      %v4166 = vpack.c.b16 %v3924, %v3922
      %v4167 = vpack.c.b16 %v3927, %v3925
      %v4168 = vpack.c.b16 %v3928, %v3926
      %v4169 = vpack.c.b16 %v3931, %v3929
      %v4170 = vpack.c.b16 %v3932, %v3930
      %v4171 = vpack.c.b16 %v3935, %v3933
      %v4172 = vpack.c.b16 %v3936, %v3934
      %v4173 = vpack.c.b16 %v3939, %v3937
      %v4174 = vpack.c.b16 %v3940, %v3938
      %v4175 = vpack.c.b16 %v3943, %v3941
      %v4176 = vpack.c.b16 %v3944, %v3942
      %v4177 = vpack.c.b16 %v3947, %v3945
      %v4178 = vpack.c.b16 %v3948, %v3946
      %v4179 = vpack.c.b16 %v3951, %v3949
      %v4180 = vpack.c.b16 %v3952, %v3950
      %v4181 = vpack.c.b16 %v3955, %v3953
      %v4182 = vpack.c.b16 %v3956, %v3954
      %v4183 = vpack.c.b16 %v3959, %v3957
      %v4184 = vpack.c.b16 %v3960, %v3958
      %v4185 = vpack.c.b16 %v3963, %v3961
      %v4186 = vpack.c.b16 %v3964, %v3962
      %v4187 = vpack.c.b16 %v3967, %v3965
      %v4188 = vpack.c.b16 %v3968, %v3966
      %v4189 = vpack.c.b16 %v3971, %v3969
      %v4190 = vpack.c.b16 %v3972, %v3970
      %v4191 = vpack.c.b16 %v3975, %v3973
      %v4192 = vpack.c.b16 %v3976, %v3974
      %v4193 = vpack.c.b16 %v3979, %v3977
      %v4194 = vpack.c.b16 %v3980, %v3978
      %v4195 = vpack.c.b16 %v3983, %v3981
      %v4196 = vpack.c.b16 %v3984, %v3982
      %v4197 = vpack.c.b16 %v3987, %v3985
      %v4198 = vpack.c.b16 %v3988, %v3986
      %v4199 = vpack.c.b16 %v3991, %v3989
      %v4200 = vpack.c.b16 %v3992, %v3990
      %v4201 = vpack.c.b16 %v3995, %v3993
      %v4202 = vpack.c.b16 %v3996, %v3994
      %v4203 = vpack.c.b16 %v3999, %v3997
      %v4204 = vpack.c.b16 %v4000, %v3998
      %v4205 = vpack.c.b16 %v4003, %v4001
      %v4206 = vpack.c.b16 %v4004, %v4002
      %v4207 = vpack.c.b16 %v4007, %v4005
      %v4208 = vpack.c.b16 %v4008, %v4006
      %v4209 = vpack.c.b16 %v4011, %v4009
      %v4210 = vpack.c.b16 %v4012, %v4010
      %v4211 = vpack.c.b16 %v4015, %v4013
      %v4212 = vpack.c.b16 %v4016, %v4014
      %v4213 = vpack.c.b16 %v4019, %v4017
      %v4214 = vpack.c.b16 %v4020, %v4018
      %v4215 = vpack.c.b16 %v4023, %v4021
      %v4216 = vpack.c.b16 %v4024, %v4022
      %v4217 = vpack.c.b16 %v4027, %v4025
      %v4218 = vpack.c.b16 %v4028, %v4026
      %v4219 = vpack.c.b16 %v4031, %v4029
      %v4220 = vpack.c.b16 %v4032, %v4030
      %v4221 = vpack.c.b16 %v4035, %v4033
      %v4222 = vpack.c.b16 %v4036, %v4034
      %v4223 = vpack.c.b16 %v4039, %v4037
      %v4224 = vpack.c.b16 %v4040, %v4038
      %v4225 = vpack.c.b16 %v4043, %v4041
      %v4226 = vpack.c.b16 %v4044, %v4042
      %v4227 = vpack.c.b16 %v4047, %v4045
      %v4228 = vpack.c.b16 %v4048, %v4046
      %v4229 = vpack.c.b16 %v4051, %v4049
      %v4230 = vpack.c.b16 %v4052, %v4050
      %v4231 = vpack.c.b16 %v4055, %v4053
      %v4232 = vpack.c.b16 %v4056, %v4054
      %v4233 = vpack.c.b16 %v4059, %v4057
      %v4234 = vpack.c.b16 %v4060, %v4058
      %v4235 = vpack.c.b16 %v4063, %v4061
      %v4236 = vpack.c.b16 %v4064, %v4062
      %v4237 = vpack.c.b16 %v4067, %v4065
      %v4238 = vpack.c.b16 %v4068, %v4066
      %v4239 = vpack.c.b16 %v4071, %v4069
      %v4240 = vpack.c.b16 %v4072, %v4070
      %v4241 = vpack.c.b16 %v4075, %v4073
      %v4242 = vpack.c.b16 %v4076, %v4074
      %v4243 = vpack.c.b16 %v4079, %v4077
      %v4244 = vpack.c.b16 %v4080, %v4078
      %v4245 = vpack.c.b16 %v4083, %v4081
      %v4246 = vpack.c.b16 %v4084, %v4082
      %v4247 = vpack.c.b16 %v4087, %v4085
      %v4248 = vpack.c.b16 %v4088, %v4086
      %v4249 = vpack.c.b16 %v4091, %v4089
      %v4250 = vpack.c.b16 %v4092, %v4090
      %v4251 = vpack.c.b16 %v4095, %v4093
      %v4252 = vpack.c.b16 %v4096, %v4094
      %v4253 = vpack.c.b16 %v4099, %v4097
      %v4254 = vpack.c.b16 %v4100, %v4098
      %v4255 = vpack.c.b16 %v4103, %v4101
      %v4256 = vpack.c.b16 %v4104, %v4102
      %v4257 = vpack.c.b16 %v4107, %v4105
      %v4258 = vpack.c.b16 %v4108, %v4106
      %v4259 = vpack.c.b16 %v4111, %v4109
      %v4260 = vpack.c.b16 %v4112, %v4110
      %v4261 = vpack.c.b16 %v4115, %v4113
      %v4262 = vpack.c.b16 %v4116, %v4114
      %v4263 = vpack.c.b16 %v4119, %v4117
      %v4264 = vpack.c.b16 %v4120, %v4118
      %v4265 = vpack.c.b16 %v4123, %v4121
      %v4266 = vpack.c.b16 %v4124, %v4122
      %v4267 = vpack.c.b16 %v4127, %v4125
      %v4268 = vpack.c.b16 %v4128, %v4126
      %v4269 = vpack.c.b16 %v4131, %v4129
      %v4270 = vpack.c.b16 %v4132, %v4130
      %v4271 = vpack.c.b16 %v4135, %v4133
      %v4272 = vpack.c.b16 %v4136, %v4134
      %v4273 = vpack.c.b16 %v4139, %v4137
      %v4274 = vpack.c.b16 %v4140, %v4138
      %v4275 = vpack.c.b16 %v4143, %v4141
      %v4276 = vpack.c.b16 %v4144, %v4142
      %v4277 = vpack.c.b16 %v4147, %v4145
      %v4278 = vpack.c.b16 %v4148, %v4146
      %v4279 = vpack.c.b16 %v4151, %v4149
      %v4280 = vpack.c.b16 %v4152, %v4150
      %4409 = vmatpush.bf16.msra.mxu0 %v4167
      %4410 = vmatpush.bf16.msra.mxu0 %v4165
      %4411 = vmatpush.bf16.msra.mxu0 %v4163
      %4412 = vmatpush.bf16.msra.mxu0 %v4161
      %4413 = vmatpush.bf16.msra.mxu0 %v4159
      %4414 = vmatpush.bf16.msra.mxu0 %v4157
      %4415 = vmatpush.bf16.msra.mxu0 %v4155
      %4416 = vmatpush.bf16.msra.mxu0 %v4153
      %4417 = vmatmul.bf16.gmra.mxu0 %v3628
      %v4418 = vpop.f32.mrf.mxu0
      %v4419 = vadd.f32 %v3765, %v4418
      %v4420 = vpop.f32.mrf.mxu0
      %v4421 = vadd.f32 %v3765, %v4420
      %4422 = vdwg.mxu0
      %4423 = vmatpush.bf16.msra.mxu0 %v4183
      %4424 = vmatpush.bf16.msra.mxu0 %v4181
      %4425 = vmatpush.bf16.msra.mxu0 %v4179
      %4426 = vmatpush.bf16.msra.mxu0 %v4177
      %4427 = vmatpush.bf16.msra.mxu0 %v4175
      %4428 = vmatpush.bf16.msra.mxu0 %v4173
      %4429 = vmatpush.bf16.msra.mxu0 %v4171
      %4430 = vmatpush.bf16.msra.mxu0 %v4169
      %4431 = vmatmul.bf16.gmra.mxu0 %v3629
      %v4432 = vpop.f32.mrf.mxu0
      %v4433 = vadd.f32 %v4419, %v4432
      %v4434 = vpop.f32.mrf.mxu0
      %v4435 = vadd.f32 %v4421, %v4434
      %4436 = vdwg.mxu0
      %4437 = vmatpush.bf16.msra.mxu0 %v4199
      %4438 = vmatpush.bf16.msra.mxu0 %v4197
      %4439 = vmatpush.bf16.msra.mxu0 %v4195
      %4440 = vmatpush.bf16.msra.mxu0 %v4193
      %4441 = vmatpush.bf16.msra.mxu0 %v4191
      %4442 = vmatpush.bf16.msra.mxu0 %v4189
      %4443 = vmatpush.bf16.msra.mxu0 %v4187
      %4444 = vmatpush.bf16.msra.mxu0 %v4185
      %4445 = vmatmul.bf16.gmra.mxu0 %v3630
      %v4446 = vpop.f32.mrf.mxu0
      %v4447 = vadd.f32 %v4433, %v4446
      %v4448 = vpop.f32.mrf.mxu0
      %v4449 = vadd.f32 %v4435, %v4448
      %4450 = vdwg.mxu0
      %4451 = vmatpush.bf16.msra.mxu0 %v4215
      %4452 = vmatpush.bf16.msra.mxu0 %v4213
      %4453 = vmatpush.bf16.msra.mxu0 %v4211
      %4454 = vmatpush.bf16.msra.mxu0 %v4209
      %4455 = vmatpush.bf16.msra.mxu0 %v4207
      %4456 = vmatpush.bf16.msra.mxu0 %v4205
      %4457 = vmatpush.bf16.msra.mxu0 %v4203
      %4458 = vmatpush.bf16.msra.mxu0 %v4201
      %4459 = vmatmul.bf16.gmra.mxu0 %v3631
      %v4460 = vpop.f32.mrf.mxu0
      %v4461 = vadd.f32 %v4447, %v4460
      %v4462 = vpop.f32.mrf.mxu0
      %v4463 = vadd.f32 %v4449, %v4462
      %4464 = vdwg.mxu0
      %4465 = vmatpush.bf16.msra.mxu0 %v4231
      %4466 = vmatpush.bf16.msra.mxu0 %v4229
      %4467 = vmatpush.bf16.msra.mxu0 %v4227
      %4468 = vmatpush.bf16.msra.mxu0 %v4225
      %4469 = vmatpush.bf16.msra.mxu0 %v4223
      %4470 = vmatpush.bf16.msra.mxu0 %v4221
      %4471 = vmatpush.bf16.msra.mxu0 %v4219
      %4472 = vmatpush.bf16.msra.mxu0 %v4217
      %4473 = vmatmul.bf16.gmra.mxu0 %v3632
      %v4474 = vpop.f32.mrf.mxu0
      %v4475 = vadd.f32 %v4461, %v4474
      %v4476 = vpop.f32.mrf.mxu0
      %v4477 = vadd.f32 %v4463, %v4476
      %4478 = vdwg.mxu0
      %4479 = vmatpush.bf16.msra.mxu0 %v4247
      %4480 = vmatpush.bf16.msra.mxu0 %v4245
      %4481 = vmatpush.bf16.msra.mxu0 %v4243
      %4482 = vmatpush.bf16.msra.mxu0 %v4241
      %4483 = vmatpush.bf16.msra.mxu0 %v4239
      %4484 = vmatpush.bf16.msra.mxu0 %v4237
      %4485 = vmatpush.bf16.msra.mxu0 %v4235
      %4486 = vmatpush.bf16.msra.mxu0 %v4233
      %4487 = vmatmul.bf16.gmra.mxu0 %v3633
      %v4488 = vpop.f32.mrf.mxu0
      %v4489 = vadd.f32 %v4475, %v4488
      %v4490 = vpop.f32.mrf.mxu0
      %v4491 = vadd.f32 %v4477, %v4490
      %4492 = vdwg.mxu0
      %4493 = vmatpush.bf16.msra.mxu0 %v4263
      %4494 = vmatpush.bf16.msra.mxu0 %v4261
      %4495 = vmatpush.bf16.msra.mxu0 %v4259
      %4496 = vmatpush.bf16.msra.mxu0 %v4257
      %4497 = vmatpush.bf16.msra.mxu0 %v4255
      %4498 = vmatpush.bf16.msra.mxu0 %v4253
      %4499 = vmatpush.bf16.msra.mxu0 %v4251
      %4500 = vmatpush.bf16.msra.mxu0 %v4249
      %4501 = vmatmul.bf16.gmra.mxu0 %v3634
      %v4502 = vpop.f32.mrf.mxu0
      %v4503 = vadd.f32 %v4489, %v4502
      %v4504 = vpop.f32.mrf.mxu0
      %v4505 = vadd.f32 %v4491, %v4504
      %4506 = vdwg.mxu0
      %4507 = vmatpush.bf16.msra.mxu0 %v4279
      %4508 = vmatpush.bf16.msra.mxu0 %v4277
      %4509 = vmatpush.bf16.msra.mxu0 %v4275
      %4510 = vmatpush.bf16.msra.mxu0 %v4273
      %4511 = vmatpush.bf16.msra.mxu0 %v4271
      %4512 = vmatpush.bf16.msra.mxu0 %v4269
      %4513 = vmatpush.bf16.msra.mxu0 %v4267
      %4514 = vmatpush.bf16.msra.mxu0 %v4265
      %4515 = vmatmul.bf16.gmra.mxu0 %v3635
      %v4516 = vpop.f32.mrf.mxu0
      %v4517 = vadd.f32 %v4503, %v4516
      %v4518 = vpop.f32.mrf.mxu0
      %v4519 = vadd.f32 %v4505, %v4518
      %4520 = vdwg.mxu0
      %4521 = vmatpush.bf16.msra.mxu0 %v4168
      %4522 = vmatpush.bf16.msra.mxu0 %v4166
      %4523 = vmatpush.bf16.msra.mxu0 %v4164
      %4524 = vmatpush.bf16.msra.mxu0 %v4162
      %4525 = vmatpush.bf16.msra.mxu0 %v4160
      %4526 = vmatpush.bf16.msra.mxu0 %v4158
      %4527 = vmatpush.bf16.msra.mxu0 %v4156
      %4528 = vmatpush.bf16.msra.mxu0 %v4154
      %4529 = vmatmul.bf16.gmra.mxu0 %v3628
      %v4530 = vpop.f32.mrf.mxu0
      %v4531 = vadd.f32 %v3766, %v4530
      %v4532 = vpop.f32.mrf.mxu0
      %v4533 = vadd.f32 %v3766, %v4532
      %4534 = vdwg.mxu0
      %4535 = vmatpush.bf16.msra.mxu0 %v4184
      %4536 = vmatpush.bf16.msra.mxu0 %v4182
      %4537 = vmatpush.bf16.msra.mxu0 %v4180
      %4538 = vmatpush.bf16.msra.mxu0 %v4178
      %4539 = vmatpush.bf16.msra.mxu0 %v4176
      %4540 = vmatpush.bf16.msra.mxu0 %v4174
      %4541 = vmatpush.bf16.msra.mxu0 %v4172
      %4542 = vmatpush.bf16.msra.mxu0 %v4170
      %4543 = vmatmul.bf16.gmra.mxu0 %v3629
      %v4544 = vpop.f32.mrf.mxu0
      %v4545 = vadd.f32 %v4531, %v4544
      %v4546 = vpop.f32.mrf.mxu0
      %v4547 = vadd.f32 %v4533, %v4546
      %4548 = vdwg.mxu0
      %4549 = vmatpush.bf16.msra.mxu0 %v4200
      %4550 = vmatpush.bf16.msra.mxu0 %v4198
      %4551 = vmatpush.bf16.msra.mxu0 %v4196
      %4552 = vmatpush.bf16.msra.mxu0 %v4194
      %4553 = vmatpush.bf16.msra.mxu0 %v4192
      %4554 = vmatpush.bf16.msra.mxu0 %v4190
      %4555 = vmatpush.bf16.msra.mxu0 %v4188
      %4556 = vmatpush.bf16.msra.mxu0 %v4186
      %4557 = vmatmul.bf16.gmra.mxu0 %v3630
      %v4558 = vpop.f32.mrf.mxu0
      %v4559 = vadd.f32 %v4545, %v4558
      %v4560 = vpop.f32.mrf.mxu0
      %v4561 = vadd.f32 %v4547, %v4560
      %4562 = vdwg.mxu0
      %4563 = vmatpush.bf16.msra.mxu0 %v4216
      %4564 = vmatpush.bf16.msra.mxu0 %v4214
      %4565 = vmatpush.bf16.msra.mxu0 %v4212
      %4566 = vmatpush.bf16.msra.mxu0 %v4210
      %4567 = vmatpush.bf16.msra.mxu0 %v4208
      %4568 = vmatpush.bf16.msra.mxu0 %v4206
      %4569 = vmatpush.bf16.msra.mxu0 %v4204
      %4570 = vmatpush.bf16.msra.mxu0 %v4202
      %4571 = vmatmul.bf16.gmra.mxu0 %v3631
      %v4572 = vpop.f32.mrf.mxu0
      %v4573 = vadd.f32 %v4559, %v4572
      %v4574 = vpop.f32.mrf.mxu0
      %v4575 = vadd.f32 %v4561, %v4574
      %4576 = vdwg.mxu0
      %4577 = vmatpush.bf16.msra.mxu0 %v4232
      %4578 = vmatpush.bf16.msra.mxu0 %v4230
      %4579 = vmatpush.bf16.msra.mxu0 %v4228
      %4580 = vmatpush.bf16.msra.mxu0 %v4226
      %4581 = vmatpush.bf16.msra.mxu0 %v4224
      %4582 = vmatpush.bf16.msra.mxu0 %v4222
      %4583 = vmatpush.bf16.msra.mxu0 %v4220
      %4584 = vmatpush.bf16.msra.mxu0 %v4218
      %4585 = vmatmul.bf16.gmra.mxu0 %v3632
      %v4586 = vpop.f32.mrf.mxu0
      %v4587 = vadd.f32 %v4573, %v4586
      %v4588 = vpop.f32.mrf.mxu0
      %v4589 = vadd.f32 %v4575, %v4588
      %4590 = vdwg.mxu0
      %4591 = vmatpush.bf16.msra.mxu0 %v4248
      %4592 = vmatpush.bf16.msra.mxu0 %v4246
      %4593 = vmatpush.bf16.msra.mxu0 %v4244
      %4594 = vmatpush.bf16.msra.mxu0 %v4242
      %4595 = vmatpush.bf16.msra.mxu0 %v4240
      %4596 = vmatpush.bf16.msra.mxu0 %v4238
      %4597 = vmatpush.bf16.msra.mxu0 %v4236
      %4598 = vmatpush.bf16.msra.mxu0 %v4234
      %4599 = vmatmul.bf16.gmra.mxu0 %v3633
      %v4600 = vpop.f32.mrf.mxu0
      %v4601 = vadd.f32 %v4587, %v4600
      %v4602 = vpop.f32.mrf.mxu0
      %v4603 = vadd.f32 %v4589, %v4602
      %4604 = vdwg.mxu0
      %4605 = vmatpush.bf16.msra.mxu0 %v4264
      %4606 = vmatpush.bf16.msra.mxu0 %v4262
      %4607 = vmatpush.bf16.msra.mxu0 %v4260
      %4608 = vmatpush.bf16.msra.mxu0 %v4258
      %4609 = vmatpush.bf16.msra.mxu0 %v4256
      %4610 = vmatpush.bf16.msra.mxu0 %v4254
      %4611 = vmatpush.bf16.msra.mxu0 %v4252
      %4612 = vmatpush.bf16.msra.mxu0 %v4250
      %4613 = vmatmul.bf16.gmra.mxu0 %v3634
      %v4614 = vpop.f32.mrf.mxu0
      %v4615 = vadd.f32 %v4601, %v4614
      %v4616 = vpop.f32.mrf.mxu0
      %v4617 = vadd.f32 %v4603, %v4616
      %4618 = vdwg.mxu0
      %4619 = vmatpush.bf16.msra.mxu0 %v4280
      %4620 = vmatpush.bf16.msra.mxu0 %v4278
      %4621 = vmatpush.bf16.msra.mxu0 %v4276
      %4622 = vmatpush.bf16.msra.mxu0 %v4274
      %4623 = vmatpush.bf16.msra.mxu0 %v4272
      %4624 = vmatpush.bf16.msra.mxu0 %v4270
      %4625 = vmatpush.bf16.msra.mxu0 %v4268
      %4626 = vmatpush.bf16.msra.mxu0 %v4266
      %4627 = vmatmul.bf16.gmra.mxu0 %v3635
      %v4628 = vpop.f32.mrf.mxu0
      %v4629 = vadd.f32 %v4615, %v4628
      %v4630 = vpop.f32.mrf.mxu0
      %v4631 = vadd.f32 %v4617, %v4630
      %4632 = vdwg.mxu0
      %v4633 = vadd.f32 %v2401, %v4517
      %v4634 = vadd.f32 %v2402, %v4629
      %v4635 = vadd.f32 %v2403, %v4519
      %v4636 = vadd.f32 %v2404, %v4631
      %4637 = vst [vmem:[#allocation2] sm:$0xff] %v4633
      %4638 = vst [vmem:[#allocation2 + $0x8] sm:$0xff] %v4634
      %4639 = vst [vmem:[#allocation2 + $0x10] sm:$0xff] %v4635
      %4640 = vst [vmem:[#allocation2 + $0x18] sm:$0xff] %v4636
      %p4641 = scmp.eq.s32.totalorder %s22, 1
      // Predicated region
      $region49: #{image_encoder_forward.1} parent=43 // pred_check
        %p4642 = pneg %p4641
      $region50: #{image_encoder_forward.1} parent=43 // pred_check_branch
        %4644 = sbr.rel (%p4642) target = $region52
      $region51: #{image_encoder_forward.1} parent=43 // pred_region
        %v4645 = vadd.f32 %v4633, %v4634
        %4646 = vadd.xlane.f32.xlu0 %v4645
        %v4647 = vpop.xlane.xlu0 %4646
        %v4648 = vadd.f32 %v4635, %v4636
        %4649 = vadd.xlane.f32.xlu0 %v4648
        %v4650 = vpop.xlane.xlu0 %4649
        %v4651 = vmul.f32 %v4647, %v1205
        %v4652 = vmul.f32 %v4650, %v1205
        %v4653 = vsub.f32 %v4633, %v4651
        %v4654 = vsub.f32 %v4634, %v4651
        %v4655 = vsub.f32 %v4635, %v4652
        %v4656 = vsub.f32 %v4636, %v4652
        %v4657 = vmul.f32 %v4653, %v4653
        %v4658 = vmul.f32 %v4654, %v4654
        %v4659 = vmul.f32 %v4655, %v4655
        %v4660 = vmul.f32 %v4656, %v4656
        %v4661 = vadd.f32 %v4657, %v4658
        %4662 = vadd.xlane.f32.xlu0 %v4661
        %v4663 = vpop.xlane.xlu0 %4662
        %v4664 = vadd.f32 %v4659, %v4660
        %4665 = vadd.xlane.f32.xlu0 %v4664
        %v4666 = vpop.xlane.xlu0 %4665
        %v4667 = vmul.f32 %v4663, %v1205
        %v4668 = vmul.f32 %v4666, %v1205
        %v4669 = vadd.f32 %v4667, 1e-12
        %v4670 = vadd.f32 %v4668, 1e-12
        %v4671 = vrsqrt.pop %v4669
        %v4672 = vmul.f32 %v4671, %v4669
        %v4673 = vmul.f32 %v4672, %v4671
        %v4674 = vmul.f32 0.5, %v4673
        %v4675 = vsub.f32 1.5, %v4674
        %v4676 = vmul.f32 %v4671, %v4675
        %vm4677 = vweird.f32 %v4669
        %vm4678 = vweird.f32 %v4671
        %vm4679 = vmor %vm4677, %vm4678
        %v4680 = vsel %vm4679, %v4671, %v4676
        %v4681 = vrsqrt.pop %v4670
        %v4682 = vmul.f32 %v4681, %v4670
        %v4683 = vmul.f32 %v4682, %v4681
        %v4684 = vmul.f32 0.5, %v4683
        %v4685 = vsub.f32 1.5, %v4684
        %v4686 = vmul.f32 %v4681, %v4685
        %vm4687 = vweird.f32 %v4670
        %vm4688 = vweird.f32 %v4681
        %vm4689 = vmor %vm4687, %vm4688
        %v4690 = vsel %vm4689, %v4681, %v4686
        %v4691 = vmul.f32 %v4653, %v4680
        %v4692 = vmul.f32 %v4654, %v4680
        %v4693 = vmul.f32 %v4655, %v4690
        %v4694 = vmul.f32 %v4656, %v4690
        %v4696 = vperm.slane %v1174, 0
        %v4697 = vperm.slane %v1174, 1
        %v4700 = vmul.f32 %v4691, %v4696
        %v4701 = vmul.f32 %v4692, %v4697
        %v4702 = vmul.f32 %v4693, %v4696
        %v4703 = vmul.f32 %v4694, %v4697
        %v4705 = vperm.slane %v1176, 0
        %v4706 = vperm.slane %v1176, 1
        %v4709 = vadd.f32 %v4700, %v4705
        %v4710 = vadd.f32 %v4701, %v4706
        %v4711 = vadd.f32 %v4702, %v4705
        %v4712 = vadd.f32 %v4703, %v4706
        %4713 = vst [vmem:[%s355] sm:$0xff] %v4709
        %4714 = vst [vmem:[%s355 + $0x8] sm:$0xff] %v4710
        %4715 = vst [vmem:[%s355 + $0x10] sm:$0xff] %v4711
        %4716 = vst [vmem:[%s355 + $0x18] sm:$0xff] %v4712
      $region52: #{image_encoder_forward.1} parent=43 // pred_fallthru
        _
      %s4717 = smul.u32 2, %s21
      %p4718 = scmp.lt.s32.totalorder %s4717, 1
      %s4719 = scalar_select %p4718, %s4717, 1
      %s4720 = smul.addr %s4719, 2
      %s4721 = smul.addr %s4720, 8
      %s4722 = scalar_lea.vmem %s6, %s4721
      // Predicated region
      $region53: #{image_encoder_forward.1} parent=43 // pred_check
        %p4723 = pneg %p198
      $region54: #{image_encoder_forward.1} parent=43 // pred_check_branch
        %4725 = sbr.rel (%p4723) target = $region56
      $region55: #{image_encoder_forward.1} parent=43 // pred_region
        %s4726 = smul.u32 2, %s21
      $region56: #{image_encoder_forward.1} parent=43 // pred_fallthru
        _
      // Predicated region
      $region57: #{image_encoder_forward.1} parent=43 // pred_check
        %p4727 = pneg %p198
      $region58: #{image_encoder_forward.1} parent=43 // pred_check_branch
        %4729 = sbr.rel (%p4727) target = $region60
      $region59: #{image_encoder_forward.1} parent=43 // pred_region
        %s4730 = smul.u32 2, %s21
        %p4731 = scmp.lt.s32.totalorder %s4730, 1
        %s4732 = scalar_select %p4731, %s4730, 1
        %s4733 = smul.addr %s4732, 2
        %s4734 = smul.addr %s4733, 8
        %s4735 = scalar_lea.vmem %s6, %s4734
      $region60: #{image_encoder_forward.1} parent=43 // pred_fallthru
        _
    $region44: #{image_encoder_forward.1} parent=5 // pred_fallthru
      _
    %p4736 = scmp.le.s32.totalorder 2, %s12
    // Predicated region
    $region61: #{image_encoder_forward.1} parent=5 // pred_check
      %p4737 = pneg %p4736
    $region62: #{image_encoder_forward.1} parent=5 // pred_check_branch
      %4739 = sbr.rel (%p4737) target = $region64
    $region63: #{image_encoder_forward.1} parent=5 // pred_region
      %s4740 = ssub.s32 %s12, 2
    $region64: #{image_encoder_forward.1} parent=5 // pred_fallthru
      _
  $region6: #{image_encoder_forward.1} parent=0 // loop_footer
    %s16 = sadd.s32 1, %s12
  $region7: #{image_encoder_forward.1} parent=0 // loop_footer_branch
    %11 = sbr.rel target = $region3
  $region8: #{image_encoder_forward.1} parent=0 // loop_exit
    _

</llo_original>
